<compile_context>
chip_gen: v7x
topology: tpu7x:2x2x1
jax: 0.10.0
libtpu: 0.0.40
codegen_flags: <defaults>
</compile_context>

<pallas_src>
import math
from functools import partial

import numpy as np
import jax
import jax.numpy as jnp
from jax.experimental import pallas as pl
from jax.experimental.pallas import tpu as pltpu


NUM_MID = 16              # Ghostblockv2 num_mid (fixed by CPNGhostblockv2)
INIT_CH = NUM_MID // 2    # ghost1 init_channels = ceil(16/2) = 8


# ----------------------------------------------------------------------------
# host-side operators (precomputed, deterministic)
# ----------------------------------------------------------------------------
def _taps(kh, kw):
    return tuple((i - kh // 2, j - kw // 2) for i in range(kh) for j in range(kw))


def _dw_mask(h, w, kh, kw):
    """[KH*KW, h*w] float mask: 1 where the shifted source pixel is in bounds."""
    m = np.zeros((kh * kw, h * w), np.float32)
    for t, (dh, dw) in enumerate(_taps(kh, kw)):
        for i in range(h):
            for j in range(w):
                if 0 <= i + dh < h and 0 <= j + dw < w:
                    m[t, i * w + j] = 1.0
    return m


def _pool_matrix(h, w):
    """[h*w, (h//2)*(w//2)] operator for 2x2 avg-pool stride 2 (applied as x @ P)."""
    ho, wo = h // 2, w // 2
    p = np.zeros((h * w, ho * wo), np.float32)
    for io in range(ho):
        for jo in range(wo):
            q = io * wo + jo
            for di in range(2):
                for dj in range(2):
                    p[(2 * io + di) * w + (2 * jo + dj), q] = 0.25
    return p


def _interp_1d(n_out, n_in):
    v = np.zeros((n_out, n_in), np.float32)
    scale = (n_in - 1) / (n_out - 1) if n_out > 1 else 0.0
    for i in range(n_out):
        s = i * scale
        lo = min(int(np.floor(s)), n_in - 1)
        hi = min(lo + 1, n_in - 1)
        f = s - lo
        v[i, lo] += 1.0 - f
        v[i, hi] += f
    return v


def _upsample_matrix(ho, wo, h, w):
    """[(ho*wo), (h*w)] bilinear align_corners=True operator (applied as x @ U)."""
    vh = _interp_1d(h, ho)            # [h, ho]
    vw = _interp_1d(w, wo)            # [w, wo]
    return np.ascontiguousarray(np.kron(vh, vw).T)


# ----------------------------------------------------------------------------
# deterministic synthetic parameters with BatchNorm folded into the weights
# ----------------------------------------------------------------------------
def _bn_fold(key, cout):
    k1, k2, k3, k4 = jax.random.split(key, 4)
    gamma = 1.0 + 0.1 * jax.random.normal(k1, (cout,), jnp.float32)
    beta = 0.1 * jax.random.normal(k2, (cout,), jnp.float32)
    mean = 0.1 * jax.random.normal(k3, (cout,), jnp.float32)
    var = 1.0 + 0.1 * jnp.abs(jax.random.normal(k4, (cout,), jnp.float32))
    scale = gamma / jnp.sqrt(var + 1e-5)
    bias = beta - mean * scale
    return scale, bias


def _init_pw(key, cin, cout):
    """1x1 conv + BN folded -> (w [cout, cin], b [cout])."""
    kw, kb = jax.random.split(key)
    w = 0.2 * jax.random.normal(kw, (cout, cin), jnp.float32)
    scale, bias = _bn_fold(kb, cout)
    return w * scale[:, None], bias


def _init_dw(key, c, kh, kw_):
    """depthwise KHxKW conv + BN folded -> (wtap [c, KH*KW], b [c])."""
    kk, kb = jax.random.split(key)
    w = 0.2 * jax.random.normal(kk, (c, kh * kw_), jnp.float32)
    scale, bias = _bn_fold(kb, c)
    return w * scale[:, None], bias


def build_params(key, c1, c2, H, W, e=0.5):
    c = int(c2 * e)
    assert c % 2 == 0, "ghost2 num_out must be even for the residual add"
    g2i = c // 2                                  # ghost2 init_channels
    keys = jax.random.split(key, 9)

    wcv1, bcv1 = _init_pw(keys[0], c1, 2 * c)
    wcv2, bcv2 = _init_pw(keys[1], 2 * c, c2)
    wprim, bprim = _init_pw(keys[2], c, INIT_CH)
    wcheap, bcheap = _init_dw(keys[3], INIT_CH, 3, 3)
    ws1, bs1 = _init_pw(keys[4], c, NUM_MID)
    ws2, bs2 = _init_dw(keys[5], NUM_MID, 1, 5)
    ws3, bs3 = _init_dw(keys[6], NUM_MID, 5, 1)
    wg2p, bg2p = _init_pw(keys[7], NUM_MID, g2i)
    wg2c, bg2c = _init_dw(keys[8], g2i, 3, 3)

    ho, wo = H // 2, W // 2
    return dict(
        c=c, c1=c1, c2=c2, ic=INIT_CH, g2i=g2i, H=H, W=W,
        taps33=_taps(3, 3), taps15=_taps(1, 5), taps51=_taps(5, 1),
        wcv1=wcv1, bcv1=bcv1, wcv2=wcv2, bcv2=bcv2,
        wprim=wprim, bprim=bprim, wcheap=wcheap, bcheap=bcheap,
        ws1=ws1, bs1=bs1, ws2=ws2, bs2=bs2, ws3=ws3, bs3=bs3,
        wg2p=wg2p, bg2p=bg2p, wg2c=wg2c, bg2c=bg2c,
        pool=_pool_matrix(H, W), up=_upsample_matrix(ho, wo, H, W),
        mask33=_dw_mask(H, W, 3, 3), mask15=_dw_mask(ho, wo, 1, 5),
        mask51=_dw_mask(ho, wo, 5, 1),
    )


# ----------------------------------------------------------------------------
# packing of the parameter arrays into a few kernel operands
# ----------------------------------------------------------------------------
# weight-slab order:  0 wcv1, 1 wprim, 2 ws1, 3 wg2p, 4 wcv2, 5 wmy (= wcv2[:, :c])
# bias-slab order:    0 bcv1, 1 bprim, 2 bcheap, 3 bs1, 4 bs2, 5 bs3,
#                     6 bg2p, 7 bg2c, 8 bcv2
def _pack_operands(p, nb):
    c = p["c"]
    wcv2 = np.asarray(p["wcv2"], np.float32)
    w_list = [np.asarray(p["wcv1"], np.float32),
              np.asarray(p["wprim"], np.float32),
              np.asarray(p["ws1"], np.float32),
              np.asarray(p["wg2p"], np.float32),
              wcv2,
              wcv2[:, :c]]
    b_list = [np.asarray(p[k], np.float32).reshape(-1)
              for k in ("bcv1", "bprim", "bcheap", "bs1", "bs2", "bs3",
                        "bg2p", "bg2c", "bcv2")]

    R = max(max(w.shape[0] for w in w_list), max(b.shape[0] for b in b_list))
    C = max(w.shape[1] for w in w_list)
    wslab = np.zeros((len(w_list), R, C), np.float32)
    for k, w in enumerate(w_list):
        wslab[k, :w.shape[0], :w.shape[1]] = w
    bslab = np.zeros((R, len(b_list)), np.float32)
    for k, b in enumerate(b_list):
        bslab[:b.shape[0], k] = b

    def fuse(wtap, mask):
        # pre-fold the boundary mask into the per-channel tap weights and tile
        # it across the NB images packed along the lane axis: [T, C, NB*HW']
        wt = np.asarray(wtap, np.float32)                       # [C, T]
        m = np.tile(np.asarray(mask, np.float32), (1, nb))      # [T, NB*HW']
        return jnp.asarray(wt.T[:, :, None] * m[:, None, :])

    eye = np.eye(nb, dtype=np.float32)
    return [
        jnp.asarray(wslab), jnp.asarray(bslab),
        fuse(p["wcheap"], p["mask33"]),
        fuse(p["ws2"], p["mask15"]),
        fuse(p["ws3"], p["mask51"]),
        fuse(p["wg2c"], p["mask33"]),
        jnp.asarray(np.kron(eye, np.asarray(p["pool"], np.float32))),
        jnp.asarray(np.kron(eye, np.asarray(p["up"], np.float32))),
    ]


def _choose_nb(n, max_nb=4):
    """Largest divisor of n <= max_nb that still leaves a >=2-step grid."""
    best = 1
    for d in range(1, min(n, max_nb) + 1):
        if n % d == 0 and (n // d >= 2 or n == 1):
            best = d
    return best


# ----------------------------------------------------------------------------
# fused Pallas kernel
# ----------------------------------------------------------------------------
def _sigmoid(x, approx):
    # numerically stable: exp of a non-positive argument; reciprocal on the EUP
    e = jnp.exp(-jnp.abs(x))
    s = pl.reciprocal(1.0 + e, approx=approx)
    return jnp.where(x >= 0.0, s, 1.0 - s)


def _silu(x):
    return x * _sigmoid(x, approx=False)


def _shift_lanes(x, d):
    """Fallback shift (y[:, p] = x[:, p + d], zero-filled) for lanes % 128 != 0."""
    cdim, pdim = x.shape
    z = jnp.zeros((cdim, abs(d)), x.dtype)
    if d > 0:
        return jnp.concatenate([x[:, d:], z], axis=1)
    return jnp.concatenate([z, x[:, :pdim + d]], axis=1)


def _dw_conv(x, mw_ref, bias, taps, row_w):
    """Depthwise conv on a [C, NB*HW'] slab.

    mw_ref: [T, C, NB*HW'] tap weights with the in-bounds mask pre-folded in,
    bias:   [C, 1], taps: static ((dh, dw), ...), row_w: per-image row width.
    The mask zeroes every lane that a roll wraps / shifts out of bounds.
    """
    num_lanes = x.shape[-1]
    use_roll = (num_lanes % 128) == 0
    acc = None
    for t, (dh, dw) in enumerate(taps):
        d = dh * row_w + dw
        if d == 0:
            xs = x
        elif use_roll:
            xs = pltpu.roll(x, shift=(-d) % num_lanes, axis=1)   # XLU rotate
        else:
            xs = _shift_lanes(x, d)
        term = xs * mw_ref[t]
        acc = term if acc is None else acc + term
    return acc + bias


def _fused_kernel(
    x_ref, wslab_ref, bslab_ref,
    mwcheap_ref, mws2_ref, mws3_ref, mwg2c_ref,
    pool_ref, up_ref,
    o_ref,
    *, c, ic, g2i, c1, c2, W, Wo, taps33, taps15, taps51,
):
    f32 = jnp.float32
    x = x_ref[0].astype(f32)                                       # [c1, NB*HW]
    ball = bslab_ref[...]                                          # [R, 9]

    # cv1: 1x1 conv + BN + SiLU; y = cat([a, b]) stays as one slab
    y = jnp.dot(wslab_ref[0][:2 * c, :c1], x,
                preferred_element_type=f32) + ball[:2 * c, 0:1]
    y = _silu(y)                                                   # [2c, P]
    a = y[:c]                                                      # [c, P]

    # ---------------- Ghostblockv2(c, 16, c) applied to `a` ----------------
    # DFC gate: avgpool2x2 -> 1x1(c->16) -> dw(1,5) -> dw(5,1) -> sigmoid -> upsample
    pooled = jnp.dot(a, pool_ref[...], preferred_element_type=f32)           # [c, Pq]
    res = jnp.dot(wslab_ref[2][:NUM_MID, :c], pooled,
                  preferred_element_type=f32) + ball[:NUM_MID, 3:4]
    res = _dw_conv(res, mws2_ref, ball[:NUM_MID, 4:5], taps15, Wo)
    res = _dw_conv(res, mws3_ref, ball[:NUM_MID, 5:6], taps51, Wo)
    # sigmoid (approx recip, gate only) then bilinear align_corners=True
    # upsample as one precomputed block-diagonal matmul
    gate = jnp.dot(_sigmoid(res, approx=True), up_ref[...],
                   preferred_element_type=f32)                               # [16, P]

    # ghost1 primary / cheap path (relu)
    x1 = jnp.maximum(jnp.dot(wslab_ref[1][:ic, :c], a,
                             preferred_element_type=f32) + ball[:ic, 1:2], 0.0)
    x2 = jnp.maximum(_dw_conv(x1, mwcheap_ref, ball[:ic, 2:3], taps33, W), 0.0)
    gx = jnp.concatenate([x1, x2], axis=0) * gate                            # [16, P]

    # ghost2 (no activation): single 1x1 (16 -> c/2), then depthwise 3x3 (c/2)
    y1 = jnp.dot(wslab_ref[3][:g2i, :NUM_MID], gx,
                 preferred_element_type=f32) + ball[:g2i, 6:7]               # [c/2, P]
    y2 = _dw_conv(y1, mwg2c_ref, ball[:g2i, 7:8], taps33, W)                 # [c/2, P]
    ystack = jnp.concatenate([y1, y2], axis=0)                               # [c, P]

    # cv2 over cat([a + cat([y1, y2]), b]) + SiLU:
    #   = wcv2 @ cat([a, b]) + wcv2[:, :c] @ cat([y1, y2])  (residual + concats folded)
    pre = (jnp.dot(wslab_ref[4][:c2, :2 * c], y, preferred_element_type=f32)
           + jnp.dot(wslab_ref[5][:c2, :c], ystack, preferred_element_type=f32)
           + ball[:c2, 8:9])
    o_ref[0] = _silu(pre).astype(o_ref.dtype)


# ----------------------------------------------------------------------------
# wrapper
# ----------------------------------------------------------------------------
def cpn_ghostblockv2_forward(x_nchw, params, nb=None):
    """x_nchw: [N, c1, H, W] (PyTorch layout) -> [N, c2, H, W]."""
    N, c1, H, W = x_nchw.shape
    assert c1 == params["c1"] and H == params["H"] and W == params["W"]
    HW = H * W
    c2 = params["c2"]

    if nb is None:
        nb = _choose_nb(N)
    assert N % nb == 0, (N, nb)
    G = N // nb
    P = nb * HW

    # lane-dense packing: NB images contiguous along the lane axis per grid step
    xg = x_nchw.reshape(G, nb, c1, HW).transpose(0, 2, 1, 3).reshape(G, c1, P)
    ops = _pack_operands(params, nb)

    kernel = partial(
        _fused_kernel,
        c=params["c"], ic=params["ic"], g2i=params["g2i"],
        c1=c1, c2=c2, W=W, Wo=W // 2,
        taps33=params["taps33"], taps15=params["taps15"], taps51=params["taps51"],
    )

    in_specs = [pl.BlockSpec((1, c1, P), lambda g: (g, 0, 0))]
    for op in ops:
        if op.ndim == 2:
            in_specs.append(pl.BlockSpec(op.shape, lambda g: (0, 0)))
        else:
            in_specs.append(pl.BlockSpec(op.shape, lambda g: (0, 0, 0)))

    out = pl.pallas_call(
        kernel,
        out_shape=jax.ShapeDtypeStruct((G, c2, P), x_nchw.dtype),
        grid=(G,),
        in_specs=in_specs,
        out_specs=pl.BlockSpec((1, c2, P), lambda g: (g, 0, 0)),
        compiler_params=pltpu.CompilerParams(dimension_semantics=("parallel",)),
    )(xg, *ops)

    return out.reshape(G, c2, nb, HW).transpose(0, 2, 1, 3).reshape(N, c2, H, W)


# ----------------------------------------------------------------------------
# plain-JAX reference (same folded params / operators) for validation
# ----------------------------------------------------------------------------
def _reference_forward(x_nchw, p):
    N, c1, H, W = x_nchw.shape
    HW, Wo = H * W, W // 2
    c = p["c"]
    hp = jax.lax.Precision.HIGHEST

    def mm(w, v):                      # [O, I] x [N, I, P] -> [N, O, P]
        return jnp.einsum("oi,nip->nop", w, v, precision=hp)

    def sig(v):
        return 1.0 / (1.0 + jnp.exp(-v))

    def dw(v, wtap, bias, mask, taps, w_sp):
        nb_, ch, pp = v.shape
        mask = jnp.asarray(mask)
        acc = jnp.zeros_like(v)
        for t, (dh, dwd) in enumerate(taps):
            d = dh * w_sp + dwd
            if d > 0:
                vs = jnp.concatenate([v[..., d:], jnp.zeros((nb_, ch, d), v.dtype)], -1)
            elif d < 0:
                vs = jnp.concatenate([jnp.zeros((nb_, ch, -d), v.dtype), v[..., :pp + d]], -1)
            else:
                vs = v
            acc = acc + vs * mask[t][None, None, :] * wtap[:, t][None, :, None]
        return acc + bias.reshape(1, -1, 1)

    x = x_nchw.reshape(N, c1, HW).astype(jnp.float32)
    y = mm(p["wcv1"], x) + p["bcv1"].reshape(1, -1, 1)
    y = y * sig(y)
    a, b = y[:, :c], y[:, c:]

    pooled = jnp.einsum("ncp,pq->ncq", a, jnp.asarray(p["pool"]), precision=hp)
    res = mm(p["ws1"], pooled) + p["bs1"].reshape(1, -1, 1)
    res = dw(res, p["ws2"], p["bs2"], p["mask15"], p["taps15"], Wo)
    res = dw(res, p["ws3"], p["bs3"], p["mask51"], p["taps51"], Wo)
    gate = jnp.einsum("ncq,qp->ncp", sig(res), jnp.asarray(p["up"]), precision=hp)

    x1 = jnp.maximum(mm(p["wprim"], a) + p["bprim"].reshape(1, -1, 1), 0.0)
    x2 = jnp.maximum(dw(x1, p["wcheap"], p["bcheap"], p["mask33"], p["taps33"], W), 0.0)
    gx = jnp.concatenate([x1, x2], axis=1) * gate

    y1 = mm(p["wg2p"], gx) + p["bg2p"].reshape(1, -1, 1)
    y2 = dw(y1, p["wg2c"], p["bg2c"], p["mask33"], p["taps33"], W)
    ghost_out = jnp.concatenate([y1, y2], axis=1)

    pre = (mm(p["wcv2"], jnp.concatenate([a + ghost_out, b], axis=1))
           + p["bcv2"].reshape(1, -1, 1))
    out = pre * sig(pre)
    return out.reshape(N, -1, H, W)


# ----------------------------------------------------------------------------
if __name__ == "__main__":
    key = jax.random.PRNGKey(0)
    kp, kx = jax.random.split(key)

    N, H, W = 4, 16, 16
    c1, c2 = 16, 16                        # -> hidden split c = 8, num_mid = 16

    params = build_params(kp, c1, c2, H, W, e=0.5)
    x = jax.random.normal(kx, (N, c1, H, W), jnp.float32)     # NCHW like PyTorch

    out = jax.block_until_ready(cpn_ghostblockv2_forward(x, params))
    assert out.shape == (N, c2, H, W), out.shape
    assert bool(jnp.all(jnp.isfinite(out)))

    ref = jax.block_until_ready(_reference_forward(x, params))
    err = float(jnp.max(jnp.abs(out - ref)))
    assert err < 5e-2, f"mismatch vs reference: max abs err = {err}"

    print("KERNEL_OK")
</pallas_src>

<mosaic_0001>
module attributes {stable_mosaic.version = 11 : i64} {
  func.func @_fused_kernel(%arg0: i32, %arg1: memref<1x16x512xf32, #tpu.memory_space<vmem>>, %arg2: memref<6x16x16xf32, #tpu.memory_space<vmem>>, %arg3: memref<16x9xf32, #tpu.memory_space<vmem>>, %arg4: memref<9x8x512xf32, #tpu.memory_space<vmem>>, %arg5: memref<5x16x128xf32, #tpu.memory_space<vmem>>, %arg6: memref<5x16x128xf32, #tpu.memory_space<vmem>>, %arg7: memref<9x4x512xf32, #tpu.memory_space<vmem>>, %arg8: memref<512x128xf32, #tpu.memory_space<vmem>>, %arg9: memref<128x512xf32, #tpu.memory_space<vmem>>, %arg10: memref<1x16x512xf32, #tpu.memory_space<vmem>>) attributes {dimension_semantics = [#tpu.dimension_semantics<parallel>], iteration_bounds = array<i64: 2>, scalar_prefetch = 0 : i64, scratch_operands = 0 : i64, tpu.core_type = #tpu.core_type<tc>, window_params = [{transform_indices = @transform_0, window_bounds = array<i64: 1, 16, 512>}, {pipeline_mode = #tpu.pipeline_mode<synchronous>, transform_indices = @transform_1, window_bounds = array<i64: 6, 16, 16>}, {pipeline_mode = #tpu.pipeline_mode<synchronous>, transform_indices = @transform_2, window_bounds = array<i64: 16, 9>}, {pipeline_mode = #tpu.pipeline_mode<synchronous>, transform_indices = @transform_3, window_bounds = array<i64: 9, 8, 512>}, {pipeline_mode = #tpu.pipeline_mode<synchronous>, transform_indices = @transform_4, window_bounds = array<i64: 5, 16, 128>}, {pipeline_mode = #tpu.pipeline_mode<synchronous>, transform_indices = @transform_5, window_bounds = array<i64: 5, 16, 128>}, {pipeline_mode = #tpu.pipeline_mode<synchronous>, transform_indices = @transform_6, window_bounds = array<i64: 9, 4, 512>}, {pipeline_mode = #tpu.pipeline_mode<synchronous>, transform_indices = @transform_7, window_bounds = array<i64: 512, 128>}, {pipeline_mode = #tpu.pipeline_mode<synchronous>, transform_indices = @transform_8, window_bounds = array<i64: 128, 512>}, {transform_indices = @transform_9, window_bounds = array<i64: 1, 16, 512>}]} {
    %c0 = arith.constant 0 : index
    %c0_0 = arith.constant 0 : index
    %c0_1 = arith.constant 0 : index
    %0 = vector.load %arg1[%c0, %c0_0, %c0_1] : memref<1x16x512xf32, #tpu.memory_space<vmem>>, vector<1x16x512xf32>
    %1 = vector.shape_cast %0 : vector<1x16x512xf32> to vector<16x512xf32>
    %c0_2 = arith.constant 0 : index
    %c0_3 = arith.constant 0 : index
    %2 = vector.load %arg3[%c0_2, %c0_3] : memref<16x9xf32, #tpu.memory_space<vmem>>, vector<16x9xf32>
    %c0_4 = arith.constant 0 : index
    %c0_5 = arith.constant 0 : index
    %c0_6 = arith.constant 0 : index
    %3 = vector.load %arg2[%c0_4, %c0_5, %c0_6] : memref<6x16x16xf32, #tpu.memory_space<vmem>>, vector<1x16x16xf32>
    %4 = vector.shape_cast %3 : vector<1x16x16xf32> to vector<16x16xf32>
    %cst = arith.constant dense<0.000000e+00> : vector<16x512xf32>
    %5 = tpu.matmul %4, %1, %cst {dimension_numbers = #tpu.dot_dimension_numbers<[1], [0], [0], [1], [0, 0, 1, 1], [], []>} : vector<16x16xf32>, vector<16x512xf32>, vector<16x512xf32> -> vector<16x512xf32>
    %6 = vector.extract_strided_slice %2 {offsets = [0, 0], sizes = [16, 1], strides = [1, 1]} : vector<16x9xf32> to vector<16x1xf32>
    %7 = vector.broadcast %6 : vector<16x1xf32> to vector<16x512xf32>
    %8 = arith.addf %5, %7 : vector<16x512xf32>
    %9 = math.absf %8 : vector<16x512xf32>
    %cst_7 = arith.constant 0.000000e+00 : f32
    %10 = vector.broadcast %cst_7 : f32 to vector<16x512xf32>
    %11 = arith.subf %10, %9 : vector<16x512xf32>
    %12 = math.exp %11 : vector<16x512xf32>
    %cst_8 = arith.constant 1.000000e+00 : f32
    %13 = vector.broadcast %cst_8 : f32 to vector<16x512xf32>
    %14 = arith.addf %13, %12 : vector<16x512xf32>
    %15 = tpu.reciprocal %14 : vector<16x512xf32> -> vector<16x512xf32>
    %cst_9 = arith.constant 0.000000e+00 : f32
    %16 = vector.broadcast %cst_9 : f32 to vector<16x512xf32>
    %17 = arith.cmpf oge, %8, %16 : vector<16x512xf32>
    %cst_10 = arith.constant 1.000000e+00 : f32
    %18 = vector.broadcast %cst_10 : f32 to vector<16x512xf32>
    %19 = arith.subf %18, %15 : vector<16x512xf32>
    %20 = arith.select %17, %15, %19 : vector<16x512xi1>, vector<16x512xf32>
    %21 = arith.mulf %8, %20 : vector<16x512xf32>
    %22 = vector.extract_strided_slice %21 {offsets = [0, 0], sizes = [8, 512], strides = [1, 1]} : vector<16x512xf32> to vector<8x512xf32>
    %c0_11 = arith.constant 0 : index
    %c0_12 = arith.constant 0 : index
    %23 = vector.load %arg8[%c0_11, %c0_12] : memref<512x128xf32, #tpu.memory_space<vmem>>, vector<512x128xf32>
    %cst_13 = arith.constant dense<0.000000e+00> : vector<8x128xf32>
    %24 = tpu.matmul %22, %23, %cst_13 {dimension_numbers = #tpu.dot_dimension_numbers<[1], [0], [0], [1], [0, 0, 1, 1], [], []>} : vector<8x512xf32>, vector<512x128xf32>, vector<8x128xf32> -> vector<8x128xf32>
    %c2 = arith.constant 2 : index
    %c0_14 = arith.constant 0 : index
    %c0_15 = arith.constant 0 : index
    %25 = vector.load %arg2[%c2, %c0_14, %c0_15] : memref<6x16x16xf32, #tpu.memory_space<vmem>>, vector<1x16x16xf32>
    %26 = vector.shape_cast %25 : vector<1x16x16xf32> to vector<16x16xf32>
    %27 = vector.extract_strided_slice %26 {offsets = [0, 0], sizes = [16, 8], strides = [1, 1]} : vector<16x16xf32> to vector<16x8xf32>
    %cst_16 = arith.constant dense<0.000000e+00> : vector<16x128xf32>
    %28 = tpu.matmul %27, %24, %cst_16 {dimension_numbers = #tpu.dot_dimension_numbers<[1], [0], [0], [1], [0, 0, 1, 1], [], []>} : vector<16x8xf32>, vector<8x128xf32>, vector<16x128xf32> -> vector<16x128xf32>
    %29 = vector.extract_strided_slice %2 {offsets = [0, 3], sizes = [16, 1], strides = [1, 1]} : vector<16x9xf32> to vector<16x1xf32>
    %30 = vector.broadcast %29 : vector<16x1xf32> to vector<16x128xf32>
    %31 = arith.addf %28, %30 : vector<16x128xf32>
    %32 = vector.extract_strided_slice %2 {offsets = [0, 4], sizes = [16, 1], strides = [1, 1]} : vector<16x9xf32> to vector<16x1xf32>
    %c2_i32 = arith.constant 2 : i32
    %33 = tpu.dynamic_rotate %31 by %c2_i32 dim 1 : vector<16x128xf32>, i32 -> vector<16x128xf32>
    %c0_17 = arith.constant 0 : index
    %c0_18 = arith.constant 0 : index
    %c0_19 = arith.constant 0 : index
    %34 = vector.load %arg5[%c0_17, %c0_18, %c0_19] : memref<5x16x128xf32, #tpu.memory_space<vmem>>, vector<1x16x128xf32>
    %35 = vector.shape_cast %34 : vector<1x16x128xf32> to vector<16x128xf32>
    %36 = arith.mulf %33, %35 : vector<16x128xf32>
    %c1_i32 = arith.constant 1 : i32
    %37 = tpu.dynamic_rotate %31 by %c1_i32 dim 1 : vector<16x128xf32>, i32 -> vector<16x128xf32>
    %c1 = arith.constant 1 : index
    %c0_20 = arith.constant 0 : index
    %c0_21 = arith.constant 0 : index
    %38 = vector.load %arg5[%c1, %c0_20, %c0_21] : memref<5x16x128xf32, #tpu.memory_space<vmem>>, vector<1x16x128xf32>
    %39 = vector.shape_cast %38 : vector<1x16x128xf32> to vector<16x128xf32>
    %40 = arith.mulf %37, %39 : vector<16x128xf32>
    %41 = arith.addf %36, %40 : vector<16x128xf32>
    %c2_22 = arith.constant 2 : index
    %c0_23 = arith.constant 0 : index
    %c0_24 = arith.constant 0 : index
    %42 = vector.load %arg5[%c2_22, %c0_23, %c0_24] : memref<5x16x128xf32, #tpu.memory_space<vmem>>, vector<1x16x128xf32>
    %43 = vector.shape_cast %42 : vector<1x16x128xf32> to vector<16x128xf32>
    %44 = arith.mulf %31, %43 : vector<16x128xf32>
    %45 = arith.addf %41, %44 : vector<16x128xf32>
    %c127_i32 = arith.constant 127 : i32
    %46 = tpu.dynamic_rotate %31 by %c127_i32 dim 1 : vector<16x128xf32>, i32 -> vector<16x128xf32>
    %c3 = arith.constant 3 : index
    %c0_25 = arith.constant 0 : index
    %c0_26 = arith.constant 0 : index
    %47 = vector.load %arg5[%c3, %c0_25, %c0_26] : memref<5x16x128xf32, #tpu.memory_space<vmem>>, vector<1x16x128xf32>
    %48 = vector.shape_cast %47 : vector<1x16x128xf32> to vector<16x128xf32>
    %49 = arith.mulf %46, %48 : vector<16x128xf32>
    %50 = arith.addf %45, %49 : vector<16x128xf32>
    %c126_i32 = arith.constant 126 : i32
    %51 = tpu.dynamic_rotate %31 by %c126_i32 dim 1 : vector<16x128xf32>, i32 -> vector<16x128xf32>
    %c4 = arith.constant 4 : index
    %c0_27 = arith.constant 0 : index
    %c0_28 = arith.constant 0 : index
    %52 = vector.load %arg5[%c4, %c0_27, %c0_28] : memref<5x16x128xf32, #tpu.memory_space<vmem>>, vector<1x16x128xf32>
    %53 = vector.shape_cast %52 : vector<1x16x128xf32> to vector<16x128xf32>
    %54 = arith.mulf %51, %53 : vector<16x128xf32>
    %55 = arith.addf %50, %54 : vector<16x128xf32>
    %56 = vector.broadcast %32 : vector<16x1xf32> to vector<16x128xf32>
    %57 = arith.addf %55, %56 : vector<16x128xf32>
    %58 = vector.extract_strided_slice %2 {offsets = [0, 5], sizes = [16, 1], strides = [1, 1]} : vector<16x9xf32> to vector<16x1xf32>
    %c16_i32 = arith.constant 16 : i32
    %59 = tpu.dynamic_rotate %57 by %c16_i32 dim 1 : vector<16x128xf32>, i32 -> vector<16x128xf32>
    %c0_29 = arith.constant 0 : index
    %c0_30 = arith.constant 0 : index
    %c0_31 = arith.constant 0 : index
    %60 = vector.load %arg6[%c0_29, %c0_30, %c0_31] : memref<5x16x128xf32, #tpu.memory_space<vmem>>, vector<1x16x128xf32>
    %61 = vector.shape_cast %60 : vector<1x16x128xf32> to vector<16x128xf32>
    %62 = arith.mulf %59, %61 : vector<16x128xf32>
    %c8_i32 = arith.constant 8 : i32
    %63 = tpu.dynamic_rotate %57 by %c8_i32 dim 1 : vector<16x128xf32>, i32 -> vector<16x128xf32>
    %c1_32 = arith.constant 1 : index
    %c0_33 = arith.constant 0 : index
    %c0_34 = arith.constant 0 : index
    %64 = vector.load %arg6[%c1_32, %c0_33, %c0_34] : memref<5x16x128xf32, #tpu.memory_space<vmem>>, vector<1x16x128xf32>
    %65 = vector.shape_cast %64 : vector<1x16x128xf32> to vector<16x128xf32>
    %66 = arith.mulf %63, %65 : vector<16x128xf32>
    %67 = arith.addf %62, %66 : vector<16x128xf32>
    %c2_35 = arith.constant 2 : index
    %c0_36 = arith.constant 0 : index
    %c0_37 = arith.constant 0 : index
    %68 = vector.load %arg6[%c2_35, %c0_36, %c0_37] : memref<5x16x128xf32, #tpu.memory_space<vmem>>, vector<1x16x128xf32>
    %69 = vector.shape_cast %68 : vector<1x16x128xf32> to vector<16x128xf32>
    %70 = arith.mulf %57, %69 : vector<16x128xf32>
    %71 = arith.addf %67, %70 : vector<16x128xf32>
    %c120_i32 = arith.constant 120 : i32
    %72 = tpu.dynamic_rotate %57 by %c120_i32 dim 1 : vector<16x128xf32>, i32 -> vector<16x128xf32>
    %c3_38 = arith.constant 3 : index
    %c0_39 = arith.constant 0 : index
    %c0_40 = arith.constant 0 : index
    %73 = vector.load %arg6[%c3_38, %c0_39, %c0_40] : memref<5x16x128xf32, #tpu.memory_space<vmem>>, vector<1x16x128xf32>
    %74 = vector.shape_cast %73 : vector<1x16x128xf32> to vector<16x128xf32>
    %75 = arith.mulf %72, %74 : vector<16x128xf32>
    %76 = arith.addf %71, %75 : vector<16x128xf32>
    %c112_i32 = arith.constant 112 : i32
    %77 = tpu.dynamic_rotate %57 by %c112_i32 dim 1 : vector<16x128xf32>, i32 -> vector<16x128xf32>
    %c4_41 = arith.constant 4 : index
    %c0_42 = arith.constant 0 : index
    %c0_43 = arith.constant 0 : index
    %78 = vector.load %arg6[%c4_41, %c0_42, %c0_43] : memref<5x16x128xf32, #tpu.memory_space<vmem>>, vector<1x16x128xf32>
    %79 = vector.shape_cast %78 : vector<1x16x128xf32> to vector<16x128xf32>
    %80 = arith.mulf %77, %79 : vector<16x128xf32>
    %81 = arith.addf %76, %80 : vector<16x128xf32>
    %82 = vector.broadcast %58 : vector<16x1xf32> to vector<16x128xf32>
    %83 = arith.addf %81, %82 : vector<16x128xf32>
    %84 = math.absf %83 : vector<16x128xf32>
    %cst_44 = arith.constant 0.000000e+00 : f32
    %85 = vector.broadcast %cst_44 : f32 to vector<16x128xf32>
    %86 = arith.subf %85, %84 : vector<16x128xf32>
    %87 = math.exp %86 : vector<16x128xf32>
    %cst_45 = arith.constant 1.000000e+00 : f32
    %88 = vector.broadcast %cst_45 : f32 to vector<16x128xf32>
    %89 = arith.addf %88, %87 : vector<16x128xf32>
    %90 = tpu.reciprocal %89 {approx = true} : vector<16x128xf32> -> vector<16x128xf32>
    %cst_46 = arith.constant 0.000000e+00 : f32
    %91 = vector.broadcast %cst_46 : f32 to vector<16x128xf32>
    %92 = arith.cmpf oge, %83, %91 : vector<16x128xf32>
    %cst_47 = arith.constant 1.000000e+00 : f32
    %93 = vector.broadcast %cst_47 : f32 to vector<16x128xf32>
    %94 = arith.subf %93, %90 : vector<16x128xf32>
    %95 = arith.select %92, %90, %94 : vector<16x128xi1>, vector<16x128xf32>
    %c0_48 = arith.constant 0 : index
    %c0_49 = arith.constant 0 : index
    %96 = vector.load %arg9[%c0_48, %c0_49] : memref<128x512xf32, #tpu.memory_space<vmem>>, vector<128x512xf32>
    %cst_50 = arith.constant dense<0.000000e+00> : vector<16x512xf32>
    %97 = tpu.matmul %95, %96, %cst_50 {dimension_numbers = #tpu.dot_dimension_numbers<[1], [0], [0], [1], [0, 0, 1, 1], [], []>} : vector<16x128xf32>, vector<128x512xf32>, vector<16x512xf32> -> vector<16x512xf32>
    %c1_51 = arith.constant 1 : index
    %c0_52 = arith.constant 0 : index
    %c0_53 = arith.constant 0 : index
    %98 = vector.load %arg2[%c1_51, %c0_52, %c0_53] : memref<6x16x16xf32, #tpu.memory_space<vmem>>, vector<1x16x16xf32>
    %99 = vector.shape_cast %98 : vector<1x16x16xf32> to vector<16x16xf32>
    %100 = vector.extract_strided_slice %99 {offsets = [0, 0], sizes = [8, 8], strides = [1, 1]} : vector<16x16xf32> to vector<8x8xf32>
    %cst_54 = arith.constant dense<0.000000e+00> : vector<8x512xf32>
    %101 = tpu.matmul %100, %22, %cst_54 {dimension_numbers = #tpu.dot_dimension_numbers<[1], [0], [0], [1], [0, 0, 1, 1], [], []>} : vector<8x8xf32>, vector<8x512xf32>, vector<8x512xf32> -> vector<8x512xf32>
    %102 = vector.extract_strided_slice %2 {offsets = [0, 1], sizes = [8, 1], strides = [1, 1]} : vector<16x9xf32> to vector<8x1xf32>
    %103 = vector.broadcast %102 : vector<8x1xf32> to vector<8x512xf32>
    %104 = arith.addf %101, %103 : vector<8x512xf32>
    %cst_55 = arith.constant 0.000000e+00 : f32
    %105 = vector.broadcast %cst_55 : f32 to vector<8x512xf32>
    %106 = arith.maximumf %104, %105 : vector<8x512xf32>
    %107 = vector.extract_strided_slice %2 {offsets = [0, 2], sizes = [8, 1], strides = [1, 1]} : vector<16x9xf32> to vector<8x1xf32>
    %c17_i32 = arith.constant 17 : i32
    %108 = tpu.dynamic_rotate %106 by %c17_i32 dim 1 : vector<8x512xf32>, i32 -> vector<8x512xf32>
    %c0_56 = arith.constant 0 : index
    %c0_57 = arith.constant 0 : index
    %c0_58 = arith.constant 0 : index
    %109 = vector.load %arg4[%c0_56, %c0_57, %c0_58] : memref<9x8x512xf32, #tpu.memory_space<vmem>>, vector<1x8x512xf32>
    %110 = vector.shape_cast %109 : vector<1x8x512xf32> to vector<8x512xf32>
    %111 = arith.mulf %108, %110 : vector<8x512xf32>
    %c16_i32_59 = arith.constant 16 : i32
    %112 = tpu.dynamic_rotate %106 by %c16_i32_59 dim 1 : vector<8x512xf32>, i32 -> vector<8x512xf32>
    %c1_60 = arith.constant 1 : index
    %c0_61 = arith.constant 0 : index
    %c0_62 = arith.constant 0 : index
    %113 = vector.load %arg4[%c1_60, %c0_61, %c0_62] : memref<9x8x512xf32, #tpu.memory_space<vmem>>, vector<1x8x512xf32>
    %114 = vector.shape_cast %113 : vector<1x8x512xf32> to vector<8x512xf32>
    %115 = arith.mulf %112, %114 : vector<8x512xf32>
    %116 = arith.addf %111, %115 : vector<8x512xf32>
    %c15_i32 = arith.constant 15 : i32
    %117 = tpu.dynamic_rotate %106 by %c15_i32 dim 1 : vector<8x512xf32>, i32 -> vector<8x512xf32>
    %c2_63 = arith.constant 2 : index
    %c0_64 = arith.constant 0 : index
    %c0_65 = arith.constant 0 : index
    %118 = vector.load %arg4[%c2_63, %c0_64, %c0_65] : memref<9x8x512xf32, #tpu.memory_space<vmem>>, vector<1x8x512xf32>
    %119 = vector.shape_cast %118 : vector<1x8x512xf32> to vector<8x512xf32>
    %120 = arith.mulf %117, %119 : vector<8x512xf32>
    %121 = arith.addf %116, %120 : vector<8x512xf32>
    %c1_i32_66 = arith.constant 1 : i32
    %122 = tpu.dynamic_rotate %106 by %c1_i32_66 dim 1 : vector<8x512xf32>, i32 -> vector<8x512xf32>
    %c3_67 = arith.constant 3 : index
    %c0_68 = arith.constant 0 : index
    %c0_69 = arith.constant 0 : index
    %123 = vector.load %arg4[%c3_67, %c0_68, %c0_69] : memref<9x8x512xf32, #tpu.memory_space<vmem>>, vector<1x8x512xf32>
    %124 = vector.shape_cast %123 : vector<1x8x512xf32> to vector<8x512xf32>
    %125 = arith.mulf %122, %124 : vector<8x512xf32>
    %126 = arith.addf %121, %125 : vector<8x512xf32>
    %c4_70 = arith.constant 4 : index
    %c0_71 = arith.constant 0 : index
    %c0_72 = arith.constant 0 : index
    %127 = vector.load %arg4[%c4_70, %c0_71, %c0_72] : memref<9x8x512xf32, #tpu.memory_space<vmem>>, vector<1x8x512xf32>
    %128 = vector.shape_cast %127 : vector<1x8x512xf32> to vector<8x512xf32>
    %129 = arith.mulf %106, %128 : vector<8x512xf32>
    %130 = arith.addf %126, %129 : vector<8x512xf32>
    %c511_i32 = arith.constant 511 : i32
    %131 = tpu.dynamic_rotate %106 by %c511_i32 dim 1 : vector<8x512xf32>, i32 -> vector<8x512xf32>
    %c5 = arith.constant 5 : index
    %c0_73 = arith.constant 0 : index
    %c0_74 = arith.constant 0 : index
    %132 = vector.load %arg4[%c5, %c0_73, %c0_74] : memref<9x8x512xf32, #tpu.memory_space<vmem>>, vector<1x8x512xf32>
    %133 = vector.shape_cast %132 : vector<1x8x512xf32> to vector<8x512xf32>
    %134 = arith.mulf %131, %133 : vector<8x512xf32>
    %135 = arith.addf %130, %134 : vector<8x512xf32>
    %c497_i32 = arith.constant 497 : i32
    %136 = tpu.dynamic_rotate %106 by %c497_i32 dim 1 : vector<8x512xf32>, i32 -> vector<8x512xf32>
    %c6 = arith.constant 6 : index
    %c0_75 = arith.constant 0 : index
    %c0_76 = arith.constant 0 : index
    %137 = vector.load %arg4[%c6, %c0_75, %c0_76] : memref<9x8x512xf32, #tpu.memory_space<vmem>>, vector<1x8x512xf32>
    %138 = vector.shape_cast %137 : vector<1x8x512xf32> to vector<8x512xf32>
    %139 = arith.mulf %136, %138 : vector<8x512xf32>
    %140 = arith.addf %135, %139 : vector<8x512xf32>
    %c496_i32 = arith.constant 496 : i32
    %141 = tpu.dynamic_rotate %106 by %c496_i32 dim 1 : vector<8x512xf32>, i32 -> vector<8x512xf32>
    %c7 = arith.constant 7 : index
    %c0_77 = arith.constant 0 : index
    %c0_78 = arith.constant 0 : index
    %142 = vector.load %arg4[%c7, %c0_77, %c0_78] : memref<9x8x512xf32, #tpu.memory_space<vmem>>, vector<1x8x512xf32>
    %143 = vector.shape_cast %142 : vector<1x8x512xf32> to vector<8x512xf32>
    %144 = arith.mulf %141, %143 : vector<8x512xf32>
    %145 = arith.addf %140, %144 : vector<8x512xf32>
    %c495_i32 = arith.constant 495 : i32
    %146 = tpu.dynamic_rotate %106 by %c495_i32 dim 1 : vector<8x512xf32>, i32 -> vector<8x512xf32>
    %c8 = arith.constant 8 : index
    %c0_79 = arith.constant 0 : index
    %c0_80 = arith.constant 0 : index
    %147 = vector.load %arg4[%c8, %c0_79, %c0_80] : memref<9x8x512xf32, #tpu.memory_space<vmem>>, vector<1x8x512xf32>
    %148 = vector.shape_cast %147 : vector<1x8x512xf32> to vector<8x512xf32>
    %149 = arith.mulf %146, %148 : vector<8x512xf32>
    %150 = arith.addf %145, %149 : vector<8x512xf32>
    %151 = vector.broadcast %107 : vector<8x1xf32> to vector<8x512xf32>
    %152 = arith.addf %150, %151 : vector<8x512xf32>
    %cst_81 = arith.constant 0.000000e+00 : f32
    %153 = vector.broadcast %cst_81 : f32 to vector<8x512xf32>
    %154 = arith.maximumf %152, %153 : vector<8x512xf32>
    %155 = tpu.concatenate %106, %154 in 0 : vector<8x512xf32>, vector<8x512xf32> -> vector<16x512xf32>
    %156 = arith.mulf %155, %97 : vector<16x512xf32>
    %c3_82 = arith.constant 3 : index
    %c0_83 = arith.constant 0 : index
    %c0_84 = arith.constant 0 : index
    %157 = vector.load %arg2[%c3_82, %c0_83, %c0_84] : memref<6x16x16xf32, #tpu.memory_space<vmem>>, vector<1x16x16xf32>
    %158 = vector.shape_cast %157 : vector<1x16x16xf32> to vector<16x16xf32>
    %159 = vector.extract_strided_slice %158 {offsets = [0, 0], sizes = [4, 16], strides = [1, 1]} : vector<16x16xf32> to vector<4x16xf32>
    %cst_85 = arith.constant dense<0.000000e+00> : vector<4x512xf32>
    %160 = tpu.matmul %159, %156, %cst_85 {dimension_numbers = #tpu.dot_dimension_numbers<[1], [0], [0], [1], [0, 0, 1, 1], [], []>} : vector<4x16xf32>, vector<16x512xf32>, vector<4x512xf32> -> vector<4x512xf32>
    %161 = vector.extract_strided_slice %2 {offsets = [0, 6], sizes = [4, 1], strides = [1, 1]} : vector<16x9xf32> to vector<4x1xf32>
    %162 = vector.broadcast %161 : vector<4x1xf32> to vector<4x512xf32>
    %163 = arith.addf %160, %162 : vector<4x512xf32>
    %164 = vector.extract_strided_slice %2 {offsets = [0, 7], sizes = [4, 1], strides = [1, 1]} : vector<16x9xf32> to vector<4x1xf32>
    %c17_i32_86 = arith.constant 17 : i32
    %165 = tpu.dynamic_rotate %163 by %c17_i32_86 dim 1 : vector<4x512xf32>, i32 -> vector<4x512xf32>
    %c0_87 = arith.constant 0 : index
    %c0_88 = arith.constant 0 : index
    %c0_89 = arith.constant 0 : index
    %166 = vector.load %arg7[%c0_87, %c0_88, %c0_89] : memref<9x4x512xf32, #tpu.memory_space<vmem>>, vector<1x4x512xf32>
    %167 = vector.shape_cast %166 : vector<1x4x512xf32> to vector<4x512xf32>
    %168 = arith.mulf %165, %167 : vector<4x512xf32>
    %c16_i32_90 = arith.constant 16 : i32
    %169 = tpu.dynamic_rotate %163 by %c16_i32_90 dim 1 : vector<4x512xf32>, i32 -> vector<4x512xf32>
    %c1_91 = arith.constant 1 : index
    %c0_92 = arith.constant 0 : index
    %c0_93 = arith.constant 0 : index
    %170 = vector.load %arg7[%c1_91, %c0_92, %c0_93] : memref<9x4x512xf32, #tpu.memory_space<vmem>>, vector<1x4x512xf32>
    %171 = vector.shape_cast %170 : vector<1x4x512xf32> to vector<4x512xf32>
    %172 = arith.mulf %169, %171 : vector<4x512xf32>
    %173 = arith.addf %168, %172 : vector<4x512xf32>
    %c15_i32_94 = arith.constant 15 : i32
    %174 = tpu.dynamic_rotate %163 by %c15_i32_94 dim 1 : vector<4x512xf32>, i32 -> vector<4x512xf32>
    %c2_95 = arith.constant 2 : index
    %c0_96 = arith.constant 0 : index
    %c0_97 = arith.constant 0 : index
    %175 = vector.load %arg7[%c2_95, %c0_96, %c0_97] : memref<9x4x512xf32, #tpu.memory_space<vmem>>, vector<1x4x512xf32>
    %176 = vector.shape_cast %175 : vector<1x4x512xf32> to vector<4x512xf32>
    %177 = arith.mulf %174, %176 : vector<4x512xf32>
    %178 = arith.addf %173, %177 : vector<4x512xf32>
    %c1_i32_98 = arith.constant 1 : i32
    %179 = tpu.dynamic_rotate %163 by %c1_i32_98 dim 1 : vector<4x512xf32>, i32 -> vector<4x512xf32>
    %c3_99 = arith.constant 3 : index
    %c0_100 = arith.constant 0 : index
    %c0_101 = arith.constant 0 : index
    %180 = vector.load %arg7[%c3_99, %c0_100, %c0_101] : memref<9x4x512xf32, #tpu.memory_space<vmem>>, vector<1x4x512xf32>
    %181 = vector.shape_cast %180 : vector<1x4x512xf32> to vector<4x512xf32>
    %182 = arith.mulf %179, %181 : vector<4x512xf32>
    %183 = arith.addf %178, %182 : vector<4x512xf32>
    %c4_102 = arith.constant 4 : index
    %c0_103 = arith.constant 0 : index
    %c0_104 = arith.constant 0 : index
    %184 = vector.load %arg7[%c4_102, %c0_103, %c0_104] : memref<9x4x512xf32, #tpu.memory_space<vmem>>, vector<1x4x512xf32>
    %185 = vector.shape_cast %184 : vector<1x4x512xf32> to vector<4x512xf32>
    %186 = arith.mulf %163, %185 : vector<4x512xf32>
    %187 = arith.addf %183, %186 : vector<4x512xf32>
    %c511_i32_105 = arith.constant 511 : i32
    %188 = tpu.dynamic_rotate %163 by %c511_i32_105 dim 1 : vector<4x512xf32>, i32 -> vector<4x512xf32>
    %c5_106 = arith.constant 5 : index
    %c0_107 = arith.constant 0 : index
    %c0_108 = arith.constant 0 : index
    %189 = vector.load %arg7[%c5_106, %c0_107, %c0_108] : memref<9x4x512xf32, #tpu.memory_space<vmem>>, vector<1x4x512xf32>
    %190 = vector.shape_cast %189 : vector<1x4x512xf32> to vector<4x512xf32>
    %191 = arith.mulf %188, %190 : vector<4x512xf32>
    %192 = arith.addf %187, %191 : vector<4x512xf32>
    %c497_i32_109 = arith.constant 497 : i32
    %193 = tpu.dynamic_rotate %163 by %c497_i32_109 dim 1 : vector<4x512xf32>, i32 -> vector<4x512xf32>
    %c6_110 = arith.constant 6 : index
    %c0_111 = arith.constant 0 : index
    %c0_112 = arith.constant 0 : index
    %194 = vector.load %arg7[%c6_110, %c0_111, %c0_112] : memref<9x4x512xf32, #tpu.memory_space<vmem>>, vector<1x4x512xf32>
    %195 = vector.shape_cast %194 : vector<1x4x512xf32> to vector<4x512xf32>
    %196 = arith.mulf %193, %195 : vector<4x512xf32>
    %197 = arith.addf %192, %196 : vector<4x512xf32>
    %c496_i32_113 = arith.constant 496 : i32
    %198 = tpu.dynamic_rotate %163 by %c496_i32_113 dim 1 : vector<4x512xf32>, i32 -> vector<4x512xf32>
    %c7_114 = arith.constant 7 : index
    %c0_115 = arith.constant 0 : index
    %c0_116 = arith.constant 0 : index
    %199 = vector.load %arg7[%c7_114, %c0_115, %c0_116] : memref<9x4x512xf32, #tpu.memory_space<vmem>>, vector<1x4x512xf32>
    %200 = vector.shape_cast %199 : vector<1x4x512xf32> to vector<4x512xf32>
    %201 = arith.mulf %198, %200 : vector<4x512xf32>
    %202 = arith.addf %197, %201 : vector<4x512xf32>
    %c495_i32_117 = arith.constant 495 : i32
    %203 = tpu.dynamic_rotate %163 by %c495_i32_117 dim 1 : vector<4x512xf32>, i32 -> vector<4x512xf32>
    %c8_118 = arith.constant 8 : index
    %c0_119 = arith.constant 0 : index
    %c0_120 = arith.constant 0 : index
    %204 = vector.load %arg7[%c8_118, %c0_119, %c0_120] : memref<9x4x512xf32, #tpu.memory_space<vmem>>, vector<1x4x512xf32>
    %205 = vector.shape_cast %204 : vector<1x4x512xf32> to vector<4x512xf32>
    %206 = arith.mulf %203, %205 : vector<4x512xf32>
    %207 = arith.addf %202, %206 : vector<4x512xf32>
    %208 = vector.broadcast %164 : vector<4x1xf32> to vector<4x512xf32>
    %209 = arith.addf %207, %208 : vector<4x512xf32>
    %210 = tpu.concatenate %163, %209 in 0 : vector<4x512xf32>, vector<4x512xf32> -> vector<8x512xf32>
    %c4_121 = arith.constant 4 : index
    %c0_122 = arith.constant 0 : index
    %c0_123 = arith.constant 0 : index
    %211 = vector.load %arg2[%c4_121, %c0_122, %c0_123] : memref<6x16x16xf32, #tpu.memory_space<vmem>>, vector<1x16x16xf32>
    %212 = vector.shape_cast %211 : vector<1x16x16xf32> to vector<16x16xf32>
    %cst_124 = arith.constant dense<0.000000e+00> : vector<16x512xf32>
    %213 = tpu.matmul %212, %21, %cst_124 {dimension_numbers = #tpu.dot_dimension_numbers<[1], [0], [0], [1], [0, 0, 1, 1], [], []>} : vector<16x16xf32>, vector<16x512xf32>, vector<16x512xf32> -> vector<16x512xf32>
    %c5_125 = arith.constant 5 : index
    %c0_126 = arith.constant 0 : index
    %c0_127 = arith.constant 0 : index
    %214 = vector.load %arg2[%c5_125, %c0_126, %c0_127] : memref<6x16x16xf32, #tpu.memory_space<vmem>>, vector<1x16x16xf32>
    %215 = vector.shape_cast %214 : vector<1x16x16xf32> to vector<16x16xf32>
    %216 = vector.extract_strided_slice %215 {offsets = [0, 0], sizes = [16, 8], strides = [1, 1]} : vector<16x16xf32> to vector<16x8xf32>
    %cst_128 = arith.constant dense<0.000000e+00> : vector<16x512xf32>
    %217 = tpu.matmul %216, %210, %cst_128 {dimension_numbers = #tpu.dot_dimension_numbers<[1], [0], [0], [1], [0, 0, 1, 1], [], []>} : vector<16x8xf32>, vector<8x512xf32>, vector<16x512xf32> -> vector<16x512xf32>
    %218 = arith.addf %213, %217 : vector<16x512xf32>
    %219 = vector.extract_strided_slice %2 {offsets = [0, 8], sizes = [16, 1], strides = [1, 1]} : vector<16x9xf32> to vector<16x1xf32>
    %220 = vector.broadcast %219 : vector<16x1xf32> to vector<16x512xf32>
    %221 = arith.addf %218, %220 : vector<16x512xf32>
    %222 = math.absf %221 : vector<16x512xf32>
    %cst_129 = arith.constant 0.000000e+00 : f32
    %223 = vector.broadcast %cst_129 : f32 to vector<16x512xf32>
    %224 = arith.subf %223, %222 : vector<16x512xf32>
    %225 = math.exp %224 : vector<16x512xf32>
    %cst_130 = arith.constant 1.000000e+00 : f32
    %226 = vector.broadcast %cst_130 : f32 to vector<16x512xf32>
    %227 = arith.addf %226, %225 : vector<16x512xf32>
    %228 = tpu.reciprocal %227 : vector<16x512xf32> -> vector<16x512xf32>
    %cst_131 = arith.constant 0.000000e+00 : f32
    %229 = vector.broadcast %cst_131 : f32 to vector<16x512xf32>
    %230 = arith.cmpf oge, %221, %229 : vector<16x512xf32>
    %cst_132 = arith.constant 1.000000e+00 : f32
    %231 = vector.broadcast %cst_132 : f32 to vector<16x512xf32>
    %232 = arith.subf %231, %228 : vector<16x512xf32>
    %233 = arith.select %230, %228, %232 : vector<16x512xi1>, vector<16x512xf32>
    %234 = arith.mulf %221, %233 : vector<16x512xf32>
    %c0_133 = arith.constant 0 : index
    %c0_134 = arith.constant 0 : index
    %c0_135 = arith.constant 0 : index
    %235 = vector.load %arg10[%c0_133, %c0_134, %c0_135] : memref<1x16x512xf32, #tpu.memory_space<vmem>>, vector<1x16x512xf32>
    %236 = vector.shape_cast %235 : vector<1x16x512xf32> to vector<16x512xf32>
    %237 = vector.shape_cast %234 : vector<16x512xf32> to vector<1x16x512xf32>
    tpu.vector_store %arg10[%c0_133, %c0_134, %c0_135], %237 {strides = array<i32>} : memref<1x16x512xf32, #tpu.memory_space<vmem>>, vector<1x16x512xf32>,
    return
  }
  func.func @transform_0(%arg0: i32) -> (i32, i32, i32) {
    %c0_i32 = arith.constant 0 : i32
    %c0_i32_0 = arith.constant 0 : i32
    %c0_i32_1 = arith.constant 0 : i32
    return %arg0, %c0_i32, %c0_i32_0 : i32, i32, i32
  }
  func.func @transform_1(%arg0: i32) -> (i32, i32, i32) {
    %c0_i32 = arith.constant 0 : i32
    %c0_i32_0 = arith.constant 0 : i32
    %c0_i32_1 = arith.constant 0 : i32
    %c0_i32_2 = arith.constant 0 : i32
    return %c0_i32, %c0_i32_0, %c0_i32_1 : i32, i32, i32
  }
  func.func @transform_2(%arg0: i32) -> (i32, i32) {
    %c0_i32 = arith.constant 0 : i32
    %c0_i32_0 = arith.constant 0 : i32
    %c0_i32_1 = arith.constant 0 : i32
    return %c0_i32, %c0_i32_0 : i32, i32
  }
  func.func @transform_3(%arg0: i32) -> (i32, i32, i32) {
    %c0_i32 = arith.constant 0 : i32
    %c0_i32_0 = arith.constant 0 : i32
    %c0_i32_1 = arith.constant 0 : i32
    %c0_i32_2 = arith.constant 0 : i32
    return %c0_i32, %c0_i32_0, %c0_i32_1 : i32, i32, i32
  }
  func.func @transform_4(%arg0: i32) -> (i32, i32, i32) {
    %c0_i32 = arith.constant 0 : i32
    %c0_i32_0 = arith.constant 0 : i32
    %c0_i32_1 = arith.constant 0 : i32
    %c0_i32_2 = arith.constant 0 : i32
    return %c0_i32, %c0_i32_0, %c0_i32_1 : i32, i32, i32
  }
  func.func @transform_5(%arg0: i32) -> (i32, i32, i32) {
    %c0_i32 = arith.constant 0 : i32
    %c0_i32_0 = arith.constant 0 : i32
    %c0_i32_1 = arith.constant 0 : i32
    %c0_i32_2 = arith.constant 0 : i32
    return %c0_i32, %c0_i32_0, %c0_i32_1 : i32, i32, i32
  }
  func.func @transform_6(%arg0: i32) -> (i32, i32, i32) {
    %c0_i32 = arith.constant 0 : i32
    %c0_i32_0 = arith.constant 0 : i32
    %c0_i32_1 = arith.constant 0 : i32
    %c0_i32_2 = arith.constant 0 : i32
    return %c0_i32, %c0_i32_0, %c0_i32_1 : i32, i32, i32
  }
  func.func @transform_7(%arg0: i32) -> (i32, i32) {
    %c0_i32 = arith.constant 0 : i32
    %c0_i32_0 = arith.constant 0 : i32
    %c0_i32_1 = arith.constant 0 : i32
    return %c0_i32, %c0_i32_0 : i32, i32
  }
  func.func @transform_8(%arg0: i32) -> (i32, i32) {
    %c0_i32 = arith.constant 0 : i32
    %c0_i32_0 = arith.constant 0 : i32
    %c0_i32_1 = arith.constant 0 : i32
    return %c0_i32, %c0_i32_0 : i32, i32
  }
  func.func @transform_9(%arg0: i32) -> (i32, i32, i32) {
    %c0_i32 = arith.constant 0 : i32
    %c0_i32_0 = arith.constant 0 : i32
    %c0_i32_1 = arith.constant 0 : i32
    return %arg0, %c0_i32, %c0_i32_0 : i32, i32, i32
  }
}

</mosaic_0001>

<llo_original>
// kernel: tpu_custom_call.1
$region0: #{tpu_custom_call.1}
  #allocation0 [shape = 'u32[]', space=smem, size = 0x4, offset = 0x4, fixed_abs, tag = 'smem constant byte address 0x4 - core index']
  #allocation1 [shape = 'u32[144,128]{1,0:T(1,128)}', space=vmem, size = 0x12000, scoped, tag = 'internal scratch']
  %s0 = inlined_call_operand.hbm [shape: f32[2,16,512], index: 0, kind: input, shape index: {}]
  %s1 = inlined_call_operand.hbm [shape: f32[6,16,16], index: 1, kind: input, shape index: {}]
  %s2 = inlined_call_operand.hbm [shape: f32[16,9], index: 2, kind: input, shape index: {}]
  %s3 = inlined_call_operand.hbm [shape: f32[9,8,512], index: 3, kind: input, shape index: {}]
  %s4 = inlined_call_operand.hbm [shape: f32[5,16,128], index: 4, kind: input, shape index: {}]
  %s5 = inlined_call_operand.hbm [shape: f32[5,16,128], index: 5, kind: input, shape index: {}]
  %s6 = inlined_call_operand.hbm [shape: f32[9,4,512], index: 6, kind: input, shape index: {}]
  %s7 = inlined_call_operand.hbm [shape: f32[512,128], index: 7, kind: input, shape index: {}]
  %s8 = inlined_call_operand.hbm [shape: f32[128,512], index: 8, kind: input, shape index: {}]
  %s9 = inlined_call_operand.hbm [shape: f32[2,16,512], index: 9, kind: output, shape index: {}]
  %s10 = sld [smem:[#allocation0]]
  $region105: #{tpu_custom_call.1} parent=0
    _
  %s12 = ssub.s32 1, %s10
  %s13 = scalar_select 0, %s12, %s10
  $region1: #{tpu_custom_call.1} parent=0
    #allocation2 [shape = 'u8[65536]{0}', space=vmem, size = 0x10000, scoped, tag = 'input window, operand 0']
    #allocation3 [shape = 's32[2]{0}', space=sflag, size = 0x8, scoped, tag = 'scoped memory for tpu_custom_call.1']
    #allocation4 [shape = 's32[2]{0}', space=sflag, size = 0x8, scoped, tag = 'scoped memory for tpu_custom_call.1']
    #allocation5 [shape = 'u8[49152]{0}', space=vmem, size = 0xc000, scoped, tag = 'input window, operand 1, single buffered']
    #allocation6 [shape = 's32[1]{0}', space=sflag, size = 0x4, scoped, tag = 'scoped memory for tpu_custom_call.1']
    #allocation7 [shape = 'u8[8192]{0}', space=vmem, size = 0x2000, scoped, tag = 'input window, operand 2, single buffered']
    #allocation8 [shape = 'u8[147456]{0}', space=vmem, size = 0x24000, scoped, tag = 'input window, operand 3, single buffered']
    #allocation9 [shape = 's32[1]{0}', space=sflag, size = 0x4, scoped, tag = 'scoped memory for tpu_custom_call.1']
    #allocation10 [shape = 'u8[40960]{0}', space=vmem, size = 0xa000, scoped, tag = 'input window, operand 4, single buffered']
    #allocation11 [shape = 'u8[40960]{0}', space=vmem, size = 0xa000, scoped, tag = 'input window, operand 5, single buffered']
    #allocation12 [shape = 's32[1]{0}', space=sflag, size = 0x4, scoped, tag = 'scoped memory for tpu_custom_call.1']
    #allocation13 [shape = 'u8[73728]{0}', space=vmem, size = 0x12000, scoped, tag = 'input window, operand 6, single buffered']
    #allocation14 [shape = 'u8[262144]{0}', space=vmem, size = 0x40000, scoped, tag = 'input window, operand 7, single buffered']
    #allocation15 [shape = 's32[1]{0}', space=sflag, size = 0x4, scoped, tag = 'scoped memory for tpu_custom_call.1']
    #allocation16 [shape = 'u8[262144]{0}', space=vmem, size = 0x40000, scoped, tag = 'input window, operand 8, single buffered']
    #allocation17 [shape = 'u8[65536]{0}', space=vmem, size = 0x10000, scoped, tag = 'output window, operand 0']
    %14 = vsyncpa [#allocation3], 0
    %s15 = scalar_lea.sflag [#allocation3], 1
    %16 = vsyncpa %s15, 0
    %17 = vsyncpa [#allocation6], 0
    %18 = vsyncpa [#allocation9], 0
    %19 = vsyncpa [#allocation12], 0
    %20 = vsyncpa [#allocation15], 0
    %21 = vsyncpa [#allocation4], 0
    %s22 = scalar_lea.sflag [#allocation4], 1
    %23 = vsyncpa %s22, 0
    loop: start=0, step=1, limit=4
    $region2: #{tpu_custom_call.1} parent=1 // loop_pre_header
      _
    $region3: #{tpu_custom_call.1} parent=1 // loop_header
      %s25 = sphi 0, %s29
      %p26 = scmp.ge.s32.totalorder %s25, 4
      %s35 = sphi 0, %s37
      %s38 = sphi 0, %s35
      %s39 = sphi 0, %s38
      %s55 = sphi 0, %s39
      %s59 = sphi 0, %s59
      %s61 = sphi 0, %s59
      %s62 = sphi 0, %s61
      %s76 = sphi 0, %s62
      %s80 = sphi 0, %s80
      %s82 = sphi 0, %s80
      %s83 = sphi 0, %s82
      %s97 = sphi 0, %s83
      %s101 = sphi 0, %s101
      %s103 = sphi 0, %s101
      %s104 = sphi 0, %s103
      %s118 = sphi 0, %s104
      %s122 = sphi 0, %s122
      %s124 = sphi 0, %s122
      %s125 = sphi 0, %s124
      %s139 = sphi 0, %s125
      %s143 = sphi 0, %s143
      %s145 = sphi 0, %s143
      %s146 = sphi 0, %s145
      %s160 = sphi 0, %s146
      %s164 = sphi 0, %s164
      %s166 = sphi 0, %s164
      %s167 = sphi 0, %s166
      %s181 = sphi 0, %s167
      %s185 = sphi 0, %s185
      %s187 = sphi 0, %s185
      %s188 = sphi 0, %s187
      %s202 = sphi 0, %s188
      %s206 = sphi 0, %s206
      %s208 = sphi 0, %s206
      %s209 = sphi 0, %s208
      %s223 = sphi 0, %s209
      %s229 = sphi 0, %s231
      %s232 = sphi 0, %s229
      %s233 = sphi 0, %s232
      %s249 = sphi 0, %s233
    $region4: #{tpu_custom_call.1} parent=1 // loop_header_branch
      %28 = sbr.rel (%p26) target = $region8
    $region5: #{tpu_custom_call.1} parent=1 // loop_body
      %s30 = ssub.s32 %s25, 1
      %s31 = ssub.s32 %s25, 2
      %s32 = sadd.s32 %s25, 1
      %s33 = ssub.s32 %s25, %s32
      %p34 = scmp.eq.s32.totalorder %s33, 0
      %s36 = sadd.s32 %s35, 1
      %s37 = scalar_select %p34, %s35, %s36
      %p40 = pneg %p34
      %p41 = scmp.eq.s32.totalorder %s25, 1
      %p42 = por %p40, %p41
      %p43 = scmp.ne.s32.totalorder %s35, %s38
      %p44 = scmp.eq.s32.totalorder %s25, 0
      %p45 = por %p43, %p44
      %p46 = scmp.ne.s32.totalorder %s35, %s38
      %p47 = scmp.eq.s32.totalorder %s30, 1
      %p48 = por %p46, %p47
      %p49 = scmp.ne.s32.totalorder %s38, %s39
      %p50 = scmp.eq.s32.totalorder %s30, 0
      %p51 = por %p49, %p50
      %p52 = scmp.ne.s32.totalorder %s38, %s39
      %p53 = scmp.eq.s32.totalorder %s31, 1
      %p54 = por %p52, %p53
      %p56 = scmp.ne.s32.totalorder %s39, %s55
      %p57 = scmp.eq.s32.totalorder %s31, 0
      %p58 = por %p56, %p57
      %s60 = sadd.s32 %s59, 1
      %p63 = scmp.eq.s32.totalorder %s25, 1
      %p64 = scmp.ne.s32.totalorder %s59, %s61
      %p65 = scmp.eq.s32.totalorder %s25, 0
      %p66 = por %p64, %p65
      %p67 = scmp.ne.s32.totalorder %s59, %s61
      %p68 = scmp.eq.s32.totalorder %s30, 1
      %p69 = por %p67, %p68
      %p70 = scmp.ne.s32.totalorder %s61, %s62
      %p71 = scmp.eq.s32.totalorder %s30, 0
      %p72 = por %p70, %p71
      %p73 = scmp.ne.s32.totalorder %s61, %s62
      %p74 = scmp.eq.s32.totalorder %s31, 1
      %p75 = por %p73, %p74
      %p77 = scmp.ne.s32.totalorder %s62, %s76
      %p78 = scmp.eq.s32.totalorder %s31, 0
      %p79 = por %p77, %p78
      %s81 = sadd.s32 %s80, 1
      %p84 = scmp.eq.s32.totalorder %s25, 1
      %p85 = scmp.ne.s32.totalorder %s80, %s82
      %p86 = scmp.eq.s32.totalorder %s25, 0
      %p87 = por %p85, %p86
      %p88 = scmp.ne.s32.totalorder %s80, %s82
      %p89 = scmp.eq.s32.totalorder %s30, 1
      %p90 = por %p88, %p89
      %p91 = scmp.ne.s32.totalorder %s82, %s83
      %p92 = scmp.eq.s32.totalorder %s30, 0
      %p93 = por %p91, %p92
      %p94 = scmp.ne.s32.totalorder %s82, %s83
      %p95 = scmp.eq.s32.totalorder %s31, 1
      %p96 = por %p94, %p95
      %p98 = scmp.ne.s32.totalorder %s83, %s97
      %p99 = scmp.eq.s32.totalorder %s31, 0
      %p100 = por %p98, %p99
      %s102 = sadd.s32 %s101, 1
      %p105 = scmp.eq.s32.totalorder %s25, 1
      %p106 = scmp.ne.s32.totalorder %s101, %s103
      %p107 = scmp.eq.s32.totalorder %s25, 0
      %p108 = por %p106, %p107
      %p109 = scmp.ne.s32.totalorder %s101, %s103
      %p110 = scmp.eq.s32.totalorder %s30, 1
      %p111 = por %p109, %p110
      %p112 = scmp.ne.s32.totalorder %s103, %s104
      %p113 = scmp.eq.s32.totalorder %s30, 0
      %p114 = por %p112, %p113
      %p115 = scmp.ne.s32.totalorder %s103, %s104
      %p116 = scmp.eq.s32.totalorder %s31, 1
      %p117 = por %p115, %p116
      %p119 = scmp.ne.s32.totalorder %s104, %s118
      %p120 = scmp.eq.s32.totalorder %s31, 0
      %p121 = por %p119, %p120
      %s123 = sadd.s32 %s122, 1
      %p126 = scmp.eq.s32.totalorder %s25, 1
      %p127 = scmp.ne.s32.totalorder %s122, %s124
      %p128 = scmp.eq.s32.totalorder %s25, 0
      %p129 = por %p127, %p128
      %p130 = scmp.ne.s32.totalorder %s122, %s124
      %p131 = scmp.eq.s32.totalorder %s30, 1
      %p132 = por %p130, %p131
      %p133 = scmp.ne.s32.totalorder %s124, %s125
      %p134 = scmp.eq.s32.totalorder %s30, 0
      %p135 = por %p133, %p134
      %p136 = scmp.ne.s32.totalorder %s124, %s125
      %p137 = scmp.eq.s32.totalorder %s31, 1
      %p138 = por %p136, %p137
      %p140 = scmp.ne.s32.totalorder %s125, %s139
      %p141 = scmp.eq.s32.totalorder %s31, 0
      %p142 = por %p140, %p141
      %s144 = sadd.s32 %s143, 1
      %p147 = scmp.eq.s32.totalorder %s25, 1
      %p148 = scmp.ne.s32.totalorder %s143, %s145
      %p149 = scmp.eq.s32.totalorder %s25, 0
      %p150 = por %p148, %p149
      %p151 = scmp.ne.s32.totalorder %s143, %s145
      %p152 = scmp.eq.s32.totalorder %s30, 1
      %p153 = por %p151, %p152
      %p154 = scmp.ne.s32.totalorder %s145, %s146
      %p155 = scmp.eq.s32.totalorder %s30, 0
      %p156 = por %p154, %p155
      %p157 = scmp.ne.s32.totalorder %s145, %s146
      %p158 = scmp.eq.s32.totalorder %s31, 1
      %p159 = por %p157, %p158
      %p161 = scmp.ne.s32.totalorder %s146, %s160
      %p162 = scmp.eq.s32.totalorder %s31, 0
      %p163 = por %p161, %p162
      %s165 = sadd.s32 %s164, 1
      %p168 = scmp.eq.s32.totalorder %s25, 1
      %p169 = scmp.ne.s32.totalorder %s164, %s166
      %p170 = scmp.eq.s32.totalorder %s25, 0
      %p171 = por %p169, %p170
      %p172 = scmp.ne.s32.totalorder %s164, %s166
      %p173 = scmp.eq.s32.totalorder %s30, 1
      %p174 = por %p172, %p173
      %p175 = scmp.ne.s32.totalorder %s166, %s167
      %p176 = scmp.eq.s32.totalorder %s30, 0
      %p177 = por %p175, %p176
      %p178 = scmp.ne.s32.totalorder %s166, %s167
      %p179 = scmp.eq.s32.totalorder %s31, 1
      %p180 = por %p178, %p179
      %p182 = scmp.ne.s32.totalorder %s167, %s181
      %p183 = scmp.eq.s32.totalorder %s31, 0
      %p184 = por %p182, %p183
      %s186 = sadd.s32 %s185, 1
      %p189 = scmp.eq.s32.totalorder %s25, 1
      %p190 = scmp.ne.s32.totalorder %s185, %s187
      %p191 = scmp.eq.s32.totalorder %s25, 0
      %p192 = por %p190, %p191
      %p193 = scmp.ne.s32.totalorder %s185, %s187
      %p194 = scmp.eq.s32.totalorder %s30, 1
      %p195 = por %p193, %p194
      %p196 = scmp.ne.s32.totalorder %s187, %s188
      %p197 = scmp.eq.s32.totalorder %s30, 0
      %p198 = por %p196, %p197
      %p199 = scmp.ne.s32.totalorder %s187, %s188
      %p200 = scmp.eq.s32.totalorder %s31, 1
      %p201 = por %p199, %p200
      %p203 = scmp.ne.s32.totalorder %s188, %s202
      %p204 = scmp.eq.s32.totalorder %s31, 0
      %p205 = por %p203, %p204
      %s207 = sadd.s32 %s206, 1
      %p210 = scmp.eq.s32.totalorder %s25, 1
      %p211 = scmp.ne.s32.totalorder %s206, %s208
      %p212 = scmp.eq.s32.totalorder %s25, 0
      %p213 = por %p211, %p212
      %p214 = scmp.ne.s32.totalorder %s206, %s208
      %p215 = scmp.eq.s32.totalorder %s30, 1
      %p216 = por %p214, %p215
      %p217 = scmp.ne.s32.totalorder %s208, %s209
      %p218 = scmp.eq.s32.totalorder %s30, 0
      %p219 = por %p217, %p218
      %p220 = scmp.ne.s32.totalorder %s208, %s209
      %p221 = scmp.eq.s32.totalorder %s31, 1
      %p222 = por %p220, %p221
      %p224 = scmp.ne.s32.totalorder %s209, %s223
      %p225 = scmp.eq.s32.totalorder %s31, 0
      %p226 = por %p224, %p225
      %s227 = ssub.s32 %s25, %s32
      %p228 = scmp.eq.s32.totalorder %s227, 0
      %s230 = sadd.s32 %s229, 1
      %s231 = scalar_select %p228, %s229, %s230
      %p234 = pneg %p228
      %p235 = scmp.eq.s32.totalorder %s25, 1
      %p236 = por %p234, %p235
      %p237 = scmp.ne.s32.totalorder %s229, %s232
      %p238 = scmp.eq.s32.totalorder %s25, 0
      %p239 = por %p237, %p238
      %p240 = scmp.ne.s32.totalorder %s229, %s232
      %p241 = scmp.eq.s32.totalorder %s30, 1
      %p242 = por %p240, %p241
      %p243 = scmp.ne.s32.totalorder %s232, %s233
      %p244 = scmp.eq.s32.totalorder %s30, 0
      %p245 = por %p243, %p244
      %p246 = scmp.ne.s32.totalorder %s232, %s233
      %p247 = scmp.eq.s32.totalorder %s31, 1
      %p248 = por %p246, %p247
      %p250 = scmp.ne.s32.totalorder %s233, %s249
      %p251 = scmp.eq.s32.totalorder %s31, 0
      %p252 = por %p250, %p251
      %p253 = scmp.le.s32.totalorder 1, %s25
      %p254 = scmp.lt.s32.totalorder %s25, 3
      %p255 = pnand %p253, %p254
      %p256 = pneg %p255
      // Predicated region
      $region9: #{tpu_custom_call.1} parent=5 // pred_check
        _
      $region10: #{tpu_custom_call.1} parent=5 // pred_check_branch
        %258 = sbr.rel (%p255) target = $region12
      $region11: #{tpu_custom_call.1} parent=5 // pred_region
        %s259 = ssub.s32 %s25, 1
        // Predicated region
        $region13: #{tpu_custom_call.1} parent=11 // pred_check
          %p260 = pneg %p72
        $region14: #{tpu_custom_call.1} parent=11 // pred_check_branch
          %262 = sbr.rel (%p260) target = $region16
        $region15: #{tpu_custom_call.1} parent=11 // pred_region
          %s264 = ssub.s32 1536, 1536
          %265 = vsyncadd [#allocation6], %s264
          %s266 = sshll.u32 [#allocation5], 4
          %s267 = int_to_ptr.vmem [resolvable:$true] %s266
          %272 = dma.hbm_to_vmem [thread:$0]  %s1, 1536, %s267, [#allocation6], 128, 128, 8
        $region16: #{tpu_custom_call.1} parent=11 // pred_fallthru
          _
        // Predicated region
        $region17: #{tpu_custom_call.1} parent=11 // pred_check
          %p273 = pneg %p93
        $region18: #{tpu_custom_call.1} parent=11 // pred_check_branch
          %275 = sbr.rel (%p273) target = $region20
        $region19: #{tpu_custom_call.1} parent=11 // pred_region
          %s277 = ssub.s32 256, 256
          %278 = vsyncadd [#allocation6], %s277
          %s279 = sshll.u32 [#allocation7], 4
          %s280 = int_to_ptr.vmem [resolvable:$true] %s279
          %285 = dma.hbm_to_vmem [thread:$0]  %s2, 256, %s280, [#allocation6], 128, 128, 8
        $region20: #{tpu_custom_call.1} parent=11 // pred_fallthru
          _
        // Predicated region
        $region21: #{tpu_custom_call.1} parent=11 // pred_check
          %p286 = pneg %p114
        $region22: #{tpu_custom_call.1} parent=11 // pred_check_branch
          %288 = sbr.rel (%p286) target = $region24
        $region23: #{tpu_custom_call.1} parent=11 // pred_region
          %s290 = ssub.s32 4608, 4608
          %291 = vsyncadd [#allocation9], %s290
          %s292 = sshll.u32 [#allocation8], 4
          %s293 = int_to_ptr.vmem [resolvable:$true] %s292
          %298 = dma.hbm_to_vmem [thread:$0]  %s3, 4608, %s293, [#allocation9], 512, 512, 32
        $region24: #{tpu_custom_call.1} parent=11 // pred_fallthru
          _
        // Predicated region
        $region25: #{tpu_custom_call.1} parent=11 // pred_check
          %p299 = pneg %p135
        $region26: #{tpu_custom_call.1} parent=11 // pred_check_branch
          %301 = sbr.rel (%p299) target = $region28
        $region27: #{tpu_custom_call.1} parent=11 // pred_region
          %s303 = ssub.s32 1280, 1280
          %304 = vsyncadd [#allocation9], %s303
          %s305 = sshll.u32 [#allocation10], 4
          %s306 = int_to_ptr.vmem [resolvable:$true] %s305
          %311 = dma.hbm_to_vmem [thread:$0]  %s4, 1280, %s306, [#allocation9], 128, 128, 8
        $region28: #{tpu_custom_call.1} parent=11 // pred_fallthru
          _
        // Predicated region
        $region29: #{tpu_custom_call.1} parent=11 // pred_check
          %p312 = pneg %p156
        $region30: #{tpu_custom_call.1} parent=11 // pred_check_branch
          %314 = sbr.rel (%p312) target = $region32
        $region31: #{tpu_custom_call.1} parent=11 // pred_region
          %s316 = ssub.s32 1280, 1280
          %317 = vsyncadd [#allocation12], %s316
          %s318 = sshll.u32 [#allocation11], 4
          %s319 = int_to_ptr.vmem [resolvable:$true] %s318
          %324 = dma.hbm_to_vmem [thread:$0]  %s5, 1280, %s319, [#allocation12], 128, 128, 8
        $region32: #{tpu_custom_call.1} parent=11 // pred_fallthru
          _
        // Predicated region
        $region33: #{tpu_custom_call.1} parent=11 // pred_check
          %p325 = pneg %p177
        $region34: #{tpu_custom_call.1} parent=11 // pred_check_branch
          %327 = sbr.rel (%p325) target = $region36
        $region35: #{tpu_custom_call.1} parent=11 // pred_region
          %s329 = ssub.s32 2304, 2304
          %330 = vsyncadd [#allocation12], %s329
          %s331 = sshll.u32 [#allocation13], 4
          %s332 = int_to_ptr.vmem [resolvable:$true] %s331
          %337 = dma.hbm_to_vmem [thread:$0]  %s6, 2304, %s332, [#allocation12], 256, 256, 16
        $region36: #{tpu_custom_call.1} parent=11 // pred_fallthru
          _
        // Predicated region
        $region37: #{tpu_custom_call.1} parent=11 // pred_check
          %p338 = pneg %p198
        $region38: #{tpu_custom_call.1} parent=11 // pred_check_branch
          %340 = sbr.rel (%p338) target = $region40
        $region39: #{tpu_custom_call.1} parent=11 // pred_region
          %s342 = ssub.s32 8192, 8192
          %343 = vsyncadd [#allocation15], %s342
          %s344 = sshll.u32 [#allocation14], 4
          %s345 = int_to_ptr.vmem [resolvable:$true] %s344
          %350 = dma.hbm_to_vmem [thread:$0]  %s7, 8192, %s345, [#allocation15], 128, 128, 8
        $region40: #{tpu_custom_call.1} parent=11 // pred_fallthru
          _
        // Predicated region
        $region41: #{tpu_custom_call.1} parent=11 // pred_check
          %p351 = pneg %p219
        $region42: #{tpu_custom_call.1} parent=11 // pred_check_branch
          %353 = sbr.rel (%p351) target = $region44
        $region43: #{tpu_custom_call.1} parent=11 // pred_region
          %s355 = ssub.s32 8192, 8192
          %356 = vsyncadd [#allocation15], %s355
          %s357 = sshll.u32 [#allocation16], 4
          %s358 = int_to_ptr.vmem [resolvable:$true] %s357
          %363 = dma.hbm_to_vmem [thread:$0]  %s8, 8192, %s358, [#allocation15], 512, 512, 32
        $region44: #{tpu_custom_call.1} parent=11 // pred_fallthru
          _
      $region12: #{tpu_custom_call.1} parent=5 // pred_fallthru
        _
      %p364 = scmp.lt.s32.totalorder %s25, 2
      // Predicated region
      $region45: #{tpu_custom_call.1} parent=5 // pred_check
        %p365 = pneg %p364
      $region46: #{tpu_custom_call.1} parent=5 // pred_check_branch
        %367 = sbr.rel (%p365) target = $region48
      $region47: #{tpu_custom_call.1} parent=5 // pred_region
        // Predicated region
        $region49: #{tpu_custom_call.1} parent=47 // pred_check
          %p368 = pneg %p45
        $region50: #{tpu_custom_call.1} parent=47 // pred_check_branch
          %370 = sbr.rel (%p368) target = $region52
        $region51: #{tpu_custom_call.1} parent=47 // pred_region
          %s371 = sand.u32 %s35, 1
          %s372 = scalar_lea.sflag [#allocation3], %s371
          %s373 = sand.u32 %s35, 1
          %s374 = smul.addr %s373, 64
          %s375 = scalar_lea.vmem [#allocation2], %s374
          %s377 = ssub.s32 1024, 1024
          %378 = vsyncadd %s372, %s377
          %s379 = smul.addr %s25, 8
          %s380 = smul.addr %s379, 128
          %s381 = scalar_lea.hbm %s0, %s380
          %s382 = sshll.u32 %s375, 4
          %s383 = int_to_ptr.vmem [resolvable:$true] %s382
          %388 = dma.hbm_to_vmem [thread:$0]  %s381, 1024, %s383, %s372, 512, 512, 32
        $region52: #{tpu_custom_call.1} parent=47 // pred_fallthru
          _
      $region48: #{tpu_custom_call.1} parent=5 // pred_fallthru
        _
      %p389 = scmp.le.s32.totalorder 1, %s25
      %p390 = scmp.lt.s32.totalorder %s25, 3
      %p391 = pnand %p389, %p390
      %p392 = pneg %p391
      // Predicated region
      $region53: #{tpu_custom_call.1} parent=5 // pred_check
        _
      $region54: #{tpu_custom_call.1} parent=5 // pred_check_branch
        %394 = sbr.rel (%p391) target = $region56
      $region55: #{tpu_custom_call.1} parent=5 // pred_region
        %s395 = ssub.s32 %s25, 1
        %s396 = sand.u32 %s38, 1
        %s397 = scalar_lea.sflag [#allocation3], %s396
        %s398 = sand.u32 %s38, 1
        %s399 = smul.addr %s398, 64
        %s400 = scalar_lea.vmem [#allocation2], %s399
        // Predicated region
        $region57: #{tpu_custom_call.1} parent=55 // pred_check
          %p401 = pneg %p51
        $region58: #{tpu_custom_call.1} parent=55 // pred_check_branch
          %403 = sbr.rel (%p401) target = $region60
        $region59: #{tpu_custom_call.1} parent=55 // pred_region
          %404 = dma.done %s397, 1024
        $region60: #{tpu_custom_call.1} parent=55 // pred_fallthru
          _
        // Predicated region
        $region61: #{tpu_custom_call.1} parent=55 // pred_check
          %p405 = pneg %p72
        $region62: #{tpu_custom_call.1} parent=55 // pred_check_branch
          %407 = sbr.rel (%p405) target = $region64
        $region63: #{tpu_custom_call.1} parent=55 // pred_region
          %408 = dma.done [#allocation6], 1536
        $region64: #{tpu_custom_call.1} parent=55 // pred_fallthru
          _
        // Predicated region
        $region65: #{tpu_custom_call.1} parent=55 // pred_check
          %p409 = pneg %p93
        $region66: #{tpu_custom_call.1} parent=55 // pred_check_branch
          %411 = sbr.rel (%p409) target = $region68
        $region67: #{tpu_custom_call.1} parent=55 // pred_region
          %412 = dma.done [#allocation6], 256
        $region68: #{tpu_custom_call.1} parent=55 // pred_fallthru
          _
        // Predicated region
        $region69: #{tpu_custom_call.1} parent=55 // pred_check
          %p413 = pneg %p114
        $region70: #{tpu_custom_call.1} parent=55 // pred_check_branch
          %415 = sbr.rel (%p413) target = $region72
        $region71: #{tpu_custom_call.1} parent=55 // pred_region
          %416 = dma.done [#allocation9], 4608
        $region72: #{tpu_custom_call.1} parent=55 // pred_fallthru
          _
        // Predicated region
        $region73: #{tpu_custom_call.1} parent=55 // pred_check
          %p417 = pneg %p135
        $region74: #{tpu_custom_call.1} parent=55 // pred_check_branch
          %419 = sbr.rel (%p417) target = $region76
        $region75: #{tpu_custom_call.1} parent=55 // pred_region
          %420 = dma.done [#allocation9], 1280
        $region76: #{tpu_custom_call.1} parent=55 // pred_fallthru
          _
        // Predicated region
        $region77: #{tpu_custom_call.1} parent=55 // pred_check
          %p421 = pneg %p156
        $region78: #{tpu_custom_call.1} parent=55 // pred_check_branch
          %423 = sbr.rel (%p421) target = $region80
        $region79: #{tpu_custom_call.1} parent=55 // pred_region
          %424 = dma.done [#allocation12], 1280
        $region80: #{tpu_custom_call.1} parent=55 // pred_fallthru
          _
        // Predicated region
        $region81: #{tpu_custom_call.1} parent=55 // pred_check
          %p425 = pneg %p177
        $region82: #{tpu_custom_call.1} parent=55 // pred_check_branch
          %427 = sbr.rel (%p425) target = $region84
        $region83: #{tpu_custom_call.1} parent=55 // pred_region
          %428 = dma.done [#allocation12], 2304
        $region84: #{tpu_custom_call.1} parent=55 // pred_fallthru
          _
        // Predicated region
        $region85: #{tpu_custom_call.1} parent=55 // pred_check
          %p429 = pneg %p198
        $region86: #{tpu_custom_call.1} parent=55 // pred_check_branch
          %431 = sbr.rel (%p429) target = $region88
        $region87: #{tpu_custom_call.1} parent=55 // pred_region
          %432 = dma.done [#allocation15], 8192
        $region88: #{tpu_custom_call.1} parent=55 // pred_fallthru
          _
        // Predicated region
        $region89: #{tpu_custom_call.1} parent=55 // pred_check
          %p433 = pneg %p219
        $region90: #{tpu_custom_call.1} parent=55 // pred_check_branch
          %435 = sbr.rel (%p433) target = $region92
        $region91: #{tpu_custom_call.1} parent=55 // pred_region
          %436 = dma.done [#allocation15], 8192
        $region92: #{tpu_custom_call.1} parent=55 // pred_fallthru
          _
        %s437 = sand.u32 %s38, 1
        %s438 = scalar_lea.sflag [#allocation3], %s437
        %s439 = sand.u32 %s38, 1
        %s440 = smul.addr %s439, 64
        %s441 = scalar_lea.vmem [#allocation2], %s440
        %p442 = pneg %p51
        %p443 = pneg %p48
        %p444 = pneg %p72
        %p445 = pneg %p69
        %p446 = pneg %p93
        %p447 = pneg %p90
        %p448 = pneg %p114
        %p449 = pneg %p111
        %p450 = pneg %p135
        %p451 = pneg %p132
        %p452 = pneg %p156
        %p453 = pneg %p153
        %p454 = pneg %p177
        %p455 = pneg %p174
        %p456 = pneg %p198
        %p457 = pneg %p195
        %p458 = pneg %p219
        %p459 = pneg %p216
        %p460 = pneg %p245
        %p461 = pneg %p242
        %s462 = sand.u32 %s232, 1
        %s463 = scalar_lea.sflag [#allocation4], %s462
        %s464 = sand.u32 %s232, 1
        %s465 = smul.addr %s464, 64
        %s466 = scalar_lea.vmem [#allocation17], %s465
        %v467 = vld [vmem:[%s400] sm:$0xff]
        %v468 = vld [vmem:[%s400 + $0x8] sm:$0xff]
        %v469 = vld [vmem:[%s400 + $0x10] sm:$0xff]
        %v470 = vld [vmem:[%s400 + $0x18] sm:$0xff]
        %v471 = vld [vmem:[%s400 + $0x20] sm:$0xff]
        %v472 = vld [vmem:[%s400 + $0x28] sm:$0xff]
        %v473 = vld [vmem:[%s400 + $0x30] sm:$0xff]
        %v474 = vld [vmem:[%s400 + $0x38] sm:$0xff]
        %v475 = vld [vmem:[#allocation7] sm:$0xff]
        %v476 = vld [vmem:[#allocation7 + $0x8] sm:$0xff]
        %v477 = vld [vmem:[#allocation5] sm:$0xff]
        %v478 = vld [vmem:[#allocation5 + $0x8] sm:$0xff]
        %480 = vset.pattern.permute.xlu0 0
        %481 = vperm.xlu0 %480, %v475
        %v482 = vpop.permute.xlu0 %481
        %485 = vset.pattern.permute.xlu0 0
        %486 = vperm.xlu0 %485, %v476
        %v487 = vpop.permute.xlu0 %486
        %vm489 = vcmask 130048
        %v491 = vsel %vm489, %v477, 0
        %v494 = vsel %vm489, %v478, 0
        %496 = vmatprep.subr.mxu0 %v468
        %497 = vmatpush1.msra.mxu0 %v467
        %498 = vmatprep.subr.mxu0 %v472
        %499 = vmatpush1.msra.mxu0 %v471
        %500 = vmatprep.subr.mxu0 0.0
        %501 = vmatpush1.msra.mxu0 0.0
        %502 = vmatprep.subr.mxu0 0.0
        %503 = vmatpush1.msra.mxu0 0.0
        %504 = vmatprep.subr.mxu0 0.0
        %505 = vmatpush1.msra.mxu0 0.0
        %506 = vmatprep.subr.mxu0 0.0
        %507 = vmatpush1.msra.mxu0 0.0
        %508 = vmatprep.subr.mxu0 0.0
        %509 = vmatpush1.msra.mxu0 0.0
        %510 = vmatprep.subr.mxu0 0.0
        %511 = vmatpush1.msra.mxu0 0.0
        %512 = vmatprep.subr.mxu0 0.0
        %513 = vmatpush1.msra.mxu0 0.0
        %514 = vmatprep.subr.mxu0 0.0
        %515 = vmatpush1.msra.mxu0 0.0
        %516 = vmatprep.subr.mxu0 0.0
        %517 = vmatpush1.msra.mxu0 0.0
        %518 = vmatprep.subr.mxu0 0.0
        %519 = vmatpush1.msra.mxu0 0.0
        %520 = vmatprep.subr.mxu0 0.0
        %521 = vmatpush1.msra.mxu0 0.0
        %522 = vmatprep.subr.mxu0 0.0
        %523 = vmatpush1.msra.mxu0 0.0
        %524 = vmatprep.subr.mxu0 0.0
        %525 = vmatpush1.msra.mxu0 0.0
        %526 = vmatprep.subr.mxu0 0.0
        %527 = vmatpush1.msra.mxu0 0.0
        %528 = vmatprep.subr.mxu0 0.0
        %529 = vmatpush1.msra.mxu0 0.0
        %530 = vmatprep.subr.mxu0 0.0
        %531 = vmatpush1.msra.mxu0 0.0
        %532 = vmatprep.subr.mxu0 0.0
        %533 = vmatpush1.msra.mxu0 0.0
        %534 = vmatprep.subr.mxu0 0.0
        %535 = vmatpush1.msra.mxu0 0.0
        %536 = vmatprep.subr.mxu0 0.0
        %537 = vmatpush1.msra.mxu0 0.0
        %538 = vmatprep.subr.mxu0 0.0
        %539 = vmatpush1.msra.mxu0 0.0
        %540 = vmatprep.subr.mxu0 0.0
        %541 = vmatpush1.msra.mxu0 0.0
        %542 = vmatprep.subr.mxu0 0.0
        %543 = vmatpush1.msra.mxu0 0.0
        %544 = vmatprep.subr.mxu0 0.0
        %545 = vmatpush1.msra.mxu0 0.0
        %546 = vmatprep.subr.mxu0 0.0
        %547 = vmatpush1.msra.mxu0 0.0
        %548 = vmatprep.subr.mxu0 0.0
        %549 = vmatpush1.msra.mxu0 0.0
        %550 = vmatprep.subr.mxu0 0.0
        %551 = vmatpush1.msra.mxu0 0.0
        %552 = vmatprep.subr.mxu0 0.0
        %553 = vmatpush1.msra.mxu0 0.0
        %554 = vmatprep.subr.mxu0 0.0
        %555 = vmatpush1.msra.mxu0 0.0
        %556 = vmatprep.subr.mxu0 0.0
        %557 = vmatpush1.msra.mxu0 0.0
        %558 = vmatprep.subr.mxu0 0.0
        %559 = vmatpush1.msra.mxu0 0.0
        %560 = vmatprep.mubr.f32.mxu0 0.0
        %561 = vmatmul.mubr.f32.gmra.mrb[0].mxu0 %v491
        %v562 = vpop.f32.mrb[0].mxu0
        %v563 = vadd.f32 %v482, %v562
        %v564 = vpop.f32.mrb[0].mxu0
        %v565 = vadd.f32 %v482, %v564
        %566 = vmatprep.mubr.f32.mxu0 0.0
        %567 = vmatmul.mubr.f32.gmra.mrb[0].mxu0 %v494
        %v568 = vpop.f32.mrb[0].mxu0
        %v569 = vadd.f32 %v487, %v568
        %v570 = vpop.f32.mrb[0].mxu0
        %v571 = vadd.f32 %v487, %v570
        %572 = vdwg.mxu0
        %573 = vmatprep.subr.mxu0 %v470
        %574 = vmatpush1.msra.mxu0 %v469
        %575 = vmatprep.subr.mxu0 %v474
        %576 = vmatpush1.msra.mxu0 %v473
        %577 = vmatprep.subr.mxu0 0.0
        %578 = vmatpush1.msra.mxu0 0.0
        %579 = vmatprep.subr.mxu0 0.0
        %580 = vmatpush1.msra.mxu0 0.0
        %581 = vmatprep.subr.mxu0 0.0
        %582 = vmatpush1.msra.mxu0 0.0
        %583 = vmatprep.subr.mxu0 0.0
        %584 = vmatpush1.msra.mxu0 0.0
        %585 = vmatprep.subr.mxu0 0.0
        %586 = vmatpush1.msra.mxu0 0.0
        %587 = vmatprep.subr.mxu0 0.0
        %588 = vmatpush1.msra.mxu0 0.0
        %589 = vmatprep.subr.mxu0 0.0
        %590 = vmatpush1.msra.mxu0 0.0
        %591 = vmatprep.subr.mxu0 0.0
        %592 = vmatpush1.msra.mxu0 0.0
        %593 = vmatprep.subr.mxu0 0.0
        %594 = vmatpush1.msra.mxu0 0.0
        %595 = vmatprep.subr.mxu0 0.0
        %596 = vmatpush1.msra.mxu0 0.0
        %597 = vmatprep.subr.mxu0 0.0
        %598 = vmatpush1.msra.mxu0 0.0
        %599 = vmatprep.subr.mxu0 0.0
        %600 = vmatpush1.msra.mxu0 0.0
        %601 = vmatprep.subr.mxu0 0.0
        %602 = vmatpush1.msra.mxu0 0.0
        %603 = vmatprep.subr.mxu0 0.0
        %604 = vmatpush1.msra.mxu0 0.0
        %605 = vmatprep.subr.mxu0 0.0
        %606 = vmatpush1.msra.mxu0 0.0
        %607 = vmatprep.subr.mxu0 0.0
        %608 = vmatpush1.msra.mxu0 0.0
        %609 = vmatprep.subr.mxu0 0.0
        %610 = vmatpush1.msra.mxu0 0.0
        %611 = vmatprep.subr.mxu0 0.0
        %612 = vmatpush1.msra.mxu0 0.0
        %613 = vmatprep.subr.mxu0 0.0
        %614 = vmatpush1.msra.mxu0 0.0
        %615 = vmatprep.subr.mxu0 0.0
        %616 = vmatpush1.msra.mxu0 0.0
        %617 = vmatprep.subr.mxu0 0.0
        %618 = vmatpush1.msra.mxu0 0.0
        %619 = vmatprep.subr.mxu0 0.0
        %620 = vmatpush1.msra.mxu0 0.0
        %621 = vmatprep.subr.mxu0 0.0
        %622 = vmatpush1.msra.mxu0 0.0
        %623 = vmatprep.subr.mxu0 0.0
        %624 = vmatpush1.msra.mxu0 0.0
        %625 = vmatprep.subr.mxu0 0.0
        %626 = vmatpush1.msra.mxu0 0.0
        %627 = vmatprep.subr.mxu0 0.0
        %628 = vmatpush1.msra.mxu0 0.0
        %629 = vmatprep.subr.mxu0 0.0
        %630 = vmatpush1.msra.mxu0 0.0
        %631 = vmatprep.subr.mxu0 0.0
        %632 = vmatpush1.msra.mxu0 0.0
        %633 = vmatprep.subr.mxu0 0.0
        %634 = vmatpush1.msra.mxu0 0.0
        %635 = vmatprep.subr.mxu0 0.0
        %636 = vmatpush1.msra.mxu0 0.0
        %637 = vmatprep.mubr.f32.mxu0 0.0
        %638 = vmatmul.mubr.f32.gmra.mrb[0].mxu0 %v491
        %v639 = vpop.f32.mrb[0].mxu0
        %v640 = vadd.f32 %v482, %v639
        %v641 = vpop.f32.mrb[0].mxu0
        %v642 = vadd.f32 %v482, %v641
        %643 = vmatprep.mubr.f32.mxu0 0.0
        %644 = vmatmul.mubr.f32.gmra.mrb[0].mxu0 %v494
        %v645 = vpop.f32.mrb[0].mxu0
        %v646 = vadd.f32 %v487, %v645
        %v647 = vpop.f32.mrb[0].mxu0
        %v648 = vadd.f32 %v487, %v647
        %649 = vdwg.mxu0
        %v650 = vand.u32 2147483647, %v563
        %v651 = vand.u32 2147483647, %v565
        %v652 = vand.u32 2147483647, %v640
        %v653 = vand.u32 2147483647, %v642
        %v654 = vand.u32 2147483647, %v569
        %v655 = vand.u32 2147483647, %v571
        %v656 = vand.u32 2147483647, %v646
        %v657 = vand.u32 2147483647, %v648
        %v658 = vsub.f32 0.0, %v650
        %v659 = vsub.f32 0.0, %v651
        %v660 = vsub.f32 0.0, %v652
        %v661 = vsub.f32 0.0, %v653
        %v662 = vsub.f32 0.0, %v654
        %v663 = vsub.f32 0.0, %v655
        %v664 = vsub.f32 0.0, %v656
        %v665 = vsub.f32 0.0, %v657
        %v666 = vmul.f32 %v658, 1.442695
        %v667 = vpow.pop %v666
        %v668 = vmul.f32 %v659, 1.442695
        %v669 = vpow.pop %v668
        %v670 = vmul.f32 %v660, 1.442695
        %v671 = vpow.pop %v670
        %v672 = vmul.f32 %v661, 1.442695
        %v673 = vpow.pop %v672
        %v674 = vmul.f32 %v662, 1.442695
        %v675 = vpow.pop %v674
        %v676 = vmul.f32 %v663, 1.442695
        %v677 = vpow.pop %v676
        %v678 = vmul.f32 %v664, 1.442695
        %v679 = vpow.pop %v678
        %v680 = vmul.f32 %v665, 1.442695
        %v681 = vpow.pop %v680
        %v682 = vadd.f32 %v667, 1.0
        %v683 = vadd.f32 %v669, 1.0
        %v684 = vadd.f32 %v671, 1.0
        %v685 = vadd.f32 %v673, 1.0
        %v686 = vadd.f32 %v675, 1.0
        %v687 = vadd.f32 %v677, 1.0
        %v688 = vadd.f32 %v679, 1.0
        %v689 = vadd.f32 %v681, 1.0
        %v690 = vrcp.pop %v682
        %v691 = vrcp.pop %v683
        %v692 = vrcp.pop %v684
        %v693 = vrcp.pop %v685
        %v694 = vrcp.pop %v686
        %v695 = vrcp.pop %v687
        %v696 = vrcp.pop %v688
        %v697 = vrcp.pop %v689
        %vm698 = vcmp.ge.f32.partialorder %v563, 0.0
        %vm699 = vcmp.ge.f32.partialorder %v565, 0.0
        %vm700 = vcmp.ge.f32.partialorder %v640, 0.0
        %vm701 = vcmp.ge.f32.partialorder %v642, 0.0
        %vm702 = vcmp.ge.f32.partialorder %v569, 0.0
        %vm703 = vcmp.ge.f32.partialorder %v571, 0.0
        %vm704 = vcmp.ge.f32.partialorder %v646, 0.0
        %vm705 = vcmp.ge.f32.partialorder %v648, 0.0
        %v706 = vsub.f32 1.0, %v690
        %v707 = vsub.f32 1.0, %v691
        %v708 = vsub.f32 1.0, %v692
        %v709 = vsub.f32 1.0, %v693
        %v710 = vsub.f32 1.0, %v694
        %v711 = vsub.f32 1.0, %v695
        %v712 = vsub.f32 1.0, %v696
        %v713 = vsub.f32 1.0, %v697
        %v714 = vsel %vm698, %v690, %v706
        %v715 = vsel %vm699, %v691, %v707
        %v716 = vsel %vm700, %v692, %v708
        %v717 = vsel %vm701, %v693, %v709
        %v718 = vsel %vm702, %v694, %v710
        %v719 = vsel %vm703, %v695, %v711
        %v720 = vsel %vm704, %v696, %v712
        %v721 = vsel %vm705, %v697, %v713
        %v722 = vmul.f32 %v563, %v714
        %v723 = vmul.f32 %v565, %v715
        %v724 = vmul.f32 %v640, %v716
        %v725 = vmul.f32 %v642, %v717
        %v726 = vmul.f32 %v569, %v718
        %v727 = vmul.f32 %v571, %v719
        %v728 = vmul.f32 %v646, %v720
        %v729 = vmul.f32 %v648, %v721
        %v730 = vld [vmem:[#allocation14] sm:$0xff]
        %v731 = vld [vmem:[#allocation14 + $0x8] sm:$0xff]
        %v732 = vld [vmem:[#allocation14 + $0x10] sm:$0xff]
        %v733 = vld [vmem:[#allocation14 + $0x18] sm:$0xff]
        %v734 = vld [vmem:[#allocation14 + $0x20] sm:$0xff]
        %v735 = vld [vmem:[#allocation14 + $0x28] sm:$0xff]
        %v736 = vld [vmem:[#allocation14 + $0x30] sm:$0xff]
        %v737 = vld [vmem:[#allocation14 + $0x38] sm:$0xff]
        %v738 = vld [vmem:[#allocation14 + $0x40] sm:$0xff]
        %v739 = vld [vmem:[#allocation14 + $0x48] sm:$0xff]
        %v740 = vld [vmem:[#allocation14 + $0x50] sm:$0xff]
        %v741 = vld [vmem:[#allocation14 + $0x58] sm:$0xff]
        %v742 = vld [vmem:[#allocation14 + $0x60] sm:$0xff]
        %v743 = vld [vmem:[#allocation14 + $0x68] sm:$0xff]
        %v744 = vld [vmem:[#allocation14 + $0x70] sm:$0xff]
        %v745 = vld [vmem:[#allocation14 + $0x78] sm:$0xff]
        %v746 = vld [vmem:[#allocation14 + $0x80] sm:$0xff]
        %v747 = vld [vmem:[#allocation14 + $0x88] sm:$0xff]
        %v748 = vld [vmem:[#allocation14 + $0x90] sm:$0xff]
        %v749 = vld [vmem:[#allocation14 + $0x98] sm:$0xff]
        %v750 = vld [vmem:[#allocation14 + $0xa0] sm:$0xff]
        %v751 = vld [vmem:[#allocation14 + $0xa8] sm:$0xff]
        %v752 = vld [vmem:[#allocation14 + $0xb0] sm:$0xff]
        %v753 = vld [vmem:[#allocation14 + $0xb8] sm:$0xff]
        %v754 = vld [vmem:[#allocation14 + $0xc0] sm:$0xff]
        %v755 = vld [vmem:[#allocation14 + $0xc8] sm:$0xff]
        %v756 = vld [vmem:[#allocation14 + $0xd0] sm:$0xff]
        %v757 = vld [vmem:[#allocation14 + $0xd8] sm:$0xff]
        %v758 = vld [vmem:[#allocation14 + $0xe0] sm:$0xff]
        %v759 = vld [vmem:[#allocation14 + $0xe8] sm:$0xff]
        %v760 = vld [vmem:[#allocation14 + $0xf0] sm:$0xff]
        %v761 = vld [vmem:[#allocation14 + $0xf8] sm:$0xff]
        %v762 = vld [vmem:[#allocation14 + $0x100] sm:$0xff]
        %v763 = vld [vmem:[#allocation14 + $0x108] sm:$0xff]
        %v764 = vld [vmem:[#allocation14 + $0x110] sm:$0xff]
        %v765 = vld [vmem:[#allocation14 + $0x118] sm:$0xff]
        %v766 = vld [vmem:[#allocation14 + $0x120] sm:$0xff]
        %v767 = vld [vmem:[#allocation14 + $0x128] sm:$0xff]
        %v768 = vld [vmem:[#allocation14 + $0x130] sm:$0xff]
        %v769 = vld [vmem:[#allocation14 + $0x138] sm:$0xff]
        %v770 = vld [vmem:[#allocation14 + $0x140] sm:$0xff]
        %v771 = vld [vmem:[#allocation14 + $0x148] sm:$0xff]
        %v772 = vld [vmem:[#allocation14 + $0x150] sm:$0xff]
        %v773 = vld [vmem:[#allocation14 + $0x158] sm:$0xff]
        %v774 = vld [vmem:[#allocation14 + $0x160] sm:$0xff]
        %v775 = vld [vmem:[#allocation14 + $0x168] sm:$0xff]
        %v776 = vld [vmem:[#allocation14 + $0x170] sm:$0xff]
        %v777 = vld [vmem:[#allocation14 + $0x178] sm:$0xff]
        %v778 = vld [vmem:[#allocation14 + $0x180] sm:$0xff]
        %v779 = vld [vmem:[#allocation14 + $0x188] sm:$0xff]
        %v780 = vld [vmem:[#allocation14 + $0x190] sm:$0xff]
        %v781 = vld [vmem:[#allocation14 + $0x198] sm:$0xff]
        %v782 = vld [vmem:[#allocation14 + $0x1a0] sm:$0xff]
        %v783 = vld [vmem:[#allocation14 + $0x1a8] sm:$0xff]
        %v784 = vld [vmem:[#allocation14 + $0x1b0] sm:$0xff]
        %v785 = vld [vmem:[#allocation14 + $0x1b8] sm:$0xff]
        %v786 = vld [vmem:[#allocation14 + $0x1c0] sm:$0xff]
        %v787 = vld [vmem:[#allocation14 + $0x1c8] sm:$0xff]
        %v788 = vld [vmem:[#allocation14 + $0x1d0] sm:$0xff]
        %v789 = vld [vmem:[#allocation14 + $0x1d8] sm:$0xff]
        %v790 = vld [vmem:[#allocation14 + $0x1e0] sm:$0xff]
        %v791 = vld [vmem:[#allocation14 + $0x1e8] sm:$0xff]
        %v792 = vld [vmem:[#allocation14 + $0x1f0] sm:$0xff]
        %v793 = vld [vmem:[#allocation14 + $0x1f8] sm:$0xff]
        %794 = vmatprep.subr.mxu0 0.0
        %795 = vmatpush1.msra.mxu0 %v730
        %796 = vmatprep.subr.mxu0 0.0
        %797 = vmatpush1.msra.mxu0 %v731
        %798 = vmatprep.subr.mxu0 0.0
        %799 = vmatpush1.msra.mxu0 %v732
        %800 = vmatprep.subr.mxu0 0.0
        %801 = vmatpush1.msra.mxu0 %v733
        %802 = vmatprep.subr.mxu0 0.0
        %803 = vmatpush1.msra.mxu0 %v734
        %804 = vmatprep.subr.mxu0 0.0
        %805 = vmatpush1.msra.mxu0 %v735
        %806 = vmatprep.subr.mxu0 0.0
        %807 = vmatpush1.msra.mxu0 %v736
        %808 = vmatprep.subr.mxu0 0.0
        %809 = vmatpush1.msra.mxu0 %v737
        %810 = vmatprep.subr.mxu0 0.0
        %811 = vmatpush1.msra.mxu0 %v738
        %812 = vmatprep.subr.mxu0 0.0
        %813 = vmatpush1.msra.mxu0 %v739
        %814 = vmatprep.subr.mxu0 0.0
        %815 = vmatpush1.msra.mxu0 %v740
        %816 = vmatprep.subr.mxu0 0.0
        %817 = vmatpush1.msra.mxu0 %v741
        %818 = vmatprep.subr.mxu0 0.0
        %819 = vmatpush1.msra.mxu0 %v742
        %820 = vmatprep.subr.mxu0 0.0
        %821 = vmatpush1.msra.mxu0 %v743
        %822 = vmatprep.subr.mxu0 0.0
        %823 = vmatpush1.msra.mxu0 %v744
        %824 = vmatprep.subr.mxu0 0.0
        %825 = vmatpush1.msra.mxu0 %v745
        %826 = vmatprep.subr.mxu0 0.0
        %827 = vmatpush1.msra.mxu0 %v746
        %828 = vmatprep.subr.mxu0 0.0
        %829 = vmatpush1.msra.mxu0 %v747
        %830 = vmatprep.subr.mxu0 0.0
        %831 = vmatpush1.msra.mxu0 %v748
        %832 = vmatprep.subr.mxu0 0.0
        %833 = vmatpush1.msra.mxu0 %v749
        %834 = vmatprep.subr.mxu0 0.0
        %835 = vmatpush1.msra.mxu0 %v750
        %836 = vmatprep.subr.mxu0 0.0
        %837 = vmatpush1.msra.mxu0 %v751
        %838 = vmatprep.subr.mxu0 0.0
        %839 = vmatpush1.msra.mxu0 %v752
        %840 = vmatprep.subr.mxu0 0.0
        %841 = vmatpush1.msra.mxu0 %v753
        %842 = vmatprep.subr.mxu0 0.0
        %843 = vmatpush1.msra.mxu0 %v754
        %844 = vmatprep.subr.mxu0 0.0
        %845 = vmatpush1.msra.mxu0 %v755
        %846 = vmatprep.subr.mxu0 0.0
        %847 = vmatpush1.msra.mxu0 %v756
        %848 = vmatprep.subr.mxu0 0.0
        %849 = vmatpush1.msra.mxu0 %v757
        %850 = vmatprep.subr.mxu0 0.0
        %851 = vmatpush1.msra.mxu0 %v758
        %852 = vmatprep.subr.mxu0 0.0
        %853 = vmatpush1.msra.mxu0 %v759
        %854 = vmatprep.subr.mxu0 0.0
        %855 = vmatpush1.msra.mxu0 %v760
        %856 = vmatprep.subr.mxu0 0.0
        %857 = vmatpush1.msra.mxu0 %v761
        %858 = vmatprep.mubr.f32.mxu0 %v723
        %859 = vmatmul.mubr.f32.gmra.mrb[0].mxu0 %v722
        %v860 = vpop.f32.mrb[0].mxu0
        %v861 = vadd.f32 0.0, %v860
        %v862 = vpop.f32.mrb[0].mxu0
        %863 = vdwg.mxu0
        %864 = vmatprep.subr.mxu0 0.0
        %865 = vmatpush1.msra.mxu0 %v762
        %866 = vmatprep.subr.mxu0 0.0
        %867 = vmatpush1.msra.mxu0 %v763
        %868 = vmatprep.subr.mxu0 0.0
        %869 = vmatpush1.msra.mxu0 %v764
        %870 = vmatprep.subr.mxu0 0.0
        %871 = vmatpush1.msra.mxu0 %v765
        %872 = vmatprep.subr.mxu0 0.0
        %873 = vmatpush1.msra.mxu0 %v766
        %874 = vmatprep.subr.mxu0 0.0
        %875 = vmatpush1.msra.mxu0 %v767
        %876 = vmatprep.subr.mxu0 0.0
        %877 = vmatpush1.msra.mxu0 %v768
        %878 = vmatprep.subr.mxu0 0.0
        %879 = vmatpush1.msra.mxu0 %v769
        %880 = vmatprep.subr.mxu0 0.0
        %881 = vmatpush1.msra.mxu0 %v770
        %882 = vmatprep.subr.mxu0 0.0
        %883 = vmatpush1.msra.mxu0 %v771
        %884 = vmatprep.subr.mxu0 0.0
        %885 = vmatpush1.msra.mxu0 %v772
        %886 = vmatprep.subr.mxu0 0.0
        %887 = vmatpush1.msra.mxu0 %v773
        %888 = vmatprep.subr.mxu0 0.0
        %889 = vmatpush1.msra.mxu0 %v774
        %890 = vmatprep.subr.mxu0 0.0
        %891 = vmatpush1.msra.mxu0 %v775
        %892 = vmatprep.subr.mxu0 0.0
        %893 = vmatpush1.msra.mxu0 %v776
        %894 = vmatprep.subr.mxu0 0.0
        %895 = vmatpush1.msra.mxu0 %v777
        %896 = vmatprep.subr.mxu0 0.0
        %897 = vmatpush1.msra.mxu0 %v778
        %898 = vmatprep.subr.mxu0 0.0
        %899 = vmatpush1.msra.mxu0 %v779
        %900 = vmatprep.subr.mxu0 0.0
        %901 = vmatpush1.msra.mxu0 %v780
        %902 = vmatprep.subr.mxu0 0.0
        %903 = vmatpush1.msra.mxu0 %v781
        %904 = vmatprep.subr.mxu0 0.0
        %905 = vmatpush1.msra.mxu0 %v782
        %906 = vmatprep.subr.mxu0 0.0
        %907 = vmatpush1.msra.mxu0 %v783
        %908 = vmatprep.subr.mxu0 0.0
        %909 = vmatpush1.msra.mxu0 %v784
        %910 = vmatprep.subr.mxu0 0.0
        %911 = vmatpush1.msra.mxu0 %v785
        %912 = vmatprep.subr.mxu0 0.0
        %913 = vmatpush1.msra.mxu0 %v786
        %914 = vmatprep.subr.mxu0 0.0
        %915 = vmatpush1.msra.mxu0 %v787
        %916 = vmatprep.subr.mxu0 0.0
        %917 = vmatpush1.msra.mxu0 %v788
        %918 = vmatprep.subr.mxu0 0.0
        %919 = vmatpush1.msra.mxu0 %v789
        %920 = vmatprep.subr.mxu0 0.0
        %921 = vmatpush1.msra.mxu0 %v790
        %922 = vmatprep.subr.mxu0 0.0
        %923 = vmatpush1.msra.mxu0 %v791
        %924 = vmatprep.subr.mxu0 0.0
        %925 = vmatpush1.msra.mxu0 %v792
        %926 = vmatprep.subr.mxu0 0.0
        %927 = vmatpush1.msra.mxu0 %v793
        %928 = vmatprep.mubr.f32.mxu0 %v725
        %929 = vmatmul.mubr.f32.gmra.mrb[0].mxu0 %v724
        %v930 = vpop.f32.mrb[0].mxu0
        %v931 = vadd.f32 %v861, %v930
        %v932 = vpop.f32.mrb[0].mxu0
        %933 = vdwg.mxu0
        %s934 = scalar_lea.vmem [#allocation5], 32
        %v935 = vld [vmem:[%s934] sm:$0xff]
        %v936 = vld [vmem:[%s934 + $0x8] sm:$0xff]
        %937 = vset.pattern.permute.xlu0 3
        %938 = vperm.xlu0 %937, %v475
        %v939 = vpop.permute.xlu0 %938
        %941 = vset.pattern.permute.xlu0 3
        %942 = vperm.xlu0 %941, %v476
        %v943 = vpop.permute.xlu0 %942
        %vm945 = vcmask 64512
        %v947 = vsel %vm945, %v935, 0
        %v950 = vsel %vm945, %v936, 0
        %952 = vmatprep.subr.mxu0 0.0
        %953 = vmatpush1.msra.mxu0 %v931
        %954 = vmatprep.subr.mxu0 0.0
        %955 = vmatpush1.msra.mxu0 0.0
        %956 = vmatprep.subr.mxu0 0.0
        %957 = vmatpush1.msra.mxu0 0.0
        %958 = vmatprep.subr.mxu0 0.0
        %959 = vmatpush1.msra.mxu0 0.0
        %960 = vmatprep.subr.mxu0 0.0
        %961 = vmatpush1.msra.mxu0 0.0
        %962 = vmatprep.subr.mxu0 0.0
        %963 = vmatpush1.msra.mxu0 0.0
        %964 = vmatprep.subr.mxu0 0.0
        %965 = vmatpush1.msra.mxu0 0.0
        %966 = vmatprep.subr.mxu0 0.0
        %967 = vmatpush1.msra.mxu0 0.0
        %968 = vmatprep.subr.mxu0 0.0
        %969 = vmatpush1.msra.mxu0 0.0
        %970 = vmatprep.subr.mxu0 0.0
        %971 = vmatpush1.msra.mxu0 0.0
        %972 = vmatprep.subr.mxu0 0.0
        %973 = vmatpush1.msra.mxu0 0.0
        %974 = vmatprep.subr.mxu0 0.0
        %975 = vmatpush1.msra.mxu0 0.0
        %976 = vmatprep.subr.mxu0 0.0
        %977 = vmatpush1.msra.mxu0 0.0
        %978 = vmatprep.subr.mxu0 0.0
        %979 = vmatpush1.msra.mxu0 0.0
        %980 = vmatprep.subr.mxu0 0.0
        %981 = vmatpush1.msra.mxu0 0.0
        %982 = vmatprep.subr.mxu0 0.0
        %983 = vmatpush1.msra.mxu0 0.0
        %984 = vmatprep.subr.mxu0 0.0
        %985 = vmatpush1.msra.mxu0 0.0
        %986 = vmatprep.subr.mxu0 0.0
        %987 = vmatpush1.msra.mxu0 0.0
        %988 = vmatprep.subr.mxu0 0.0
        %989 = vmatpush1.msra.mxu0 0.0
        %990 = vmatprep.subr.mxu0 0.0
        %991 = vmatpush1.msra.mxu0 0.0
        %992 = vmatprep.subr.mxu0 0.0
        %993 = vmatpush1.msra.mxu0 0.0
        %994 = vmatprep.subr.mxu0 0.0
        %995 = vmatpush1.msra.mxu0 0.0
        %996 = vmatprep.subr.mxu0 0.0
        %997 = vmatpush1.msra.mxu0 0.0
        %998 = vmatprep.subr.mxu0 0.0
        %999 = vmatpush1.msra.mxu0 0.0
        %1000 = vmatprep.subr.mxu0 0.0
        %1001 = vmatpush1.msra.mxu0 0.0
        %1002 = vmatprep.subr.mxu0 0.0
        %1003 = vmatpush1.msra.mxu0 0.0
        %1004 = vmatprep.subr.mxu0 0.0
        %1005 = vmatpush1.msra.mxu0 0.0
        %1006 = vmatprep.subr.mxu0 0.0
        %1007 = vmatpush1.msra.mxu0 0.0
        %1008 = vmatprep.subr.mxu0 0.0
        %1009 = vmatpush1.msra.mxu0 0.0
        %1010 = vmatprep.subr.mxu0 0.0
        %1011 = vmatpush1.msra.mxu0 0.0
        %1012 = vmatprep.subr.mxu0 0.0
        %1013 = vmatpush1.msra.mxu0 0.0
        %1014 = vmatprep.subr.mxu0 0.0
        %1015 = vmatpush1.msra.mxu0 0.0
        %1016 = vmatprep.mubr.f32.mxu0 0.0
        %1017 = vmatmul.mubr.f32.gmra.mrb[0].mxu0 %v947
        %v1018 = vpop.f32.mrb[0].mxu0
        %v1019 = vadd.f32 %v939, %v1018
        %v1020 = vpop.f32.mrb[0].mxu0
        %1021 = vmatprep.mubr.f32.mxu0 0.0
        %1022 = vmatmul.mubr.f32.gmra.mrb[0].mxu0 %v950
        %v1023 = vpop.f32.mrb[0].mxu0
        %v1024 = vadd.f32 %v943, %v1023
        %v1025 = vpop.f32.mrb[0].mxu0
        %1026 = vdwg.mxu0
        %1027 = vrot.lane.b32.xlu0 %v1019, 2
        %v1028 = vpop.permute.xlu0 %1027
        %1029 = vrot.lane.b32.xlu0 %v1024, 2
        %v1030 = vpop.permute.xlu0 %1029
        %v1031 = vld [vmem:[#allocation10] sm:$0xff]
        %v1032 = vld [vmem:[#allocation10 + $0x8] sm:$0xff]
        %v1033 = vmul.f32 %v1028, %v1031
        %v1034 = vmul.f32 %v1030, %v1032
        %1035 = vrot.lane.b32.xlu0 %v1019, 1
        %v1036 = vpop.permute.xlu0 %1035
        %1037 = vrot.lane.b32.xlu0 %v1024, 1
        %v1038 = vpop.permute.xlu0 %1037
        %s1039 = scalar_lea.vmem [#allocation10], 16
        %v1040 = vld [vmem:[%s1039] sm:$0xff]
        %v1041 = vld [vmem:[%s1039 + $0x8] sm:$0xff]
        %v1042 = vmul.f32 %v1036, %v1040
        %v1043 = vmul.f32 %v1038, %v1041
        %v1044 = vadd.f32 %v1033, %v1042
        %v1045 = vadd.f32 %v1034, %v1043
        %s1046 = scalar_lea.vmem [#allocation10], 32
        %v1047 = vld [vmem:[%s1046] sm:$0xff]
        %v1048 = vld [vmem:[%s1046 + $0x8] sm:$0xff]
        %v1049 = vmul.f32 %v1019, %v1047
        %v1050 = vmul.f32 %v1024, %v1048
        %v1051 = vadd.f32 %v1044, %v1049
        %v1052 = vadd.f32 %v1045, %v1050
        %1053 = vrot.lane.b32.xlu0 %v1019, 127
        %v1054 = vpop.permute.xlu0 %1053
        %1055 = vrot.lane.b32.xlu0 %v1024, 127
        %v1056 = vpop.permute.xlu0 %1055
        %s1057 = scalar_lea.vmem [#allocation10], 48
        %v1058 = vld [vmem:[%s1057] sm:$0xff]
        %v1059 = vld [vmem:[%s1057 + $0x8] sm:$0xff]
        %v1060 = vmul.f32 %v1054, %v1058
        %v1061 = vmul.f32 %v1056, %v1059
        %v1062 = vadd.f32 %v1051, %v1060
        %v1063 = vadd.f32 %v1052, %v1061
        %1064 = vrot.lane.b32.xlu0 %v1019, 126
        %v1065 = vpop.permute.xlu0 %1064
        %1066 = vrot.lane.b32.xlu0 %v1024, 126
        %v1067 = vpop.permute.xlu0 %1066
        %s1068 = scalar_lea.vmem [#allocation10], 64
        %v1069 = vld [vmem:[%s1068] sm:$0xff]
        %v1070 = vld [vmem:[%s1068 + $0x8] sm:$0xff]
        %v1071 = vmul.f32 %v1065, %v1069
        %v1072 = vmul.f32 %v1067, %v1070
        %v1073 = vadd.f32 %v1062, %v1071
        %v1074 = vadd.f32 %v1063, %v1072
        %1075 = vset.pattern.permute.xlu0 4
        %1076 = vperm.xlu0 %1075, %v475
        %v1077 = vpop.permute.xlu0 %1076
        %1079 = vset.pattern.permute.xlu0 4
        %1080 = vperm.xlu0 %1079, %v476
        %v1081 = vpop.permute.xlu0 %1080
        %v1083 = vadd.f32 %v1073, %v1077
        %v1084 = vadd.f32 %v1074, %v1081
        %1085 = vrot.lane.b32.xlu0 %v1083, 16
        %v1086 = vpop.permute.xlu0 %1085
        %1087 = vrot.lane.b32.xlu0 %v1084, 16
        %v1088 = vpop.permute.xlu0 %1087
        %v1089 = vld [vmem:[#allocation11] sm:$0xff]
        %v1090 = vld [vmem:[#allocation11 + $0x8] sm:$0xff]
        %v1091 = vmul.f32 %v1086, %v1089
        %v1092 = vmul.f32 %v1088, %v1090
        %1093 = vrot.lane.b32.xlu0 %v1083, 8
        %v1094 = vpop.permute.xlu0 %1093
        %1095 = vrot.lane.b32.xlu0 %v1084, 8
        %v1096 = vpop.permute.xlu0 %1095
        %s1097 = scalar_lea.vmem [#allocation11], 16
        %v1098 = vld [vmem:[%s1097] sm:$0xff]
        %v1099 = vld [vmem:[%s1097 + $0x8] sm:$0xff]
        %v1100 = vmul.f32 %v1094, %v1098
        %v1101 = vmul.f32 %v1096, %v1099
        %v1102 = vadd.f32 %v1091, %v1100
        %v1103 = vadd.f32 %v1092, %v1101
        %s1104 = scalar_lea.vmem [#allocation11], 32
        %v1105 = vld [vmem:[%s1104] sm:$0xff]
        %v1106 = vld [vmem:[%s1104 + $0x8] sm:$0xff]
        %v1107 = vmul.f32 %v1083, %v1105
        %v1108 = vmul.f32 %v1084, %v1106
        %v1109 = vadd.f32 %v1102, %v1107
        %v1110 = vadd.f32 %v1103, %v1108
        %1111 = vrot.lane.b32.xlu0 %v1083, 120
        %v1112 = vpop.permute.xlu0 %1111
        %1113 = vrot.lane.b32.xlu0 %v1084, 120
        %v1114 = vpop.permute.xlu0 %1113
        %s1115 = scalar_lea.vmem [#allocation11], 48
        %v1116 = vld [vmem:[%s1115] sm:$0xff]
        %v1117 = vld [vmem:[%s1115 + $0x8] sm:$0xff]
        %v1118 = vmul.f32 %v1112, %v1116
        %v1119 = vmul.f32 %v1114, %v1117
        %v1120 = vadd.f32 %v1109, %v1118
        %v1121 = vadd.f32 %v1110, %v1119
        %1122 = vrot.lane.b32.xlu0 %v1083, 112
        %v1123 = vpop.permute.xlu0 %1122
        %1124 = vrot.lane.b32.xlu0 %v1084, 112
        %v1125 = vpop.permute.xlu0 %1124
        %s1126 = scalar_lea.vmem [#allocation11], 64
        %v1127 = vld [vmem:[%s1126] sm:$0xff]
        %v1128 = vld [vmem:[%s1126 + $0x8] sm:$0xff]
        %v1129 = vmul.f32 %v1123, %v1127
        %v1130 = vmul.f32 %v1125, %v1128
        %v1131 = vadd.f32 %v1120, %v1129
        %v1132 = vadd.f32 %v1121, %v1130
        %1133 = vset.pattern.permute.xlu0 5
        %1134 = vperm.xlu0 %1133, %v475
        %v1135 = vpop.permute.xlu0 %1134
        %1137 = vset.pattern.permute.xlu0 5
        %1138 = vperm.xlu0 %1137, %v476
        %v1139 = vpop.permute.xlu0 %1138
        %v1141 = vadd.f32 %v1131, %v1135
        %v1142 = vadd.f32 %v1132, %v1139
        %v1143 = vand.u32 2147483647, %v1141
        %v1144 = vand.u32 2147483647, %v1142
        %v1145 = vsub.f32 0.0, %v1143
        %v1146 = vsub.f32 0.0, %v1144
        %v1147 = vmul.f32 %v1145, 1.442695
        %v1148 = vpow.pop %v1147
        %v1149 = vmul.f32 %v1146, 1.442695
        %v1150 = vpow.pop %v1149
        %v1151 = vadd.f32 %v1148, 1.0
        %v1152 = vadd.f32 %v1150, 1.0
        %v1153 = vrcp.pop %v1151
        %v1154 = vrcp.pop %v1152
        %vm1155 = vcmp.ge.f32.partialorder %v1141, 0.0
        %vm1156 = vcmp.ge.f32.partialorder %v1142, 0.0
        %v1157 = vsub.f32 1.0, %v1153
        %v1158 = vsub.f32 1.0, %v1154
        %v1159 = vsel %vm1155, %v1153, %v1157
        %v1160 = vsel %vm1156, %v1154, %v1158
        %v1161 = vld [vmem:[#allocation16] sm:$0xff]
        %v1162 = vld [vmem:[#allocation16 + $0x8] sm:$0xff]
        %v1163 = vld [vmem:[#allocation16 + $0x10] sm:$0xff]
        %v1164 = vld [vmem:[#allocation16 + $0x18] sm:$0xff]
        %v1165 = vld [vmem:[#allocation16 + $0x20] sm:$0xff]
        %v1166 = vld [vmem:[#allocation16 + $0x28] sm:$0xff]
        %v1167 = vld [vmem:[#allocation16 + $0x30] sm:$0xff]
        %v1168 = vld [vmem:[#allocation16 + $0x38] sm:$0xff]
        %v1169 = vld [vmem:[#allocation16 + $0x40] sm:$0xff]
        %v1170 = vld [vmem:[#allocation16 + $0x48] sm:$0xff]
        %v1171 = vld [vmem:[#allocation16 + $0x50] sm:$0xff]
        %v1172 = vld [vmem:[#allocation16 + $0x58] sm:$0xff]
        %v1173 = vld [vmem:[#allocation16 + $0x60] sm:$0xff]
        %v1174 = vld [vmem:[#allocation16 + $0x68] sm:$0xff]
        %v1175 = vld [vmem:[#allocation16 + $0x70] sm:$0xff]
        %v1176 = vld [vmem:[#allocation16 + $0x78] sm:$0xff]
        %v1177 = vld [vmem:[#allocation16 + $0x80] sm:$0xff]
        %v1178 = vld [vmem:[#allocation16 + $0x88] sm:$0xff]
        %v1179 = vld [vmem:[#allocation16 + $0x90] sm:$0xff]
        %v1180 = vld [vmem:[#allocation16 + $0x98] sm:$0xff]
        %v1181 = vld [vmem:[#allocation16 + $0xa0] sm:$0xff]
        %v1182 = vld [vmem:[#allocation16 + $0xa8] sm:$0xff]
        %v1183 = vld [vmem:[#allocation16 + $0xb0] sm:$0xff]
        %v1184 = vld [vmem:[#allocation16 + $0xb8] sm:$0xff]
        %v1185 = vld [vmem:[#allocation16 + $0xc0] sm:$0xff]
        %v1186 = vld [vmem:[#allocation16 + $0xc8] sm:$0xff]
        %v1187 = vld [vmem:[#allocation16 + $0xd0] sm:$0xff]
        %v1188 = vld [vmem:[#allocation16 + $0xd8] sm:$0xff]
        %v1189 = vld [vmem:[#allocation16 + $0xe0] sm:$0xff]
        %v1190 = vld [vmem:[#allocation16 + $0xe8] sm:$0xff]
        %v1191 = vld [vmem:[#allocation16 + $0xf0] sm:$0xff]
        %v1192 = vld [vmem:[#allocation16 + $0xf8] sm:$0xff]
        %v1193 = vld [vmem:[#allocation16 + $0x100] sm:$0xff]
        %v1194 = vld [vmem:[#allocation16 + $0x108] sm:$0xff]
        %v1195 = vld [vmem:[#allocation16 + $0x110] sm:$0xff]
        %v1196 = vld [vmem:[#allocation16 + $0x118] sm:$0xff]
        %v1197 = vld [vmem:[#allocation16 + $0x120] sm:$0xff]
        %v1198 = vld [vmem:[#allocation16 + $0x128] sm:$0xff]
        %v1199 = vld [vmem:[#allocation16 + $0x130] sm:$0xff]
        %v1200 = vld [vmem:[#allocation16 + $0x138] sm:$0xff]
        %v1201 = vld [vmem:[#allocation16 + $0x140] sm:$0xff]
        %v1202 = vld [vmem:[#allocation16 + $0x148] sm:$0xff]
        %v1203 = vld [vmem:[#allocation16 + $0x150] sm:$0xff]
        %v1204 = vld [vmem:[#allocation16 + $0x158] sm:$0xff]
        %v1205 = vld [vmem:[#allocation16 + $0x160] sm:$0xff]
        %v1206 = vld [vmem:[#allocation16 + $0x168] sm:$0xff]
        %v1207 = vld [vmem:[#allocation16 + $0x170] sm:$0xff]
        %v1208 = vld [vmem:[#allocation16 + $0x178] sm:$0xff]
        %v1209 = vld [vmem:[#allocation16 + $0x180] sm:$0xff]
        %v1210 = vld [vmem:[#allocation16 + $0x188] sm:$0xff]
        %v1211 = vld [vmem:[#allocation16 + $0x190] sm:$0xff]
        %v1212 = vld [vmem:[#allocation16 + $0x198] sm:$0xff]
        %v1213 = vld [vmem:[#allocation16 + $0x1a0] sm:$0xff]
        %v1214 = vld [vmem:[#allocation16 + $0x1a8] sm:$0xff]
        %v1215 = vld [vmem:[#allocation16 + $0x1b0] sm:$0xff]
        %v1216 = vld [vmem:[#allocation16 + $0x1b8] sm:$0xff]
        %v1217 = vld [vmem:[#allocation16 + $0x1c0] sm:$0xff]
        %v1218 = vld [vmem:[#allocation16 + $0x1c8] sm:$0xff]
        %v1219 = vld [vmem:[#allocation16 + $0x1d0] sm:$0xff]
        %v1220 = vld [vmem:[#allocation16 + $0x1d8] sm:$0xff]
        %v1221 = vld [vmem:[#allocation16 + $0x1e0] sm:$0xff]
        %v1222 = vld [vmem:[#allocation16 + $0x1e8] sm:$0xff]
        %v1223 = vld [vmem:[#allocation16 + $0x1f0] sm:$0xff]
        %v1224 = vld [vmem:[#allocation16 + $0x1f8] sm:$0xff]
        %1225 = vmatprep.subr.mxu0 %v1162
        %1226 = vmatpush1.msra.mxu0 %v1161
        %1227 = vmatprep.subr.mxu0 %v1166
        %1228 = vmatpush1.msra.mxu0 %v1165
        %1229 = vmatprep.subr.mxu0 %v1170
        %1230 = vmatpush1.msra.mxu0 %v1169
        %1231 = vmatprep.subr.mxu0 %v1174
        %1232 = vmatpush1.msra.mxu0 %v1173
        %1233 = vmatprep.subr.mxu0 %v1178
        %1234 = vmatpush1.msra.mxu0 %v1177
        %1235 = vmatprep.subr.mxu0 %v1182
        %1236 = vmatpush1.msra.mxu0 %v1181
        %1237 = vmatprep.subr.mxu0 %v1186
        %1238 = vmatpush1.msra.mxu0 %v1185
        %1239 = vmatprep.subr.mxu0 %v1190
        %1240 = vmatpush1.msra.mxu0 %v1189
        %1241 = vmatprep.subr.mxu0 %v1194
        %1242 = vmatpush1.msra.mxu0 %v1193
        %1243 = vmatprep.subr.mxu0 %v1198
        %1244 = vmatpush1.msra.mxu0 %v1197
        %1245 = vmatprep.subr.mxu0 %v1202
        %1246 = vmatpush1.msra.mxu0 %v1201
        %1247 = vmatprep.subr.mxu0 %v1206
        %1248 = vmatpush1.msra.mxu0 %v1205
        %1249 = vmatprep.subr.mxu0 %v1210
        %1250 = vmatpush1.msra.mxu0 %v1209
        %1251 = vmatprep.subr.mxu0 %v1214
        %1252 = vmatpush1.msra.mxu0 %v1213
        %1253 = vmatprep.subr.mxu0 %v1218
        %1254 = vmatpush1.msra.mxu0 %v1217
        %1255 = vmatprep.subr.mxu0 %v1222
        %1256 = vmatpush1.msra.mxu0 %v1221
        %1257 = vmatprep.subr.mxu0 0.0
        %1258 = vmatpush1.msra.mxu0 0.0
        %1259 = vmatprep.subr.mxu0 0.0
        %1260 = vmatpush1.msra.mxu0 0.0
        %1261 = vmatprep.subr.mxu0 0.0
        %1262 = vmatpush1.msra.mxu0 0.0
        %1263 = vmatprep.subr.mxu0 0.0
        %1264 = vmatpush1.msra.mxu0 0.0
        %1265 = vmatprep.subr.mxu0 0.0
        %1266 = vmatpush1.msra.mxu0 0.0
        %1267 = vmatprep.subr.mxu0 0.0
        %1268 = vmatpush1.msra.mxu0 0.0
        %1269 = vmatprep.subr.mxu0 0.0
        %1270 = vmatpush1.msra.mxu0 0.0
        %1271 = vmatprep.subr.mxu0 0.0
        %1272 = vmatpush1.msra.mxu0 0.0
        %1273 = vmatprep.subr.mxu0 0.0
        %1274 = vmatpush1.msra.mxu0 0.0
        %1275 = vmatprep.subr.mxu0 0.0
        %1276 = vmatpush1.msra.mxu0 0.0
        %1277 = vmatprep.subr.mxu0 0.0
        %1278 = vmatpush1.msra.mxu0 0.0
        %1279 = vmatprep.subr.mxu0 0.0
        %1280 = vmatpush1.msra.mxu0 0.0
        %1281 = vmatprep.subr.mxu0 0.0
        %1282 = vmatpush1.msra.mxu0 0.0
        %1283 = vmatprep.subr.mxu0 0.0
        %1284 = vmatpush1.msra.mxu0 0.0
        %1285 = vmatprep.subr.mxu0 0.0
        %1286 = vmatpush1.msra.mxu0 0.0
        %1287 = vmatprep.subr.mxu0 0.0
        %1288 = vmatpush1.msra.mxu0 0.0
        %1289 = vmatprep.mubr.f32.mxu0 0.0
        %1290 = vmatmul.mubr.f32.gmra.mrb[0].mxu0 %v1159
        %v1291 = vpop.f32.mrb[0].mxu0
        %v1292 = vadd.f32 0.0, %v1291
        %v1293 = vpop.f32.mrb[0].mxu0
        %v1294 = vadd.f32 0.0, %v1293
        %1295 = vmatprep.mubr.f32.mxu0 0.0
        %1296 = vmatmul.mubr.f32.gmra.mrb[0].mxu0 %v1160
        %v1297 = vpop.f32.mrb[0].mxu0
        %v1298 = vadd.f32 0.0, %v1297
        %v1299 = vpop.f32.mrb[0].mxu0
        %v1300 = vadd.f32 0.0, %v1299
        %1301 = vdwg.mxu0
        %1302 = vmatprep.subr.mxu0 %v1164
        %1303 = vmatpush1.msra.mxu0 %v1163
        %1304 = vmatprep.subr.mxu0 %v1168
        %1305 = vmatpush1.msra.mxu0 %v1167
        %1306 = vmatprep.subr.mxu0 %v1172
        %1307 = vmatpush1.msra.mxu0 %v1171
        %1308 = vmatprep.subr.mxu0 %v1176
        %1309 = vmatpush1.msra.mxu0 %v1175
        %1310 = vmatprep.subr.mxu0 %v1180
        %1311 = vmatpush1.msra.mxu0 %v1179
        %1312 = vmatprep.subr.mxu0 %v1184
        %1313 = vmatpush1.msra.mxu0 %v1183
        %1314 = vmatprep.subr.mxu0 %v1188
        %1315 = vmatpush1.msra.mxu0 %v1187
        %1316 = vmatprep.subr.mxu0 %v1192
        %1317 = vmatpush1.msra.mxu0 %v1191
        %1318 = vmatprep.subr.mxu0 %v1196
        %1319 = vmatpush1.msra.mxu0 %v1195
        %1320 = vmatprep.subr.mxu0 %v1200
        %1321 = vmatpush1.msra.mxu0 %v1199
        %1322 = vmatprep.subr.mxu0 %v1204
        %1323 = vmatpush1.msra.mxu0 %v1203
        %1324 = vmatprep.subr.mxu0 %v1208
        %1325 = vmatpush1.msra.mxu0 %v1207
        %1326 = vmatprep.subr.mxu0 %v1212
        %1327 = vmatpush1.msra.mxu0 %v1211
        %1328 = vmatprep.subr.mxu0 %v1216
        %1329 = vmatpush1.msra.mxu0 %v1215
        %1330 = vmatprep.subr.mxu0 %v1220
        %1331 = vmatpush1.msra.mxu0 %v1219
        %1332 = vmatprep.subr.mxu0 %v1224
        %1333 = vmatpush1.msra.mxu0 %v1223
        %1334 = vmatprep.subr.mxu0 0.0
        %1335 = vmatpush1.msra.mxu0 0.0
        %1336 = vmatprep.subr.mxu0 0.0
        %1337 = vmatpush1.msra.mxu0 0.0
        %1338 = vmatprep.subr.mxu0 0.0
        %1339 = vmatpush1.msra.mxu0 0.0
        %1340 = vmatprep.subr.mxu0 0.0
        %1341 = vmatpush1.msra.mxu0 0.0
        %1342 = vmatprep.subr.mxu0 0.0
        %1343 = vmatpush1.msra.mxu0 0.0
        %1344 = vmatprep.subr.mxu0 0.0
        %1345 = vmatpush1.msra.mxu0 0.0
        %1346 = vmatprep.subr.mxu0 0.0
        %1347 = vmatpush1.msra.mxu0 0.0
        %1348 = vmatprep.subr.mxu0 0.0
        %1349 = vmatpush1.msra.mxu0 0.0
        %1350 = vmatprep.subr.mxu0 0.0
        %1351 = vmatpush1.msra.mxu0 0.0
        %1352 = vmatprep.subr.mxu0 0.0
        %1353 = vmatpush1.msra.mxu0 0.0
        %1354 = vmatprep.subr.mxu0 0.0
        %1355 = vmatpush1.msra.mxu0 0.0
        %1356 = vmatprep.subr.mxu0 0.0
        %1357 = vmatpush1.msra.mxu0 0.0
        %1358 = vmatprep.subr.mxu0 0.0
        %1359 = vmatpush1.msra.mxu0 0.0
        %1360 = vmatprep.subr.mxu0 0.0
        %1361 = vmatpush1.msra.mxu0 0.0
        %1362 = vmatprep.subr.mxu0 0.0
        %1363 = vmatpush1.msra.mxu0 0.0
        %1364 = vmatprep.subr.mxu0 0.0
        %1365 = vmatpush1.msra.mxu0 0.0
        %1366 = vmatprep.mubr.f32.mxu0 0.0
        %1367 = vmatmul.mubr.f32.gmra.mrb[0].mxu0 %v1159
        %v1368 = vpop.f32.mrb[0].mxu0
        %v1369 = vadd.f32 0.0, %v1368
        %v1370 = vpop.f32.mrb[0].mxu0
        %v1371 = vadd.f32 0.0, %v1370
        %1372 = vmatprep.mubr.f32.mxu0 0.0
        %1373 = vmatmul.mubr.f32.gmra.mrb[0].mxu0 %v1160
        %v1374 = vpop.f32.mrb[0].mxu0
        %v1375 = vadd.f32 0.0, %v1374
        %v1376 = vpop.f32.mrb[0].mxu0
        %v1377 = vadd.f32 0.0, %v1376
        %1378 = vdwg.mxu0
        %s1379 = scalar_lea.vmem [#allocation5], 16
        %v1380 = vld [vmem:[%s1379] sm:$0xff]
        %1381 = vset.pattern.permute.xlu0 1
        %1382 = vperm.xlu0 %1381, %v475
        %v1383 = vpop.permute.xlu0 %1382
        %v1386 = vsel %vm945, %v1380, 0
        %1388 = vmatprep.subr.mxu0 %v723
        %1389 = vmatpush1.msra.mxu0 %v722
        %1390 = vmatprep.subr.mxu0 0.0
        %1391 = vmatpush1.msra.mxu0 0.0
        %1392 = vmatprep.subr.mxu0 0.0
        %1393 = vmatpush1.msra.mxu0 0.0
        %1394 = vmatprep.subr.mxu0 0.0
        %1395 = vmatpush1.msra.mxu0 0.0
        %1396 = vmatprep.subr.mxu0 0.0
        %1397 = vmatpush1.msra.mxu0 0.0
        %1398 = vmatprep.subr.mxu0 0.0
        %1399 = vmatpush1.msra.mxu0 0.0
        %1400 = vmatprep.subr.mxu0 0.0
        %1401 = vmatpush1.msra.mxu0 0.0
        %1402 = vmatprep.subr.mxu0 0.0
        %1403 = vmatpush1.msra.mxu0 0.0
        %1404 = vmatprep.subr.mxu0 0.0
        %1405 = vmatpush1.msra.mxu0 0.0
        %1406 = vmatprep.subr.mxu0 0.0
        %1407 = vmatpush1.msra.mxu0 0.0
        %1408 = vmatprep.subr.mxu0 0.0
        %1409 = vmatpush1.msra.mxu0 0.0
        %1410 = vmatprep.subr.mxu0 0.0
        %1411 = vmatpush1.msra.mxu0 0.0
        %1412 = vmatprep.subr.mxu0 0.0
        %1413 = vmatpush1.msra.mxu0 0.0
        %1414 = vmatprep.subr.mxu0 0.0
        %1415 = vmatpush1.msra.mxu0 0.0
        %1416 = vmatprep.subr.mxu0 0.0
        %1417 = vmatpush1.msra.mxu0 0.0
        %1418 = vmatprep.subr.mxu0 0.0
        %1419 = vmatpush1.msra.mxu0 0.0
        %1420 = vmatprep.subr.mxu0 0.0
        %1421 = vmatpush1.msra.mxu0 0.0
        %1422 = vmatprep.subr.mxu0 0.0
        %1423 = vmatpush1.msra.mxu0 0.0
        %1424 = vmatprep.subr.mxu0 0.0
        %1425 = vmatpush1.msra.mxu0 0.0
        %1426 = vmatprep.subr.mxu0 0.0
        %1427 = vmatpush1.msra.mxu0 0.0
        %1428 = vmatprep.subr.mxu0 0.0
        %1429 = vmatpush1.msra.mxu0 0.0
        %1430 = vmatprep.subr.mxu0 0.0
        %1431 = vmatpush1.msra.mxu0 0.0
        %1432 = vmatprep.subr.mxu0 0.0
        %1433 = vmatpush1.msra.mxu0 0.0
        %1434 = vmatprep.subr.mxu0 0.0
        %1435 = vmatpush1.msra.mxu0 0.0
        %1436 = vmatprep.subr.mxu0 0.0
        %1437 = vmatpush1.msra.mxu0 0.0
        %1438 = vmatprep.subr.mxu0 0.0
        %1439 = vmatpush1.msra.mxu0 0.0
        %1440 = vmatprep.subr.mxu0 0.0
        %1441 = vmatpush1.msra.mxu0 0.0
        %1442 = vmatprep.subr.mxu0 0.0
        %1443 = vmatpush1.msra.mxu0 0.0
        %1444 = vmatprep.subr.mxu0 0.0
        %1445 = vmatpush1.msra.mxu0 0.0
        %1446 = vmatprep.subr.mxu0 0.0
        %1447 = vmatpush1.msra.mxu0 0.0
        %1448 = vmatprep.subr.mxu0 0.0
        %1449 = vmatpush1.msra.mxu0 0.0
        %1450 = vmatprep.subr.mxu0 0.0
        %1451 = vmatpush1.msra.mxu0 0.0
        %1452 = vmatprep.mubr.f32.mxu0 0.0
        %1453 = vmatmul.mubr.f32.gmra.mrb[0].mxu0 %v1386
        %v1454 = vpop.f32.mrb[0].mxu0
        %v1455 = vadd.f32 %v1383, %v1454
        %v1456 = vpop.f32.mrb[0].mxu0
        %v1457 = vadd.f32 %v1383, %v1456
        %1458 = vdwg.mxu0
        %1459 = vmatprep.subr.mxu0 %v725
        %1460 = vmatpush1.msra.mxu0 %v724
        %1461 = vmatprep.subr.mxu0 0.0
        %1462 = vmatpush1.msra.mxu0 0.0
        %1463 = vmatprep.subr.mxu0 0.0
        %1464 = vmatpush1.msra.mxu0 0.0
        %1465 = vmatprep.subr.mxu0 0.0
        %1466 = vmatpush1.msra.mxu0 0.0
        %1467 = vmatprep.subr.mxu0 0.0
        %1468 = vmatpush1.msra.mxu0 0.0
        %1469 = vmatprep.subr.mxu0 0.0
        %1470 = vmatpush1.msra.mxu0 0.0
        %1471 = vmatprep.subr.mxu0 0.0
        %1472 = vmatpush1.msra.mxu0 0.0
        %1473 = vmatprep.subr.mxu0 0.0
        %1474 = vmatpush1.msra.mxu0 0.0
        %1475 = vmatprep.subr.mxu0 0.0
        %1476 = vmatpush1.msra.mxu0 0.0
        %1477 = vmatprep.subr.mxu0 0.0
        %1478 = vmatpush1.msra.mxu0 0.0
        %1479 = vmatprep.subr.mxu0 0.0
        %1480 = vmatpush1.msra.mxu0 0.0
        %1481 = vmatprep.subr.mxu0 0.0
        %1482 = vmatpush1.msra.mxu0 0.0
        %1483 = vmatprep.subr.mxu0 0.0
        %1484 = vmatpush1.msra.mxu0 0.0
        %1485 = vmatprep.subr.mxu0 0.0
        %1486 = vmatpush1.msra.mxu0 0.0
        %1487 = vmatprep.subr.mxu0 0.0
        %1488 = vmatpush1.msra.mxu0 0.0
        %1489 = vmatprep.subr.mxu0 0.0
        %1490 = vmatpush1.msra.mxu0 0.0
        %1491 = vmatprep.subr.mxu0 0.0
        %1492 = vmatpush1.msra.mxu0 0.0
        %1493 = vmatprep.subr.mxu0 0.0
        %1494 = vmatpush1.msra.mxu0 0.0
        %1495 = vmatprep.subr.mxu0 0.0
        %1496 = vmatpush1.msra.mxu0 0.0
        %1497 = vmatprep.subr.mxu0 0.0
        %1498 = vmatpush1.msra.mxu0 0.0
        %1499 = vmatprep.subr.mxu0 0.0
        %1500 = vmatpush1.msra.mxu0 0.0
        %1501 = vmatprep.subr.mxu0 0.0
        %1502 = vmatpush1.msra.mxu0 0.0
        %1503 = vmatprep.subr.mxu0 0.0
        %1504 = vmatpush1.msra.mxu0 0.0
        %1505 = vmatprep.subr.mxu0 0.0
        %1506 = vmatpush1.msra.mxu0 0.0
        %1507 = vmatprep.subr.mxu0 0.0
        %1508 = vmatpush1.msra.mxu0 0.0
        %1509 = vmatprep.subr.mxu0 0.0
        %1510 = vmatpush1.msra.mxu0 0.0
        %1511 = vmatprep.subr.mxu0 0.0
        %1512 = vmatpush1.msra.mxu0 0.0
        %1513 = vmatprep.subr.mxu0 0.0
        %1514 = vmatpush1.msra.mxu0 0.0
        %1515 = vmatprep.subr.mxu0 0.0
        %1516 = vmatpush1.msra.mxu0 0.0
        %1517 = vmatprep.subr.mxu0 0.0
        %1518 = vmatpush1.msra.mxu0 0.0
        %1519 = vmatprep.subr.mxu0 0.0
        %1520 = vmatpush1.msra.mxu0 0.0
        %1521 = vmatprep.subr.mxu0 0.0
        %1522 = vmatpush1.msra.mxu0 0.0
        %1523 = vmatprep.mubr.f32.mxu0 0.0
        %1524 = vmatmul.mubr.f32.gmra.mrb[0].mxu0 %v1386
        %v1525 = vpop.f32.mrb[0].mxu0
        %v1526 = vadd.f32 %v1383, %v1525
        %v1527 = vpop.f32.mrb[0].mxu0
        %v1528 = vadd.f32 %v1383, %v1527
        %1529 = vdwg.mxu0
        %v1530 = vmax.f32 %v1455, 0.0
        %v1531 = vmax.f32 %v1457, 0.0
        %v1532 = vmax.f32 %v1526, 0.0
        %v1533 = vmax.f32 %v1528, 0.0
        %1534 = vrot.lane.b32.xlu0 %v1530, 17
        %v1535 = vpop.permute.xlu0 %1534
        %1536 = vrot.lane.b32.xlu0 %v1531, 17
        %v1537 = vpop.permute.xlu0 %1536
        %1538 = vrot.lane.b32.xlu0 %v1532, 17
        %v1539 = vpop.permute.xlu0 %1538
        %1540 = vrot.lane.b32.xlu0 %v1533, 17
        %v1541 = vpop.permute.xlu0 %1540
        %v1542 = vlaneseq
        %v1543 = vand.u32 %v1542, 127
        %vm1544 = vcmp.lt.s32.totalorder %v1543, 17
        %v1545 = vsel %vm1544, %v1539, %v1541
        %v1546 = vsel %vm1544, %v1537, %v1539
        %v1547 = vsel %vm1544, %v1535, %v1537
        %v1548 = vsel %vm1544, %v1541, %v1535
        %v1549 = vld [vmem:[#allocation8] sm:$0xff]
        %v1550 = vld [vmem:[#allocation8 + $0x8] sm:$0xff]
        %v1551 = vld [vmem:[#allocation8 + $0x10] sm:$0xff]
        %v1552 = vld [vmem:[#allocation8 + $0x18] sm:$0xff]
        %v1553 = vmul.f32 %v1548, %v1549
        %v1554 = vmul.f32 %v1547, %v1550
        %v1555 = vmul.f32 %v1546, %v1551
        %v1556 = vmul.f32 %v1545, %v1552
        %1557 = vrot.lane.b32.xlu0 %v1530, 16
        %v1558 = vpop.permute.xlu0 %1557
        %1559 = vrot.lane.b32.xlu0 %v1531, 16
        %v1560 = vpop.permute.xlu0 %1559
        %1561 = vrot.lane.b32.xlu0 %v1532, 16
        %v1562 = vpop.permute.xlu0 %1561
        %1563 = vrot.lane.b32.xlu0 %v1533, 16
        %v1564 = vpop.permute.xlu0 %1563
        %vm1565 = vcmp.lt.s32.totalorder %v1543, 16
        %v1566 = vsel %vm1565, %v1562, %v1564
        %v1567 = vsel %vm1565, %v1560, %v1562
        %v1568 = vsel %vm1565, %v1558, %v1560
        %v1569 = vsel %vm1565, %v1564, %v1558
        %s1570 = scalar_lea.vmem [#allocation8], 32
        %v1571 = vld [vmem:[%s1570] sm:$0xff]
        %v1572 = vld [vmem:[%s1570 + $0x8] sm:$0xff]
        %v1573 = vld [vmem:[%s1570 + $0x10] sm:$0xff]
        %v1574 = vld [vmem:[%s1570 + $0x18] sm:$0xff]
        %v1575 = vmul.f32 %v1569, %v1571
        %v1576 = vmul.f32 %v1568, %v1572
        %v1577 = vmul.f32 %v1567, %v1573
        %v1578 = vmul.f32 %v1566, %v1574
        %v1579 = vadd.f32 %v1553, %v1575
        %v1580 = vadd.f32 %v1554, %v1576
        %v1581 = vadd.f32 %v1555, %v1577
        %v1582 = vadd.f32 %v1556, %v1578
        %1583 = vrot.lane.b32.xlu0 %v1530, 15
        %v1584 = vpop.permute.xlu0 %1583
        %1585 = vrot.lane.b32.xlu0 %v1531, 15
        %v1586 = vpop.permute.xlu0 %1585
        %1587 = vrot.lane.b32.xlu0 %v1532, 15
        %v1588 = vpop.permute.xlu0 %1587
        %1589 = vrot.lane.b32.xlu0 %v1533, 15
        %v1590 = vpop.permute.xlu0 %1589
        %vm1591 = vcmp.lt.s32.totalorder %v1543, 15
        %v1592 = vsel %vm1591, %v1588, %v1590
        %v1593 = vsel %vm1591, %v1586, %v1588
        %v1594 = vsel %vm1591, %v1584, %v1586
        %v1595 = vsel %vm1591, %v1590, %v1584
        %s1596 = scalar_lea.vmem [#allocation8], 64
        %v1597 = vld [vmem:[%s1596] sm:$0xff]
        %v1598 = vld [vmem:[%s1596 + $0x8] sm:$0xff]
        %v1599 = vld [vmem:[%s1596 + $0x10] sm:$0xff]
        %v1600 = vld [vmem:[%s1596 + $0x18] sm:$0xff]
        %v1601 = vmul.f32 %v1595, %v1597
        %v1602 = vmul.f32 %v1594, %v1598
        %v1603 = vmul.f32 %v1593, %v1599
        %v1604 = vmul.f32 %v1592, %v1600
        %v1605 = vadd.f32 %v1579, %v1601
        %v1606 = vadd.f32 %v1580, %v1602
        %v1607 = vadd.f32 %v1581, %v1603
        %v1608 = vadd.f32 %v1582, %v1604
        %1609 = vrot.lane.b32.xlu0 %v1530, 1
        %v1610 = vpop.permute.xlu0 %1609
        %1611 = vrot.lane.b32.xlu0 %v1531, 1
        %v1612 = vpop.permute.xlu0 %1611
        %1613 = vrot.lane.b32.xlu0 %v1532, 1
        %v1614 = vpop.permute.xlu0 %1613
        %1615 = vrot.lane.b32.xlu0 %v1533, 1
        %v1616 = vpop.permute.xlu0 %1615
        %vm1617 = vcmp.lt.s32.totalorder %v1543, 1
        %v1618 = vsel %vm1617, %v1614, %v1616
        %v1619 = vsel %vm1617, %v1612, %v1614
        %v1620 = vsel %vm1617, %v1610, %v1612
        %v1621 = vsel %vm1617, %v1616, %v1610
        %s1622 = scalar_lea.vmem [#allocation8], 96
        %v1623 = vld [vmem:[%s1622] sm:$0xff]
        %v1624 = vld [vmem:[%s1622 + $0x8] sm:$0xff]
        %v1625 = vld [vmem:[%s1622 + $0x10] sm:$0xff]
        %v1626 = vld [vmem:[%s1622 + $0x18] sm:$0xff]
        %v1627 = vmul.f32 %v1621, %v1623
        %v1628 = vmul.f32 %v1620, %v1624
        %v1629 = vmul.f32 %v1619, %v1625
        %v1630 = vmul.f32 %v1618, %v1626
        %v1631 = vadd.f32 %v1605, %v1627
        %v1632 = vadd.f32 %v1606, %v1628
        %v1633 = vadd.f32 %v1607, %v1629
        %v1634 = vadd.f32 %v1608, %v1630
        %s1635 = scalar_lea.vmem [#allocation8], 128
        %v1636 = vld [vmem:[%s1635] sm:$0xff]
        %v1637 = vld [vmem:[%s1635 + $0x8] sm:$0xff]
        %v1638 = vld [vmem:[%s1635 + $0x10] sm:$0xff]
        %v1639 = vld [vmem:[%s1635 + $0x18] sm:$0xff]
        %v1640 = vmul.f32 %v1530, %v1636
        %v1641 = vmul.f32 %v1531, %v1637
        %v1642 = vmul.f32 %v1532, %v1638
        %v1643 = vmul.f32 %v1533, %v1639
        %v1644 = vadd.f32 %v1631, %v1640
        %v1645 = vadd.f32 %v1632, %v1641
        %v1646 = vadd.f32 %v1633, %v1642
        %v1647 = vadd.f32 %v1634, %v1643
        %1648 = vrot.lane.b32.xlu0 %v1530, 127
        %v1649 = vpop.permute.xlu0 %1648
        %1650 = vrot.lane.b32.xlu0 %v1531, 127
        %v1651 = vpop.permute.xlu0 %1650
        %1652 = vrot.lane.b32.xlu0 %v1532, 127
        %v1653 = vpop.permute.xlu0 %1652
        %1654 = vrot.lane.b32.xlu0 %v1533, 127
        %v1655 = vpop.permute.xlu0 %1654
        %vm1656 = vcmp.lt.s32.totalorder %v1543, 127
        %v1657 = vsel %vm1656, %v1653, %v1655
        %v1658 = vsel %vm1656, %v1651, %v1653
        %v1659 = vsel %vm1656, %v1649, %v1651
        %v1660 = vsel %vm1656, %v1655, %v1649
        %s1661 = scalar_lea.vmem [#allocation8], 160
        %v1662 = vld [vmem:[%s1661] sm:$0xff]
        %v1663 = vld [vmem:[%s1661 + $0x8] sm:$0xff]
        %v1664 = vld [vmem:[%s1661 + $0x10] sm:$0xff]
        %v1665 = vld [vmem:[%s1661 + $0x18] sm:$0xff]
        %v1666 = vmul.f32 %v1659, %v1662
        %v1667 = vmul.f32 %v1658, %v1663
        %v1668 = vmul.f32 %v1657, %v1664
        %v1669 = vmul.f32 %v1660, %v1665
        %v1670 = vadd.f32 %v1644, %v1666
        %v1671 = vadd.f32 %v1645, %v1667
        %v1672 = vadd.f32 %v1646, %v1668
        %v1673 = vadd.f32 %v1647, %v1669
        %1674 = vrot.lane.b32.xlu0 %v1530, 113
        %v1675 = vpop.permute.xlu0 %1674
        %1676 = vrot.lane.b32.xlu0 %v1531, 113
        %v1677 = vpop.permute.xlu0 %1676
        %1678 = vrot.lane.b32.xlu0 %v1532, 113
        %v1679 = vpop.permute.xlu0 %1678
        %1680 = vrot.lane.b32.xlu0 %v1533, 113
        %v1681 = vpop.permute.xlu0 %1680
        %vm1682 = vcmp.lt.s32.totalorder %v1543, 113
        %v1683 = vsel %vm1682, %v1679, %v1681
        %v1684 = vsel %vm1682, %v1677, %v1679
        %v1685 = vsel %vm1682, %v1675, %v1677
        %v1686 = vsel %vm1682, %v1681, %v1675
        %s1687 = scalar_lea.vmem [#allocation8], 192
        %v1688 = vld [vmem:[%s1687] sm:$0xff]
        %v1689 = vld [vmem:[%s1687 + $0x8] sm:$0xff]
        %v1690 = vld [vmem:[%s1687 + $0x10] sm:$0xff]
        %v1691 = vld [vmem:[%s1687 + $0x18] sm:$0xff]
        %v1692 = vmul.f32 %v1685, %v1688
        %v1693 = vmul.f32 %v1684, %v1689
        %v1694 = vmul.f32 %v1683, %v1690
        %v1695 = vmul.f32 %v1686, %v1691
        %v1696 = vadd.f32 %v1670, %v1692
        %v1697 = vadd.f32 %v1671, %v1693
        %v1698 = vadd.f32 %v1672, %v1694
        %v1699 = vadd.f32 %v1673, %v1695
        %1700 = vrot.lane.b32.xlu0 %v1530, 112
        %v1701 = vpop.permute.xlu0 %1700
        %1702 = vrot.lane.b32.xlu0 %v1531, 112
        %v1703 = vpop.permute.xlu0 %1702
        %1704 = vrot.lane.b32.xlu0 %v1532, 112
        %v1705 = vpop.permute.xlu0 %1704
        %1706 = vrot.lane.b32.xlu0 %v1533, 112
        %v1707 = vpop.permute.xlu0 %1706
        %vm1708 = vcmp.lt.s32.totalorder %v1543, 112
        %v1709 = vsel %vm1708, %v1705, %v1707
        %v1710 = vsel %vm1708, %v1703, %v1705
        %v1711 = vsel %vm1708, %v1701, %v1703
        %v1712 = vsel %vm1708, %v1707, %v1701
        %s1713 = scalar_lea.vmem [#allocation8], 224
        %v1714 = vld [vmem:[%s1713] sm:$0xff]
        %v1715 = vld [vmem:[%s1713 + $0x8] sm:$0xff]
        %v1716 = vld [vmem:[%s1713 + $0x10] sm:$0xff]
        %v1717 = vld [vmem:[%s1713 + $0x18] sm:$0xff]
        %v1718 = vmul.f32 %v1711, %v1714
        %v1719 = vmul.f32 %v1710, %v1715
        %v1720 = vmul.f32 %v1709, %v1716
        %v1721 = vmul.f32 %v1712, %v1717
        %v1722 = vadd.f32 %v1696, %v1718
        %v1723 = vadd.f32 %v1697, %v1719
        %v1724 = vadd.f32 %v1698, %v1720
        %v1725 = vadd.f32 %v1699, %v1721
        %1726 = vrot.lane.b32.xlu0 %v1530, 111
        %v1727 = vpop.permute.xlu0 %1726
        %1728 = vrot.lane.b32.xlu0 %v1531, 111
        %v1729 = vpop.permute.xlu0 %1728
        %1730 = vrot.lane.b32.xlu0 %v1532, 111
        %v1731 = vpop.permute.xlu0 %1730
        %1732 = vrot.lane.b32.xlu0 %v1533, 111
        %v1733 = vpop.permute.xlu0 %1732
        %vm1734 = vcmp.lt.s32.totalorder %v1543, 111
        %v1735 = vsel %vm1734, %v1731, %v1733
        %v1736 = vsel %vm1734, %v1729, %v1731
        %v1737 = vsel %vm1734, %v1727, %v1729
        %v1738 = vsel %vm1734, %v1733, %v1727
        %s1739 = scalar_lea.vmem [#allocation8], 256
        %v1740 = vld [vmem:[%s1739] sm:$0xff]
        %v1741 = vld [vmem:[%s1739 + $0x8] sm:$0xff]
        %v1742 = vld [vmem:[%s1739 + $0x10] sm:$0xff]
        %v1743 = vld [vmem:[%s1739 + $0x18] sm:$0xff]
        %v1744 = vmul.f32 %v1737, %v1740
        %v1745 = vmul.f32 %v1736, %v1741
        %v1746 = vmul.f32 %v1735, %v1742
        %v1747 = vmul.f32 %v1738, %v1743
        %v1748 = vadd.f32 %v1722, %v1744
        %v1749 = vadd.f32 %v1723, %v1745
        %v1750 = vadd.f32 %v1724, %v1746
        %v1751 = vadd.f32 %v1725, %v1747
        %1752 = vset.pattern.permute.xlu0 2
        %1753 = vperm.xlu0 %1752, %v475
        %v1754 = vpop.permute.xlu0 %1753
        %v1756 = vadd.f32 %v1748, %v1754
        %v1757 = vadd.f32 %v1749, %v1754
        %v1758 = vadd.f32 %v1750, %v1754
        %v1759 = vadd.f32 %v1751, %v1754
        %v1760 = vmax.f32 %v1756, 0.0
        %v1761 = vmax.f32 %v1757, 0.0
        %v1762 = vmax.f32 %v1758, 0.0
        %v1763 = vmax.f32 %v1759, 0.0
        %v1764 = vmul.f32 %v1530, %v1292
        %v1765 = vmul.f32 %v1531, %v1294
        %v1766 = vmul.f32 %v1532, %v1369
        %v1767 = vmul.f32 %v1533, %v1371
        %v1768 = vmul.f32 %v1760, %v1298
        %v1769 = vmul.f32 %v1761, %v1300
        %v1770 = vmul.f32 %v1762, %v1375
        %v1771 = vmul.f32 %v1763, %v1377
        %s1772 = scalar_lea.vmem [#allocation5], 48
        %v1773 = vld [vmem:[%s1772] sm:$0xff]
        %1774 = vset.pattern.permute.xlu0 6
        %1775 = vperm.xlu0 %1774, %v475
        %v1776 = vpop.permute.xlu0 %1775
        %v1779 = vsel %vm489, %v1773, 0
        %1781 = vmatprep.subr.mxu0 %v1765
        %1782 = vmatpush1.msra.mxu0 %v1764
        %1783 = vmatprep.subr.mxu0 %v1769
        %1784 = vmatpush1.msra.mxu0 %v1768
        %1785 = vmatprep.subr.mxu0 0.0
        %1786 = vmatpush1.msra.mxu0 0.0
        %1787 = vmatprep.subr.mxu0 0.0
        %1788 = vmatpush1.msra.mxu0 0.0
        %1789 = vmatprep.subr.mxu0 0.0
        %1790 = vmatpush1.msra.mxu0 0.0
        %1791 = vmatprep.subr.mxu0 0.0
        %1792 = vmatpush1.msra.mxu0 0.0
        %1793 = vmatprep.subr.mxu0 0.0
        %1794 = vmatpush1.msra.mxu0 0.0
        %1795 = vmatprep.subr.mxu0 0.0
        %1796 = vmatpush1.msra.mxu0 0.0
        %1797 = vmatprep.subr.mxu0 0.0
        %1798 = vmatpush1.msra.mxu0 0.0
        %1799 = vmatprep.subr.mxu0 0.0
        %1800 = vmatpush1.msra.mxu0 0.0
        %1801 = vmatprep.subr.mxu0 0.0
        %1802 = vmatpush1.msra.mxu0 0.0
        %1803 = vmatprep.subr.mxu0 0.0
        %1804 = vmatpush1.msra.mxu0 0.0
        %1805 = vmatprep.subr.mxu0 0.0
        %1806 = vmatpush1.msra.mxu0 0.0
        %1807 = vmatprep.subr.mxu0 0.0
        %1808 = vmatpush1.msra.mxu0 0.0
        %1809 = vmatprep.subr.mxu0 0.0
        %1810 = vmatpush1.msra.mxu0 0.0
        %1811 = vmatprep.subr.mxu0 0.0
        %1812 = vmatpush1.msra.mxu0 0.0
        %1813 = vmatprep.subr.mxu0 0.0
        %1814 = vmatpush1.msra.mxu0 0.0
        %1815 = vmatprep.subr.mxu0 0.0
        %1816 = vmatpush1.msra.mxu0 0.0
        %1817 = vmatprep.subr.mxu0 0.0
        %1818 = vmatpush1.msra.mxu0 0.0
        %1819 = vmatprep.subr.mxu0 0.0
        %1820 = vmatpush1.msra.mxu0 0.0
        %1821 = vmatprep.subr.mxu0 0.0
        %1822 = vmatpush1.msra.mxu0 0.0
        %1823 = vmatprep.subr.mxu0 0.0
        %1824 = vmatpush1.msra.mxu0 0.0
        %1825 = vmatprep.subr.mxu0 0.0
        %1826 = vmatpush1.msra.mxu0 0.0
        %1827 = vmatprep.subr.mxu0 0.0
        %1828 = vmatpush1.msra.mxu0 0.0
        %1829 = vmatprep.subr.mxu0 0.0
        %1830 = vmatpush1.msra.mxu0 0.0
        %1831 = vmatprep.subr.mxu0 0.0
        %1832 = vmatpush1.msra.mxu0 0.0
        %1833 = vmatprep.subr.mxu0 0.0
        %1834 = vmatpush1.msra.mxu0 0.0
        %1835 = vmatprep.subr.mxu0 0.0
        %1836 = vmatpush1.msra.mxu0 0.0
        %1837 = vmatprep.subr.mxu0 0.0
        %1838 = vmatpush1.msra.mxu0 0.0
        %1839 = vmatprep.subr.mxu0 0.0
        %1840 = vmatpush1.msra.mxu0 0.0
        %1841 = vmatprep.subr.mxu0 0.0
        %1842 = vmatpush1.msra.mxu0 0.0
        %1843 = vmatprep.subr.mxu0 0.0
        %1844 = vmatpush1.msra.mxu0 0.0
        %1845 = vmatprep.mubr.f32.mxu0 0.0
        %1846 = vmatmul.mubr.f32.gmra.mrb[0].mxu0 %v1779
        %v1847 = vpop.f32.mrb[0].mxu0
        %v1848 = vadd.f32 %v1776, %v1847
        %v1849 = vpop.f32.mrb[0].mxu0
        %v1850 = vadd.f32 %v1776, %v1849
        %1851 = vdwg.mxu0
        %1852 = vmatprep.subr.mxu0 %v1767
        %1853 = vmatpush1.msra.mxu0 %v1766
        %1854 = vmatprep.subr.mxu0 %v1771
        %1855 = vmatpush1.msra.mxu0 %v1770
        %1856 = vmatprep.subr.mxu0 0.0
        %1857 = vmatpush1.msra.mxu0 0.0
        %1858 = vmatprep.subr.mxu0 0.0
        %1859 = vmatpush1.msra.mxu0 0.0
        %1860 = vmatprep.subr.mxu0 0.0
        %1861 = vmatpush1.msra.mxu0 0.0
        %1862 = vmatprep.subr.mxu0 0.0
        %1863 = vmatpush1.msra.mxu0 0.0
        %1864 = vmatprep.subr.mxu0 0.0
        %1865 = vmatpush1.msra.mxu0 0.0
        %1866 = vmatprep.subr.mxu0 0.0
        %1867 = vmatpush1.msra.mxu0 0.0
        %1868 = vmatprep.subr.mxu0 0.0
        %1869 = vmatpush1.msra.mxu0 0.0
        %1870 = vmatprep.subr.mxu0 0.0
        %1871 = vmatpush1.msra.mxu0 0.0
        %1872 = vmatprep.subr.mxu0 0.0
        %1873 = vmatpush1.msra.mxu0 0.0
        %1874 = vmatprep.subr.mxu0 0.0
        %1875 = vmatpush1.msra.mxu0 0.0
        %1876 = vmatprep.subr.mxu0 0.0
        %1877 = vmatpush1.msra.mxu0 0.0
        %1878 = vmatprep.subr.mxu0 0.0
        %1879 = vmatpush1.msra.mxu0 0.0
        %1880 = vmatprep.subr.mxu0 0.0
        %1881 = vmatpush1.msra.mxu0 0.0
        %1882 = vmatprep.subr.mxu0 0.0
        %1883 = vmatpush1.msra.mxu0 0.0
        %1884 = vmatprep.subr.mxu0 0.0
        %1885 = vmatpush1.msra.mxu0 0.0
        %1886 = vmatprep.subr.mxu0 0.0
        %1887 = vmatpush1.msra.mxu0 0.0
        %1888 = vmatprep.subr.mxu0 0.0
        %1889 = vmatpush1.msra.mxu0 0.0
        %1890 = vmatprep.subr.mxu0 0.0
        %1891 = vmatpush1.msra.mxu0 0.0
        %1892 = vmatprep.subr.mxu0 0.0
        %1893 = vmatpush1.msra.mxu0 0.0
        %1894 = vmatprep.subr.mxu0 0.0
        %1895 = vmatpush1.msra.mxu0 0.0
        %1896 = vmatprep.subr.mxu0 0.0
        %1897 = vmatpush1.msra.mxu0 0.0
        %1898 = vmatprep.subr.mxu0 0.0
        %1899 = vmatpush1.msra.mxu0 0.0
        %1900 = vmatprep.subr.mxu0 0.0
        %1901 = vmatpush1.msra.mxu0 0.0
        %1902 = vmatprep.subr.mxu0 0.0
        %1903 = vmatpush1.msra.mxu0 0.0
        %1904 = vmatprep.subr.mxu0 0.0
        %1905 = vmatpush1.msra.mxu0 0.0
        %1906 = vmatprep.subr.mxu0 0.0
        %1907 = vmatpush1.msra.mxu0 0.0
        %1908 = vmatprep.subr.mxu0 0.0
        %1909 = vmatpush1.msra.mxu0 0.0
        %1910 = vmatprep.subr.mxu0 0.0
        %1911 = vmatpush1.msra.mxu0 0.0
        %1912 = vmatprep.subr.mxu0 0.0
        %1913 = vmatpush1.msra.mxu0 0.0
        %1914 = vmatprep.subr.mxu0 0.0
        %1915 = vmatpush1.msra.mxu0 0.0
        %1916 = vmatprep.mubr.f32.mxu0 0.0
        %1917 = vmatmul.mubr.f32.gmra.mrb[0].mxu0 %v1779
        %v1918 = vpop.f32.mrb[0].mxu0
        %v1919 = vadd.f32 %v1776, %v1918
        %v1920 = vpop.f32.mrb[0].mxu0
        %v1921 = vadd.f32 %v1776, %v1920
        %1922 = vdwg.mxu0
        %1923 = vrot.lane.b32.xlu0 %v1848, 17
        %v1924 = vpop.permute.xlu0 %1923
        %1925 = vrot.lane.b32.xlu0 %v1850, 17
        %v1926 = vpop.permute.xlu0 %1925
        %1927 = vrot.lane.b32.xlu0 %v1919, 17
        %v1928 = vpop.permute.xlu0 %1927
        %1929 = vrot.lane.b32.xlu0 %v1921, 17
        %v1930 = vpop.permute.xlu0 %1929
        %v1931 = vsel %vm1544, %v1928, %v1930
        %v1932 = vsel %vm1544, %v1926, %v1928
        %v1933 = vsel %vm1544, %v1924, %v1926
        %v1934 = vsel %vm1544, %v1930, %v1924
        %v1935 = vld [vmem:[#allocation13] sm:$0xff]
        %v1936 = vld [vmem:[#allocation13 + $0x8] sm:$0xff]
        %v1939 = vcombine.high %v1935, %v1935
        %v1940 = vcombine.high %v1936, %v1936
        %v1943 = vmul.f32 %v1934, %v1935
        %v1944 = vmul.f32 %v1933, %v1939
        %v1945 = vmul.f32 %v1932, %v1936
        %v1946 = vmul.f32 %v1931, %v1940
        %1947 = vrot.lane.b32.xlu0 %v1848, 16
        %v1948 = vpop.permute.xlu0 %1947
        %1949 = vrot.lane.b32.xlu0 %v1850, 16
        %v1950 = vpop.permute.xlu0 %1949
        %1951 = vrot.lane.b32.xlu0 %v1919, 16
        %v1952 = vpop.permute.xlu0 %1951
        %1953 = vrot.lane.b32.xlu0 %v1921, 16
        %v1954 = vpop.permute.xlu0 %1953
        %v1955 = vsel %vm1565, %v1952, %v1954
        %v1956 = vsel %vm1565, %v1950, %v1952
        %v1957 = vsel %vm1565, %v1948, %v1950
        %v1958 = vsel %vm1565, %v1954, %v1948
        %s1959 = scalar_lea.vmem [#allocation13], 16
        %v1960 = vld [vmem:[%s1959] sm:$0xff]
        %v1961 = vld [vmem:[%s1959 + $0x8] sm:$0xff]
        %v1964 = vcombine.high %v1960, %v1960
        %v1965 = vcombine.high %v1961, %v1961
        %v1968 = vmul.f32 %v1958, %v1960
        %v1969 = vmul.f32 %v1957, %v1964
        %v1970 = vmul.f32 %v1956, %v1961
        %v1971 = vmul.f32 %v1955, %v1965
        %v1972 = vadd.f32 %v1943, %v1968
        %v1973 = vadd.f32 %v1944, %v1969
        %v1974 = vadd.f32 %v1945, %v1970
        %v1975 = vadd.f32 %v1946, %v1971
        %1976 = vrot.lane.b32.xlu0 %v1848, 15
        %v1977 = vpop.permute.xlu0 %1976
        %1978 = vrot.lane.b32.xlu0 %v1850, 15
        %v1979 = vpop.permute.xlu0 %1978
        %1980 = vrot.lane.b32.xlu0 %v1919, 15
        %v1981 = vpop.permute.xlu0 %1980
        %1982 = vrot.lane.b32.xlu0 %v1921, 15
        %v1983 = vpop.permute.xlu0 %1982
        %v1984 = vsel %vm1591, %v1981, %v1983
        %v1985 = vsel %vm1591, %v1979, %v1981
        %v1986 = vsel %vm1591, %v1977, %v1979
        %v1987 = vsel %vm1591, %v1983, %v1977
        %s1988 = scalar_lea.vmem [#allocation13], 32
        %v1989 = vld [vmem:[%s1988] sm:$0xff]
        %v1990 = vld [vmem:[%s1988 + $0x8] sm:$0xff]
        %v1993 = vcombine.high %v1989, %v1989
        %v1994 = vcombine.high %v1990, %v1990
        %v1997 = vmul.f32 %v1987, %v1989
        %v1998 = vmul.f32 %v1986, %v1993
        %v1999 = vmul.f32 %v1985, %v1990
        %v2000 = vmul.f32 %v1984, %v1994
        %v2001 = vadd.f32 %v1972, %v1997
        %v2002 = vadd.f32 %v1973, %v1998
        %v2003 = vadd.f32 %v1974, %v1999
        %v2004 = vadd.f32 %v1975, %v2000
        %2005 = vrot.lane.b32.xlu0 %v1848, 1
        %v2006 = vpop.permute.xlu0 %2005
        %2007 = vrot.lane.b32.xlu0 %v1850, 1
        %v2008 = vpop.permute.xlu0 %2007
        %2009 = vrot.lane.b32.xlu0 %v1919, 1
        %v2010 = vpop.permute.xlu0 %2009
        %2011 = vrot.lane.b32.xlu0 %v1921, 1
        %v2012 = vpop.permute.xlu0 %2011
        %v2013 = vsel %vm1617, %v2010, %v2012
        %v2014 = vsel %vm1617, %v2008, %v2010
        %v2015 = vsel %vm1617, %v2006, %v2008
        %v2016 = vsel %vm1617, %v2012, %v2006
        %s2017 = scalar_lea.vmem [#allocation13], 48
        %v2018 = vld [vmem:[%s2017] sm:$0xff]
        %v2019 = vld [vmem:[%s2017 + $0x8] sm:$0xff]
        %v2022 = vcombine.high %v2018, %v2018
        %v2023 = vcombine.high %v2019, %v2019
        %v2026 = vmul.f32 %v2016, %v2018
        %v2027 = vmul.f32 %v2015, %v2022
        %v2028 = vmul.f32 %v2014, %v2019
        %v2029 = vmul.f32 %v2013, %v2023
        %v2030 = vadd.f32 %v2001, %v2026
        %v2031 = vadd.f32 %v2002, %v2027
        %v2032 = vadd.f32 %v2003, %v2028
        %v2033 = vadd.f32 %v2004, %v2029
        %s2034 = scalar_lea.vmem [#allocation13], 64
        %v2035 = vld [vmem:[%s2034] sm:$0xff]
        %v2036 = vld [vmem:[%s2034 + $0x8] sm:$0xff]
        %v2039 = vcombine.high %v2035, %v2035
        %v2040 = vcombine.high %v2036, %v2036
        %v2043 = vmul.f32 %v1848, %v2035
        %v2044 = vmul.f32 %v1850, %v2039
        %v2045 = vmul.f32 %v1919, %v2036
        %v2046 = vmul.f32 %v1921, %v2040
        %v2047 = vadd.f32 %v2030, %v2043
        %v2048 = vadd.f32 %v2031, %v2044
        %v2049 = vadd.f32 %v2032, %v2045
        %v2050 = vadd.f32 %v2033, %v2046
        %2051 = vrot.lane.b32.xlu0 %v1848, 127
        %v2052 = vpop.permute.xlu0 %2051
        %2053 = vrot.lane.b32.xlu0 %v1850, 127
        %v2054 = vpop.permute.xlu0 %2053
        %2055 = vrot.lane.b32.xlu0 %v1919, 127
        %v2056 = vpop.permute.xlu0 %2055
        %2057 = vrot.lane.b32.xlu0 %v1921, 127
        %v2058 = vpop.permute.xlu0 %2057
        %v2059 = vsel %vm1656, %v2056, %v2058
        %v2060 = vsel %vm1656, %v2054, %v2056
        %v2061 = vsel %vm1656, %v2052, %v2054
        %v2062 = vsel %vm1656, %v2058, %v2052
        %s2063 = scalar_lea.vmem [#allocation13], 80
        %v2064 = vld [vmem:[%s2063] sm:$0xff]
        %v2065 = vld [vmem:[%s2063 + $0x8] sm:$0xff]
        %v2068 = vcombine.high %v2064, %v2064
        %v2069 = vcombine.high %v2065, %v2065
        %v2072 = vmul.f32 %v2061, %v2064
        %v2073 = vmul.f32 %v2060, %v2068
        %v2074 = vmul.f32 %v2059, %v2065
        %v2075 = vmul.f32 %v2062, %v2069
        %v2076 = vadd.f32 %v2047, %v2072
        %v2077 = vadd.f32 %v2048, %v2073
        %v2078 = vadd.f32 %v2049, %v2074
        %v2079 = vadd.f32 %v2050, %v2075
        %2080 = vrot.lane.b32.xlu0 %v1848, 113
        %v2081 = vpop.permute.xlu0 %2080
        %2082 = vrot.lane.b32.xlu0 %v1850, 113
        %v2083 = vpop.permute.xlu0 %2082
        %2084 = vrot.lane.b32.xlu0 %v1919, 113
        %v2085 = vpop.permute.xlu0 %2084
        %2086 = vrot.lane.b32.xlu0 %v1921, 113
        %v2087 = vpop.permute.xlu0 %2086
        %v2088 = vsel %vm1682, %v2085, %v2087
        %v2089 = vsel %vm1682, %v2083, %v2085
        %v2090 = vsel %vm1682, %v2081, %v2083
        %v2091 = vsel %vm1682, %v2087, %v2081
        %s2092 = scalar_lea.vmem [#allocation13], 96
        %v2093 = vld [vmem:[%s2092] sm:$0xff]
        %v2094 = vld [vmem:[%s2092 + $0x8] sm:$0xff]
        %v2097 = vcombine.high %v2093, %v2093
        %v2098 = vcombine.high %v2094, %v2094
        %v2101 = vmul.f32 %v2090, %v2093
        %v2102 = vmul.f32 %v2089, %v2097
        %v2103 = vmul.f32 %v2088, %v2094
        %v2104 = vmul.f32 %v2091, %v2098
        %v2105 = vadd.f32 %v2076, %v2101
        %v2106 = vadd.f32 %v2077, %v2102
        %v2107 = vadd.f32 %v2078, %v2103
        %v2108 = vadd.f32 %v2079, %v2104
        %2109 = vrot.lane.b32.xlu0 %v1848, 112
        %v2110 = vpop.permute.xlu0 %2109
        %2111 = vrot.lane.b32.xlu0 %v1850, 112
        %v2112 = vpop.permute.xlu0 %2111
        %2113 = vrot.lane.b32.xlu0 %v1919, 112
        %v2114 = vpop.permute.xlu0 %2113
        %2115 = vrot.lane.b32.xlu0 %v1921, 112
        %v2116 = vpop.permute.xlu0 %2115
        %v2117 = vsel %vm1708, %v2114, %v2116
        %v2118 = vsel %vm1708, %v2112, %v2114
        %v2119 = vsel %vm1708, %v2110, %v2112
        %v2120 = vsel %vm1708, %v2116, %v2110
        %s2121 = scalar_lea.vmem [#allocation13], 112
        %v2122 = vld [vmem:[%s2121] sm:$0xff]
        %v2123 = vld [vmem:[%s2121 + $0x8] sm:$0xff]
        %v2126 = vcombine.high %v2122, %v2122
        %v2127 = vcombine.high %v2123, %v2123
        %v2130 = vmul.f32 %v2119, %v2122
        %v2131 = vmul.f32 %v2118, %v2126
        %v2132 = vmul.f32 %v2117, %v2123
        %v2133 = vmul.f32 %v2120, %v2127
        %v2134 = vadd.f32 %v2105, %v2130
        %v2135 = vadd.f32 %v2106, %v2131
        %v2136 = vadd.f32 %v2107, %v2132
        %v2137 = vadd.f32 %v2108, %v2133
        %2138 = vrot.lane.b32.xlu0 %v1848, 111
        %v2139 = vpop.permute.xlu0 %2138
        %2140 = vrot.lane.b32.xlu0 %v1850, 111
        %v2141 = vpop.permute.xlu0 %2140
        %2142 = vrot.lane.b32.xlu0 %v1919, 111
        %v2143 = vpop.permute.xlu0 %2142
        %2144 = vrot.lane.b32.xlu0 %v1921, 111
        %v2145 = vpop.permute.xlu0 %2144
        %v2146 = vsel %vm1734, %v2143, %v2145
        %v2147 = vsel %vm1734, %v2141, %v2143
        %v2148 = vsel %vm1734, %v2139, %v2141
        %v2149 = vsel %vm1734, %v2145, %v2139
        %s2150 = scalar_lea.vmem [#allocation13], 128
        %v2151 = vld [vmem:[%s2150] sm:$0xff]
        %v2152 = vld [vmem:[%s2150 + $0x8] sm:$0xff]
        %v2155 = vcombine.high %v2151, %v2151
        %v2156 = vcombine.high %v2152, %v2152
        %v2159 = vmul.f32 %v2148, %v2151
        %v2160 = vmul.f32 %v2147, %v2155
        %v2161 = vmul.f32 %v2146, %v2152
        %v2162 = vmul.f32 %v2149, %v2156
        %v2163 = vadd.f32 %v2134, %v2159
        %v2164 = vadd.f32 %v2135, %v2160
        %v2165 = vadd.f32 %v2136, %v2161
        %v2166 = vadd.f32 %v2137, %v2162
        %2167 = vset.pattern.permute.xlu0 7
        %2168 = vperm.xlu0 %2167, %v475
        %v2169 = vpop.permute.xlu0 %2168
        %v2171 = vadd.f32 %v2163, %v2169
        %v2172 = vadd.f32 %v2164, %v2169
        %v2173 = vadd.f32 %v2165, %v2169
        %v2174 = vadd.f32 %v2166, %v2169
        %v2179 = vrot.slane %v2171, 4
        %v2180 = vrot.slane %v2172, 4
        %v2181 = vrot.slane %v2173, 4
        %v2182 = vrot.slane %v2174, 4
        %vm2187 = vcmask 1043456
        %v2188 = vsel %vm2187, %v1848, %v2179
        %v2189 = vsel %vm2187, %v1850, %v2180
        %v2190 = vsel %vm2187, %v1919, %v2181
        %v2191 = vsel %vm2187, %v1921, %v2182
        %s2192 = scalar_lea.vmem [#allocation5], 64
        %v2193 = vld [vmem:[%s2192] sm:$0xff]
        %v2194 = vld [vmem:[%s2192 + $0x8] sm:$0xff]
        %s2195 = scalar_lea.vmem [#allocation5], 80
        %v2196 = vld [vmem:[%s2195] sm:$0xff]
        %v2197 = vld [vmem:[%s2195 + $0x8] sm:$0xff]
        %v2199 = vsel %vm945, %v2196, 0
        %v2202 = vsel %vm945, %v2197, 0
        %2204 = vmatprep.subr.mxu0 %v2189
        %2205 = vmatpush1.msra.mxu0 %v2188
        %2206 = vmatprep.subr.mxu0 0.0
        %2207 = vmatpush1.msra.mxu0 0.0
        %2208 = vmatprep.subr.mxu0 0.0
        %2209 = vmatpush1.msra.mxu0 0.0
        %2210 = vmatprep.subr.mxu0 0.0
        %2211 = vmatpush1.msra.mxu0 0.0
        %2212 = vmatprep.subr.mxu0 0.0
        %2213 = vmatpush1.msra.mxu0 0.0
        %2214 = vmatprep.subr.mxu0 0.0
        %2215 = vmatpush1.msra.mxu0 0.0
        %2216 = vmatprep.subr.mxu0 0.0
        %2217 = vmatpush1.msra.mxu0 0.0
        %2218 = vmatprep.subr.mxu0 0.0
        %2219 = vmatpush1.msra.mxu0 0.0
        %2220 = vmatprep.subr.mxu0 0.0
        %2221 = vmatpush1.msra.mxu0 0.0
        %2222 = vmatprep.subr.mxu0 0.0
        %2223 = vmatpush1.msra.mxu0 0.0
        %2224 = vmatprep.subr.mxu0 0.0
        %2225 = vmatpush1.msra.mxu0 0.0
        %2226 = vmatprep.subr.mxu0 0.0
        %2227 = vmatpush1.msra.mxu0 0.0
        %2228 = vmatprep.subr.mxu0 0.0
        %2229 = vmatpush1.msra.mxu0 0.0
        %2230 = vmatprep.subr.mxu0 0.0
        %2231 = vmatpush1.msra.mxu0 0.0
        %2232 = vmatprep.subr.mxu0 0.0
        %2233 = vmatpush1.msra.mxu0 0.0
        %2234 = vmatprep.subr.mxu0 0.0
        %2235 = vmatpush1.msra.mxu0 0.0
        %2236 = vmatprep.subr.mxu0 0.0
        %2237 = vmatpush1.msra.mxu0 0.0
        %2238 = vmatprep.subr.mxu0 0.0
        %2239 = vmatpush1.msra.mxu0 0.0
        %2240 = vmatprep.subr.mxu0 0.0
        %2241 = vmatpush1.msra.mxu0 0.0
        %2242 = vmatprep.subr.mxu0 0.0
        %2243 = vmatpush1.msra.mxu0 0.0
        %2244 = vmatprep.subr.mxu0 0.0
        %2245 = vmatpush1.msra.mxu0 0.0
        %2246 = vmatprep.subr.mxu0 0.0
        %2247 = vmatpush1.msra.mxu0 0.0
        %2248 = vmatprep.subr.mxu0 0.0
        %2249 = vmatpush1.msra.mxu0 0.0
        %2250 = vmatprep.subr.mxu0 0.0
        %2251 = vmatpush1.msra.mxu0 0.0
        %2252 = vmatprep.subr.mxu0 0.0
        %2253 = vmatpush1.msra.mxu0 0.0
        %2254 = vmatprep.subr.mxu0 0.0
        %2255 = vmatpush1.msra.mxu0 0.0
        %2256 = vmatprep.subr.mxu0 0.0
        %2257 = vmatpush1.msra.mxu0 0.0
        %2258 = vmatprep.subr.mxu0 0.0
        %2259 = vmatpush1.msra.mxu0 0.0
        %2260 = vmatprep.subr.mxu0 0.0
        %2261 = vmatpush1.msra.mxu0 0.0
        %2262 = vmatprep.subr.mxu0 0.0
        %2263 = vmatpush1.msra.mxu0 0.0
        %2264 = vmatprep.subr.mxu0 0.0
        %2265 = vmatpush1.msra.mxu0 0.0
        %2266 = vmatprep.subr.mxu0 0.0
        %2267 = vmatpush1.msra.mxu0 0.0
        %2268 = vmatprep.mubr.f32.mxu0 0.0
        %2269 = vmatmul.mubr.f32.gmra.mrb[0].mxu0 %v2199
        %v2270 = vpop.f32.mrb[0].mxu0
        %v2271 = vadd.f32 0.0, %v2270
        %v2272 = vpop.f32.mrb[0].mxu0
        %v2273 = vadd.f32 0.0, %v2272
        %2274 = vmatprep.mubr.f32.mxu0 0.0
        %2275 = vmatmul.mubr.f32.gmra.mrb[0].mxu0 %v2202
        %v2276 = vpop.f32.mrb[0].mxu0
        %v2277 = vadd.f32 0.0, %v2276
        %v2278 = vpop.f32.mrb[0].mxu0
        %v2279 = vadd.f32 0.0, %v2278
        %2280 = vdwg.mxu0
        %2281 = vmatprep.subr.mxu0 %v2191
        %2282 = vmatpush1.msra.mxu0 %v2190
        %2283 = vmatprep.subr.mxu0 0.0
        %2284 = vmatpush1.msra.mxu0 0.0
        %2285 = vmatprep.subr.mxu0 0.0
        %2286 = vmatpush1.msra.mxu0 0.0
        %2287 = vmatprep.subr.mxu0 0.0
        %2288 = vmatpush1.msra.mxu0 0.0
        %2289 = vmatprep.subr.mxu0 0.0
        %2290 = vmatpush1.msra.mxu0 0.0
        %2291 = vmatprep.subr.mxu0 0.0
        %2292 = vmatpush1.msra.mxu0 0.0
        %2293 = vmatprep.subr.mxu0 0.0
        %2294 = vmatpush1.msra.mxu0 0.0
        %2295 = vmatprep.subr.mxu0 0.0
        %2296 = vmatpush1.msra.mxu0 0.0
        %2297 = vmatprep.subr.mxu0 0.0
        %2298 = vmatpush1.msra.mxu0 0.0
        %2299 = vmatprep.subr.mxu0 0.0
        %2300 = vmatpush1.msra.mxu0 0.0
        %2301 = vmatprep.subr.mxu0 0.0
        %2302 = vmatpush1.msra.mxu0 0.0
        %2303 = vmatprep.subr.mxu0 0.0
        %2304 = vmatpush1.msra.mxu0 0.0
        %2305 = vmatprep.subr.mxu0 0.0
        %2306 = vmatpush1.msra.mxu0 0.0
        %2307 = vmatprep.subr.mxu0 0.0
        %2308 = vmatpush1.msra.mxu0 0.0
        %2309 = vmatprep.subr.mxu0 0.0
        %2310 = vmatpush1.msra.mxu0 0.0
        %2311 = vmatprep.subr.mxu0 0.0
        %2312 = vmatpush1.msra.mxu0 0.0
        %2313 = vmatprep.subr.mxu0 0.0
        %2314 = vmatpush1.msra.mxu0 0.0
        %2315 = vmatprep.subr.mxu0 0.0
        %2316 = vmatpush1.msra.mxu0 0.0
        %2317 = vmatprep.subr.mxu0 0.0
        %2318 = vmatpush1.msra.mxu0 0.0
        %2319 = vmatprep.subr.mxu0 0.0
        %2320 = vmatpush1.msra.mxu0 0.0
        %2321 = vmatprep.subr.mxu0 0.0
        %2322 = vmatpush1.msra.mxu0 0.0
        %2323 = vmatprep.subr.mxu0 0.0
        %2324 = vmatpush1.msra.mxu0 0.0
        %2325 = vmatprep.subr.mxu0 0.0
        %2326 = vmatpush1.msra.mxu0 0.0
        %2327 = vmatprep.subr.mxu0 0.0
        %2328 = vmatpush1.msra.mxu0 0.0
        %2329 = vmatprep.subr.mxu0 0.0
        %2330 = vmatpush1.msra.mxu0 0.0
        %2331 = vmatprep.subr.mxu0 0.0
        %2332 = vmatpush1.msra.mxu0 0.0
        %2333 = vmatprep.subr.mxu0 0.0
        %2334 = vmatpush1.msra.mxu0 0.0
        %2335 = vmatprep.subr.mxu0 0.0
        %2336 = vmatpush1.msra.mxu0 0.0
        %2337 = vmatprep.subr.mxu0 0.0
        %2338 = vmatpush1.msra.mxu0 0.0
        %2339 = vmatprep.subr.mxu0 0.0
        %2340 = vmatpush1.msra.mxu0 0.0
        %2341 = vmatprep.subr.mxu0 0.0
        %2342 = vmatpush1.msra.mxu0 0.0
        %2343 = vmatprep.subr.mxu0 0.0
        %2344 = vmatpush1.msra.mxu0 0.0
        %2345 = vmatprep.mubr.f32.mxu0 0.0
        %2346 = vmatmul.mubr.f32.gmra.mrb[0].mxu0 %v2199
        %v2347 = vpop.f32.mrb[0].mxu0
        %v2348 = vadd.f32 0.0, %v2347
        %v2349 = vpop.f32.mrb[0].mxu0
        %v2350 = vadd.f32 0.0, %v2349
        %2351 = vmatprep.mubr.f32.mxu0 0.0
        %2352 = vmatmul.mubr.f32.gmra.mrb[0].mxu0 %v2202
        %v2353 = vpop.f32.mrb[0].mxu0
        %v2354 = vadd.f32 0.0, %v2353
        %v2355 = vpop.f32.mrb[0].mxu0
        %v2356 = vadd.f32 0.0, %v2355
        %2357 = vdwg.mxu0
        %v2359 = vsel %vm489, %v2193, 0
        %v2362 = vsel %vm489, %v2194, 0
        %2364 = vmatprep.subr.mxu0 %v723
        %2365 = vmatpush1.msra.mxu0 %v722
        %2366 = vmatprep.subr.mxu0 %v727
        %2367 = vmatpush1.msra.mxu0 %v726
        %2368 = vmatprep.subr.mxu0 0.0
        %2369 = vmatpush1.msra.mxu0 0.0
        %2370 = vmatprep.subr.mxu0 0.0
        %2371 = vmatpush1.msra.mxu0 0.0
        %2372 = vmatprep.subr.mxu0 0.0
        %2373 = vmatpush1.msra.mxu0 0.0
        %2374 = vmatprep.subr.mxu0 0.0
        %2375 = vmatpush1.msra.mxu0 0.0
        %2376 = vmatprep.subr.mxu0 0.0
        %2377 = vmatpush1.msra.mxu0 0.0
        %2378 = vmatprep.subr.mxu0 0.0
        %2379 = vmatpush1.msra.mxu0 0.0
        %2380 = vmatprep.subr.mxu0 0.0
        %2381 = vmatpush1.msra.mxu0 0.0
        %2382 = vmatprep.subr.mxu0 0.0
        %2383 = vmatpush1.msra.mxu0 0.0
        %2384 = vmatprep.subr.mxu0 0.0
        %2385 = vmatpush1.msra.mxu0 0.0
        %2386 = vmatprep.subr.mxu0 0.0
        %2387 = vmatpush1.msra.mxu0 0.0
        %2388 = vmatprep.subr.mxu0 0.0
        %2389 = vmatpush1.msra.mxu0 0.0
        %2390 = vmatprep.subr.mxu0 0.0
        %2391 = vmatpush1.msra.mxu0 0.0
        %2392 = vmatprep.subr.mxu0 0.0
        %2393 = vmatpush1.msra.mxu0 0.0
        %2394 = vmatprep.subr.mxu0 0.0
        %2395 = vmatpush1.msra.mxu0 0.0
        %2396 = vmatprep.subr.mxu0 0.0
        %2397 = vmatpush1.msra.mxu0 0.0
        %2398 = vmatprep.subr.mxu0 0.0
        %2399 = vmatpush1.msra.mxu0 0.0
        %2400 = vmatprep.subr.mxu0 0.0
        %2401 = vmatpush1.msra.mxu0 0.0
        %2402 = vmatprep.subr.mxu0 0.0
        %2403 = vmatpush1.msra.mxu0 0.0
        %2404 = vmatprep.subr.mxu0 0.0
        %2405 = vmatpush1.msra.mxu0 0.0
        %2406 = vmatprep.subr.mxu0 0.0
        %2407 = vmatpush1.msra.mxu0 0.0
        %2408 = vmatprep.subr.mxu0 0.0
        %2409 = vmatpush1.msra.mxu0 0.0
        %2410 = vmatprep.subr.mxu0 0.0
        %2411 = vmatpush1.msra.mxu0 0.0
        %2412 = vmatprep.subr.mxu0 0.0
        %2413 = vmatpush1.msra.mxu0 0.0
        %2414 = vmatprep.subr.mxu0 0.0
        %2415 = vmatpush1.msra.mxu0 0.0
        %2416 = vmatprep.subr.mxu0 0.0
        %2417 = vmatpush1.msra.mxu0 0.0
        %2418 = vmatprep.subr.mxu0 0.0
        %2419 = vmatpush1.msra.mxu0 0.0
        %2420 = vmatprep.subr.mxu0 0.0
        %2421 = vmatpush1.msra.mxu0 0.0
        %2422 = vmatprep.subr.mxu0 0.0
        %2423 = vmatpush1.msra.mxu0 0.0
        %2424 = vmatprep.subr.mxu0 0.0
        %2425 = vmatpush1.msra.mxu0 0.0
        %2426 = vmatprep.subr.mxu0 0.0
        %2427 = vmatpush1.msra.mxu0 0.0
        %2428 = vmatprep.mubr.f32.mxu0 0.0
        %2429 = vmatmul.mubr.f32.gmra.mrb[0].mxu0 %v2359
        %v2430 = vpop.f32.mrb[0].mxu0
        %v2431 = vadd.f32 %v2271, %v2430
        %v2432 = vpop.f32.mrb[0].mxu0
        %v2433 = vadd.f32 %v2273, %v2432
        %2434 = vmatprep.mubr.f32.mxu0 0.0
        %2435 = vmatmul.mubr.f32.gmra.mrb[0].mxu0 %v2362
        %v2436 = vpop.f32.mrb[0].mxu0
        %v2437 = vadd.f32 %v2277, %v2436
        %v2438 = vpop.f32.mrb[0].mxu0
        %v2439 = vadd.f32 %v2279, %v2438
        %2440 = vdwg.mxu0
        %2441 = vmatprep.subr.mxu0 %v725
        %2442 = vmatpush1.msra.mxu0 %v724
        %2443 = vmatprep.subr.mxu0 %v729
        %2444 = vmatpush1.msra.mxu0 %v728
        %2445 = vmatprep.subr.mxu0 0.0
        %2446 = vmatpush1.msra.mxu0 0.0
        %2447 = vmatprep.subr.mxu0 0.0
        %2448 = vmatpush1.msra.mxu0 0.0
        %2449 = vmatprep.subr.mxu0 0.0
        %2450 = vmatpush1.msra.mxu0 0.0
        %2451 = vmatprep.subr.mxu0 0.0
        %2452 = vmatpush1.msra.mxu0 0.0
        %2453 = vmatprep.subr.mxu0 0.0
        %2454 = vmatpush1.msra.mxu0 0.0
        %2455 = vmatprep.subr.mxu0 0.0
        %2456 = vmatpush1.msra.mxu0 0.0
        %2457 = vmatprep.subr.mxu0 0.0
        %2458 = vmatpush1.msra.mxu0 0.0
        %2459 = vmatprep.subr.mxu0 0.0
        %2460 = vmatpush1.msra.mxu0 0.0
        %2461 = vmatprep.subr.mxu0 0.0
        %2462 = vmatpush1.msra.mxu0 0.0
        %2463 = vmatprep.subr.mxu0 0.0
        %2464 = vmatpush1.msra.mxu0 0.0
        %2465 = vmatprep.subr.mxu0 0.0
        %2466 = vmatpush1.msra.mxu0 0.0
        %2467 = vmatprep.subr.mxu0 0.0
        %2468 = vmatpush1.msra.mxu0 0.0
        %2469 = vmatprep.subr.mxu0 0.0
        %2470 = vmatpush1.msra.mxu0 0.0
        %2471 = vmatprep.subr.mxu0 0.0
        %2472 = vmatpush1.msra.mxu0 0.0
        %2473 = vmatprep.subr.mxu0 0.0
        %2474 = vmatpush1.msra.mxu0 0.0
        %2475 = vmatprep.subr.mxu0 0.0
        %2476 = vmatpush1.msra.mxu0 0.0
        %2477 = vmatprep.subr.mxu0 0.0
        %2478 = vmatpush1.msra.mxu0 0.0
        %2479 = vmatprep.subr.mxu0 0.0
        %2480 = vmatpush1.msra.mxu0 0.0
        %2481 = vmatprep.subr.mxu0 0.0
        %2482 = vmatpush1.msra.mxu0 0.0
        %2483 = vmatprep.subr.mxu0 0.0
        %2484 = vmatpush1.msra.mxu0 0.0
        %2485 = vmatprep.subr.mxu0 0.0
        %2486 = vmatpush1.msra.mxu0 0.0
        %2487 = vmatprep.subr.mxu0 0.0
        %2488 = vmatpush1.msra.mxu0 0.0
        %2489 = vmatprep.subr.mxu0 0.0
        %2490 = vmatpush1.msra.mxu0 0.0
        %2491 = vmatprep.subr.mxu0 0.0
        %2492 = vmatpush1.msra.mxu0 0.0
        %2493 = vmatprep.subr.mxu0 0.0
        %2494 = vmatpush1.msra.mxu0 0.0
        %2495 = vmatprep.subr.mxu0 0.0
        %2496 = vmatpush1.msra.mxu0 0.0
        %2497 = vmatprep.subr.mxu0 0.0
        %2498 = vmatpush1.msra.mxu0 0.0
        %2499 = vmatprep.subr.mxu0 0.0
        %2500 = vmatpush1.msra.mxu0 0.0
        %2501 = vmatprep.subr.mxu0 0.0
        %2502 = vmatpush1.msra.mxu0 0.0
        %2503 = vmatprep.subr.mxu0 0.0
        %2504 = vmatpush1.msra.mxu0 0.0
        %2505 = vmatprep.mubr.f32.mxu0 0.0
        %2506 = vmatmul.mubr.f32.gmra.mrb[0].mxu0 %v2359
        %v2507 = vpop.f32.mrb[0].mxu0
        %v2508 = vadd.f32 %v2348, %v2507
        %v2509 = vpop.f32.mrb[0].mxu0
        %v2510 = vadd.f32 %v2350, %v2509
        %2511 = vmatprep.mubr.f32.mxu0 0.0
        %2512 = vmatmul.mubr.f32.gmra.mrb[0].mxu0 %v2362
        %v2513 = vpop.f32.mrb[0].mxu0
        %v2514 = vadd.f32 %v2354, %v2513
        %v2515 = vpop.f32.mrb[0].mxu0
        %v2516 = vadd.f32 %v2356, %v2515
        %2517 = vdwg.mxu0
        %2518 = vset.pattern.permute.xlu0 8
        %2519 = vperm.xlu0 %2518, %v475
        %v2520 = vpop.permute.xlu0 %2519
        %2522 = vset.pattern.permute.xlu0 8
        %2523 = vperm.xlu0 %2522, %v476
        %v2524 = vpop.permute.xlu0 %2523
        %v2526 = vadd.f32 %v2431, %v2520
        %v2527 = vadd.f32 %v2433, %v2520
        %v2528 = vadd.f32 %v2508, %v2520
        %v2529 = vadd.f32 %v2510, %v2520
        %v2530 = vadd.f32 %v2437, %v2524
        %v2531 = vadd.f32 %v2439, %v2524
        %v2532 = vadd.f32 %v2514, %v2524
        %v2533 = vadd.f32 %v2516, %v2524
        %v2534 = vand.u32 2147483647, %v2526
        %v2535 = vand.u32 2147483647, %v2527
        %v2536 = vand.u32 2147483647, %v2528
        %v2537 = vand.u32 2147483647, %v2529
        %v2538 = vand.u32 2147483647, %v2530
        %v2539 = vand.u32 2147483647, %v2531
        %v2540 = vand.u32 2147483647, %v2532
        %v2541 = vand.u32 2147483647, %v2533
        %v2542 = vsub.f32 0.0, %v2534
        %v2543 = vsub.f32 0.0, %v2535
        %v2544 = vsub.f32 0.0, %v2536
        %v2545 = vsub.f32 0.0, %v2537
        %v2546 = vsub.f32 0.0, %v2538
        %v2547 = vsub.f32 0.0, %v2539
        %v2548 = vsub.f32 0.0, %v2540
        %v2549 = vsub.f32 0.0, %v2541
        %v2550 = vmul.f32 %v2542, 1.442695
        %v2551 = vpow.pop %v2550
        %v2552 = vmul.f32 %v2543, 1.442695
        %v2553 = vpow.pop %v2552
        %v2554 = vmul.f32 %v2544, 1.442695
        %v2555 = vpow.pop %v2554
        %v2556 = vmul.f32 %v2545, 1.442695
        %v2557 = vpow.pop %v2556
        %v2558 = vmul.f32 %v2546, 1.442695
        %v2559 = vpow.pop %v2558
        %v2560 = vmul.f32 %v2547, 1.442695
        %v2561 = vpow.pop %v2560
        %v2562 = vmul.f32 %v2548, 1.442695
        %v2563 = vpow.pop %v2562
        %v2564 = vmul.f32 %v2549, 1.442695
        %v2565 = vpow.pop %v2564
        %v2566 = vadd.f32 %v2551, 1.0
        %v2567 = vadd.f32 %v2553, 1.0
        %v2568 = vadd.f32 %v2555, 1.0
        %v2569 = vadd.f32 %v2557, 1.0
        %v2570 = vadd.f32 %v2559, 1.0
        %v2571 = vadd.f32 %v2561, 1.0
        %v2572 = vadd.f32 %v2563, 1.0
        %v2573 = vadd.f32 %v2565, 1.0
        %v2574 = vrcp.pop %v2566
        %v2575 = vrcp.pop %v2567
        %v2576 = vrcp.pop %v2568
        %v2577 = vrcp.pop %v2569
        %v2578 = vrcp.pop %v2570
        %v2579 = vrcp.pop %v2571
        %v2580 = vrcp.pop %v2572
        %v2581 = vrcp.pop %v2573
        %vm2582 = vcmp.ge.f32.partialorder %v2526, 0.0
        %vm2583 = vcmp.ge.f32.partialorder %v2527, 0.0
        %vm2584 = vcmp.ge.f32.partialorder %v2528, 0.0
        %vm2585 = vcmp.ge.f32.partialorder %v2529, 0.0
        %vm2586 = vcmp.ge.f32.partialorder %v2530, 0.0
        %vm2587 = vcmp.ge.f32.partialorder %v2531, 0.0
        %vm2588 = vcmp.ge.f32.partialorder %v2532, 0.0
        %vm2589 = vcmp.ge.f32.partialorder %v2533, 0.0
        %v2590 = vsub.f32 1.0, %v2574
        %v2591 = vsub.f32 1.0, %v2575
        %v2592 = vsub.f32 1.0, %v2576
        %v2593 = vsub.f32 1.0, %v2577
        %v2594 = vsub.f32 1.0, %v2578
        %v2595 = vsub.f32 1.0, %v2579
        %v2596 = vsub.f32 1.0, %v2580
        %v2597 = vsub.f32 1.0, %v2581
        %v2598 = vsel %vm2582, %v2574, %v2590
        %v2599 = vsel %vm2583, %v2575, %v2591
        %v2600 = vsel %vm2584, %v2576, %v2592
        %v2601 = vsel %vm2585, %v2577, %v2593
        %v2602 = vsel %vm2586, %v2578, %v2594
        %v2603 = vsel %vm2587, %v2579, %v2595
        %v2604 = vsel %vm2588, %v2580, %v2596
        %v2605 = vsel %vm2589, %v2581, %v2597
        %v2606 = vmul.f32 %v2526, %v2598
        %v2607 = vmul.f32 %v2527, %v2599
        %v2608 = vmul.f32 %v2528, %v2600
        %v2609 = vmul.f32 %v2529, %v2601
        %v2610 = vmul.f32 %v2530, %v2602
        %v2611 = vmul.f32 %v2531, %v2603
        %v2612 = vmul.f32 %v2532, %v2604
        %v2613 = vmul.f32 %v2533, %v2605
        %2614 = vst [vmem:[%s466] sm:$0xff] %v2606
        %2615 = vst [vmem:[%s466 + $0x8] sm:$0xff] %v2607
        %2616 = vst [vmem:[%s466 + $0x10] sm:$0xff] %v2608
        %2617 = vst [vmem:[%s466 + $0x18] sm:$0xff] %v2609
        %2618 = vst [vmem:[%s466 + $0x20] sm:$0xff] %v2610
        %2619 = vst [vmem:[%s466 + $0x28] sm:$0xff] %v2611
        %2620 = vst [vmem:[%s466 + $0x30] sm:$0xff] %v2612
        %2621 = vst [vmem:[%s466 + $0x38] sm:$0xff] %v2613
        %s2622 = sand.u32 %s232, 1
        %s2623 = scalar_lea.sflag [#allocation4], %s2622
        %s2624 = sand.u32 %s232, 1
        %s2625 = smul.addr %s2624, 64
        %s2626 = scalar_lea.vmem [#allocation17], %s2625
        // Predicated region
        $region93: #{tpu_custom_call.1} parent=55 // pred_check
          %p2627 = pneg %p242
        $region94: #{tpu_custom_call.1} parent=55 // pred_check_branch
          %2629 = sbr.rel (%p2627) target = $region96
        $region95: #{tpu_custom_call.1} parent=55 // pred_region
          %s2631 = ssub.s32 1024, 1024
          %2632 = vsyncadd %s2623, %s2631
          %s2633 = smul.addr %s30, 8
          %s2634 = smul.addr %s2633, 128
          %s2635 = scalar_lea.hbm %s9, %s2634
          %s2636 = sshll.u32 %s2626, 4
          %s2637 = int_to_ptr.vmem [resolvable:$true] %s2636
          %2642 = dma.vmem_to_hbm [thread:$0]  %s2637, 1024, %s2635, %s2623, 512, 512, 32
        $region96: #{tpu_custom_call.1} parent=55 // pred_fallthru
          _
      $region56: #{tpu_custom_call.1} parent=5 // pred_fallthru
        _
      %p2643 = scmp.le.s32.totalorder 2, %s25
      // Predicated region
      $region97: #{tpu_custom_call.1} parent=5 // pred_check
        %p2644 = pneg %p2643
      $region98: #{tpu_custom_call.1} parent=5 // pred_check_branch
        %2646 = sbr.rel (%p2644) target = $region100
      $region99: #{tpu_custom_call.1} parent=5 // pred_region
        %s2647 = ssub.s32 %s25, 2
        // Predicated region
        $region101: #{tpu_custom_call.1} parent=99 // pred_check
          %p2648 = pneg %p248
        $region102: #{tpu_custom_call.1} parent=99 // pred_check_branch
          %2650 = sbr.rel (%p2648) target = $region104
        $region103: #{tpu_custom_call.1} parent=99 // pred_region
          %s2651 = sand.u32 %s233, 1
          %s2652 = scalar_lea.sflag [#allocation4], %s2651
          %s2653 = sand.u32 %s233, 1
          %s2654 = smul.addr %s2653, 64
          %s2655 = scalar_lea.vmem [#allocation17], %s2654
          %2656 = dma.done %s2652, 1024
        $region104: #{tpu_custom_call.1} parent=99 // pred_fallthru
          _
      $region100: #{tpu_custom_call.1} parent=5 // pred_fallthru
        _
    $region6: #{tpu_custom_call.1} parent=1 // loop_footer
      %s29 = sadd.s32 1, %s25
    $region7: #{tpu_custom_call.1} parent=1 // loop_footer_branch
      %24 = sbr.rel target = $region3
    $region8: #{tpu_custom_call.1} parent=1 // loop_exit
      _
    %2657 = vsyncpa [#allocation3], 1
    %s2658 = scalar_lea.sflag [#allocation3], 1
    %2659 = vsyncpa %s2658, 1
    %2660 = vsyncpa [#allocation6], 1
    %2661 = vsyncpa [#allocation9], 1
    %2662 = vsyncpa [#allocation12], 1
    %2663 = vsyncpa [#allocation15], 1
    %2664 = vsyncpa [#allocation4], 1
    %s2665 = scalar_lea.sflag [#allocation4], 1
    %2666 = vsyncpa %s2665, 1

</llo_original>
